<compile_context>
chip_gen: v7x
topology: tpu7x:2x2x1
jax: 0.10.0
libtpu: 0.0.40
codegen_flags: <defaults>
</compile_context>

<pallas_src>
import functools
import math

import jax
import jax.numpy as jnp
from jax.experimental import pallas as pl
from jax.experimental.pallas import tpu as pltpu

D_MODEL = 32
HEADS = 4
D_HEAD = D_MODEL // HEADS
D_FF = 64
D_AUG = 40                      # D_MODEL + 8: bias column at lane 32, zero pad to a sublane multiple
EPS = 1e-6
NEG_INF = -1e18

# --- packed-weight row layout (every block starts at a multiple of 8 sublanes, lane 0) ---
ROW_A_SA = 0                                   # 4 x (40, 40)  folded Q.K^T   (self)
ROW_B_SA = ROW_A_SA + HEADS * D_AUG            # 4 x (40, 40)  folded V.Wo    (self)
ROW_A_CA = ROW_B_SA + HEADS * D_AUG            # 4 x (40, 40)  folded Q.K^T   (context)
ROW_B_CA = ROW_A_CA + HEADS * D_AUG            # 4 x (40, 40)  folded V.Wo    (context)
ROW_W1 = ROW_B_CA + HEADS * D_AUG              # (40, 64)      ffln-folded FFN W1 (+bias row)
ROW_W2 = ROW_W1 + D_AUG                        # (64, 40)      FFN W2 (lane-padded)
ROW_BO_SA = ROW_W2 + D_FF                      # (1, 40)       self-attn output bias
ROW_BO_CA = ROW_BO_SA + 8                      # (1, 40)       context-attn output bias
ROW_B2 = ROW_BO_CA + 8                         # (1, 40)       FFN second bias
N_WROWS = ROW_B2 + 8                           # 768 rows total
PACK_W = 64


# --------------------------------- Pallas kernel --------------------------------
def _decoder_layer_kernel(B, T, S,
                          x_ref, mem_ref, mask_ref, w_ref,
                          out_ref, attn_ref):
    BT, BS, D = B * T, B * S, D_MODEL

    lane = jax.lax.broadcasted_iota(jnp.int32, (1, D_AUG), 1)
    aug_one = (lane == D).astype(jnp.float32)            # one-hot "bias" column at lane D
    inv_d = 1.0 / D

    def norm_aug(v):
        # v: (N, D_AUG) with lanes D..D_AUG-1 == 0.  Returns [norm(v[:, :D]) | 1 | 0...].
        mu = jnp.sum(v, axis=-1, keepdims=True) * inv_d
        var = jnp.sum(v * v, axis=-1, keepdims=True) * inv_d - mu * mu
        vn = (v - mu) * jax.lax.rsqrt(var + EPS)
        return jnp.where(lane < D, vn, aug_one)

    def softmax(s):
        m = jnp.max(s, axis=-1, keepdims=True)
        e = jnp.exp(s - m)
        z = jnp.sum(e, axis=-1, keepdims=True)
        return e * pl.reciprocal(z, approx=True)          # EUP slot

    def attention(q1, kv1, add_mask, row_a, row_b):
        # q1: (BT, 40) bias-augmented queries; kv1: (L, 40) bias-augmented keys/values.
        acc = jnp.zeros((BT, D_AUG), jnp.float32)
        attn0 = None
        for h in range(HEADS):
            a_blk = w_ref[row_a + h * D_AUG: row_a + (h + 1) * D_AUG, 0:D_AUG]   # (40, 40)
            b_blk = w_ref[row_b + h * D_AUG: row_b + (h + 1) * D_AUG, 0:D_AUG]   # (40, 40)
            t = jnp.dot(q1, a_blk, preferred_element_type=jnp.float32)           # (BT, 40)
            s = jax.lax.dot_general(t, kv1, (((1,), (1,)), ((), ())),
                                    preferred_element_type=jnp.float32)          # (BT, L)
            p = softmax(s + add_mask)
            if h == 0:
                attn0 = p
            vo = jnp.dot(kv1, b_blk, preferred_element_type=jnp.float32)         # (L, 40)
            acc = acc + jnp.dot(p, vo, preferred_element_type=jnp.float32)       # (BT, 40)
        return acc, attn0

    x = x_ref[...]                               # (BT, 40), lanes 32..39 are zero
    mem1 = mem_ref[...]                          # (BS, 40), lane 32 == 1
    self_mask = mask_ref[0:BT, 0:BT]             # additive 0 / -1e18
    cross_mask = mask_ref[BT:2 * BT, 0:BS]

    # ---- self attention (pre-norm; ln1, 1/sqrt(d_head) and Q/K/V biases pre-folded) ----
    xn1 = norm_aug(x)
    sa_acc, _ = attention(xn1, xn1, self_mask, ROW_A_SA, ROW_B_SA)
    query = sa_acc + w_ref[ROW_BO_SA:ROW_BO_SA + 1, 0:D_AUG] + x     # dropout == identity

    # ---- context (cross) attention over the bias-augmented memory bank ----
    qn1 = norm_aug(query)
    ca_acc, attn0 = attention(qn1, mem1, cross_mask, ROW_A_CA, ROW_B_CA)
    ff_in = ca_acc + w_ref[ROW_BO_CA:ROW_BO_CA + 1, 0:D_AUG] + query  # dropout == identity

    # ---- PositionwiseFeedForward: LN -> Linear -> ReLU -> Linear -> +residual ----
    fn1 = norm_aug(ff_in)
    inter = jnp.maximum(
        jnp.dot(fn1, w_ref[ROW_W1:ROW_W1 + D_AUG, 0:D_FF],
                preferred_element_type=jnp.float32), 0.0)                        # (BT, 64)
    ff_out = jnp.dot(inter, w_ref[ROW_W2:ROW_W2 + D_FF, 0:D_AUG],
                     preferred_element_type=jnp.float32)
    ff_out = ff_out + w_ref[ROW_B2:ROW_B2 + 1, 0:D_AUG]

    out_ref[...] = (ff_out + ff_in)[:, 0:D]       # (BT, 32)
    attn_ref[...] = attn0                         # (BT, BS) head-0 context attention


# ----------------------------------- wrapper ------------------------------------
def transformer_decoder_layer(inputs, memory_bank, src_pad_mask, tgt_pad_mask, wpack):
    """step=None path of TransformerDecoderLayer.forward (eval mode)."""
    B, T, D = inputs.shape
    S = memory_bank.shape[1]
    assert D == D_MODEL
    BT, BS = B * T, B * S
    MW = max(BT, BS)

    # ---- per-call operands (cheap XLA prep outside the kernel) ----
    x1 = jnp.zeros((BT, D_AUG), jnp.float32).at[:, :D].set(
        inputs.reshape(BT, D).astype(jnp.float32))
    mem1 = jnp.zeros((BS, D_AUG), jnp.float32).at[:, :D].set(
        memory_bank.reshape(BS, D).astype(jnp.float32)).at[:, D].set(1.0)

    qb = jnp.repeat(jnp.arange(B), T)
    qpos = jnp.tile(jnp.arange(T), B)
    kb_s = jnp.repeat(jnp.arange(B), S)
    tgt_pad = tgt_pad_mask.reshape(BT) > 0
    src_pad = src_pad_mask.reshape(BS) > 0
    self_masked = ((qb[:, None] != qb[None, :])
                   | (qpos[None, :] > qpos[:, None])
                   | tgt_pad[None, :])                                # (BT, BT)
    cross_masked = (qb[:, None] != kb_s[None, :]) | src_pad[None, :]  # (BT, BS)
    maskpack = jnp.zeros((2 * BT, MW), jnp.float32)
    maskpack = maskpack.at[:BT, :BT].set(jnp.where(self_masked, NEG_INF, 0.0))
    maskpack = maskpack.at[BT:, :BS].set(jnp.where(cross_masked, NEG_INF, 0.0))

    operands = [x1, mem1, maskpack, wpack]        # 4 input DMAs total

    def full_spec(shape):
        nd = len(shape)
        return pl.BlockSpec(shape, lambda i, _nd=nd: (0,) * _nd)

    out_flat, attn_full = pl.pallas_call(
        functools.partial(_decoder_layer_kernel, B, T, S),
        out_shape=(jax.ShapeDtypeStruct((BT, D), jnp.float32),
                   jax.ShapeDtypeStruct((BT, BS), jnp.float32)),
        grid_spec=pltpu.PrefetchScalarGridSpec(
            num_scalar_prefetch=0,
            grid=(1,),
            in_specs=[full_spec(a.shape) for a in operands],
            out_specs=(full_spec((BT, D)), full_spec((BT, BS)))),
        compiler_params=pltpu.CompilerParams(
            dimension_semantics=("arbitrary",)),
    )(*operands)

    # head-0 context attention: same-batch block diagonal of the folded (BT, BS) map.
    bi = jnp.arange(B)
    attn = attn_full.reshape(B, T, B, S)[bi, :, bi, :]     # (B, T, S)
    return out_flat.reshape(B, T, D), attn


# ------------------------------- parameter setup ---------------------------------
def init_raw_params(key):
    """Raw (unfused, unscaled) synthetic weights; Linear weights stored (in, out)."""
    s = 0.1
    keys = jax.random.split(key, 16)
    ki = iter(keys)

    def lin(din, dout):
        kw, kb = jax.random.split(next(ki))
        return (s * jax.random.normal(kw, (din, dout), jnp.float32),
                s * jax.random.normal(kb, (dout,), jnp.float32))

    def ln():
        kg, kb = jax.random.split(next(ki))
        return (1.0 + s * jax.random.normal(kg, (D_MODEL,), jnp.float32),
                s * jax.random.normal(kb, (D_MODEL,), jnp.float32))

    p = {}
    p['ln1_g'], p['ln1_b'] = ln()
    p['ln2_g'], p['ln2_b'] = ln()
    p['ffln_g'], p['ffln_b'] = ln()
    p['sa_wq'], p['sa_bq'] = lin(D_MODEL, D_MODEL)
    p['sa_wk'], p['sa_bk'] = lin(D_MODEL, D_MODEL)
    p['sa_wv'], p['sa_bv'] = lin(D_MODEL, D_MODEL)
    p['sa_wo'], p['sa_bo'] = lin(D_MODEL, D_MODEL)
    p['ca_wq'], p['ca_bq'] = lin(D_MODEL, D_MODEL)
    p['ca_wk'], p['ca_bk'] = lin(D_MODEL, D_MODEL)
    p['ca_wv'], p['ca_bv'] = lin(D_MODEL, D_MODEL)
    p['ca_wo'], p['ca_bo'] = lin(D_MODEL, D_MODEL)
    p['ff_w1'], p['ff_b1'] = lin(D_MODEL, D_FF)
    p['ff_w2'], p['ff_b2'] = lin(D_FF, D_MODEL)
    return p


def pack_params(p):
    """Host-side packing: fold LayerNorm affines + attention scale + all per-head
    Q/K/V/O algebra into block matrices stored in one (768, 64) array."""
    scale = 1.0 / math.sqrt(D_HEAD)
    D = D_MODEL
    hdot = functools.partial(jnp.dot, precision=jax.lax.Precision.HIGHEST)

    def aug(w, b):
        # (D, n), (n,) -> (D_AUG, n): rows 0:D = w, row D = b, remaining rows zero.
        return jnp.zeros((D_AUG, w.shape[1]), jnp.float32).at[:D].set(w).at[D].set(b)

    def ln_fold(g, beta, w, b):
        # linear(LayerNorm_affine(xn)) == xn @ (g*w) + (beta @ w + b), xn = norm(x)
        return g[:, None] * w, hdot(beta, w) + b

    def pad_cols(m):
        return jnp.zeros((m.shape[0], D_AUG), jnp.float32).at[:, :m.shape[1]].set(m)

    wpack = jnp.zeros((N_WROWS, PACK_W), jnp.float32)

    def set_block(w, row, block):
        return w.at[row:row + block.shape[0], :block.shape[1]].set(block)

    # ---- self attention: ln1 + 1/sqrt(d_head) folded; A_h = Wq_aug Wk_aug^T, B_h = Wv_aug Wo_h
    wq, bq = ln_fold(p['ln1_g'], p['ln1_b'], p['sa_wq'] * scale, p['sa_bq'] * scale)
    wk, bk = ln_fold(p['ln1_g'], p['ln1_b'], p['sa_wk'], p['sa_bk'])
    wv, bv = ln_fold(p['ln1_g'], p['ln1_b'], p['sa_wv'], p['sa_bv'])
    for h in range(HEADS):
        hs = slice(h * D_HEAD, (h + 1) * D_HEAD)
        a_blk = hdot(aug(wq[:, hs], bq[hs]), aug(wk[:, hs], bk[hs]).T)        # (40, 40)
        b_blk = pad_cols(hdot(aug(wv[:, hs], bv[hs]), p['sa_wo'][hs, :]))     # (40, 40)
        wpack = set_block(wpack, ROW_A_SA + h * D_AUG, a_blk)
        wpack = set_block(wpack, ROW_B_SA + h * D_AUG, b_blk)

    # ---- context attention: ln2 + scale folded into Q only (memory is un-normalized)
    cq, cbq = ln_fold(p['ln2_g'], p['ln2_b'], p['ca_wq'] * scale, p['ca_bq'] * scale)
    for h in range(HEADS):
        hs = slice(h * D_HEAD, (h + 1) * D_HEAD)
        a_blk = hdot(aug(cq[:, hs], cbq[hs]),
                     aug(p['ca_wk'][:, hs], p['ca_bk'][hs]).T)
        b_blk = pad_cols(hdot(aug(p['ca_wv'][:, hs], p['ca_bv'][hs]),
                              p['ca_wo'][hs, :]))
        wpack = set_block(wpack, ROW_A_CA + h * D_AUG, a_blk)
        wpack = set_block(wpack, ROW_B_CA + h * D_AUG, b_blk)

    # ---- feed-forward: ffln folded into W1 (+ its bias row); W2/biases lane-padded to 40
    w1, b1 = ln_fold(p['ffln_g'], p['ffln_b'], p['ff_w1'], p['ff_b1'])
    wpack = set_block(wpack, ROW_W1, aug(w1, b1))                             # (40, 64)
    wpack = set_block(wpack, ROW_W2, pad_cols(p['ff_w2']))                    # (64, 40)
    wpack = set_block(wpack, ROW_BO_SA, pad_cols(p['sa_bo'][None, :]))        # (1, 40)
    wpack = set_block(wpack, ROW_BO_CA, pad_cols(p['ca_bo'][None, :]))
    wpack = set_block(wpack, ROW_B2, pad_cols(p['ff_b2'][None, :]))
    return wpack


# -------------------------------- pure-JAX reference ------------------------------
def reference_forward(inputs, memory_bank, src_pad_mask, tgt_pad_mask, p):
    B, T, _ = inputs.shape
    prec = jax.lax.Precision.HIGHEST

    future = jnp.triu(jnp.ones((T, T), jnp.bool_), k=1)
    dec_mask = jnp.logical_or(tgt_pad_mask.astype(bool), future[None])   # (B, T, T)
    src_mask = src_pad_mask.astype(bool)                                 # (B, 1, S)

    def layer_norm(x, g, b):
        mu = jnp.mean(x, axis=-1, keepdims=True)
        var = jnp.mean((x - mu) ** 2, axis=-1, keepdims=True)
        return (x - mu) * jax.lax.rsqrt(var + EPS) * g + b

    def mha(qin, kin, vin, wq, bq, wk, bk, wv, bv, wo, bo, mask):
        Bq, Lq, _ = qin.shape
        Lk = kin.shape[1]
        scale = 1.0 / math.sqrt(D_HEAD)
        Q = (jnp.einsum('bld,de->ble', qin, wq, precision=prec) + bq
             ).reshape(Bq, Lq, HEADS, D_HEAD)
        K = (jnp.einsum('bld,de->ble', kin, wk, precision=prec) + bk
             ).reshape(Bq, Lk, HEADS, D_HEAD)
        V = (jnp.einsum('bld,de->ble', vin, wv, precision=prec) + bv
             ).reshape(Bq, Lk, HEADS, D_HEAD)
        s = jnp.einsum('bqhd,bkhd->bhqk', Q * scale, K, precision=prec)
        s = jnp.where(mask[:, None], NEG_INF, s)
        attn = jax.nn.softmax(s, axis=-1)
        ctx = jnp.einsum('bhqk,bkhd->bqhd', attn, V,
                         precision=prec).reshape(Bq, Lq, D_MODEL)
        out = jnp.einsum('bld,de->ble', ctx, wo, precision=prec) + bo
        return out, attn[:, 0]

    x = inputs
    xn = layer_norm(x, p['ln1_g'], p['ln1_b'])
    q_out, _ = mha(xn, xn, xn,
                   p['sa_wq'], p['sa_bq'], p['sa_wk'], p['sa_bk'],
                   p['sa_wv'], p['sa_bv'], p['sa_wo'], p['sa_bo'], dec_mask)
    query = q_out + x
    qn = layer_norm(query, p['ln2_g'], p['ln2_b'])
    mid, attn = mha(qn, memory_bank, memory_bank,
                    p['ca_wq'], p['ca_bq'], p['ca_wk'], p['ca_bk'],
                    p['ca_wv'], p['ca_bv'], p['ca_wo'], p['ca_bo'], src_mask)
    ff_in = mid + query
    fn = layer_norm(ff_in, p['ffln_g'], p['ffln_b'])
    inter = jax.nn.relu(jnp.einsum('bld,df->blf', fn, p['ff_w1'],
                                   precision=prec) + p['ff_b1'])
    ff_out = jnp.einsum('blf,fd->bld', inter, p['ff_w2'],
                        precision=prec) + p['ff_b2']
    return ff_out + ff_in, attn


# -------------------------------------- main --------------------------------------
if __name__ == "__main__":
    B, T, S = 2, 8, 16

    key = jax.random.PRNGKey(0)
    k_in, k_mem, k_par = jax.random.split(key, 3)

    inputs = jax.random.normal(k_in, (B, T, D_MODEL), jnp.float32)
    memory_bank = jax.random.normal(k_mem, (B, S, D_MODEL), jnp.float32)

    # src_pad_mask: (B, 1, S), 1 = padded. Pad last 2 source positions of batch 1.
    src_pad_mask = jnp.zeros((B, 1, S), jnp.int32).at[1, 0, S - 2:].set(1)
    # tgt_pad_mask: (B, 1, T). Pad last target position of batch 1.
    tgt_pad_mask = jnp.zeros((B, 1, T), jnp.int32).at[1, 0, T - 1:].set(1)

    raw_params = init_raw_params(k_par)
    wpack = pack_params(raw_params)

    out, attn = transformer_decoder_layer(inputs, memory_bank,
                                          src_pad_mask, tgt_pad_mask, wpack)
    jax.block_until_ready((out, attn))

    ref_out, ref_attn = reference_forward(inputs, memory_bank,
                                          src_pad_mask, tgt_pad_mask, raw_params)

    assert out.shape == (B, T, D_MODEL) and attn.shape == (B, T, S)
    assert jnp.allclose(out, ref_out, atol=1e-2, rtol=1e-2)
    assert jnp.allclose(attn, ref_attn, atol=1e-2, rtol=1e-2)

    print("KERNEL_OK")
</pallas_src>

<mosaic_0001>
module attributes {stable_mosaic.version = 11 : i64} {
  func.func @_decoder_layer_kernel(%arg0: i32, %arg1: memref<16x40xf32, #tpu.memory_space<vmem>>, %arg2: memref<32x40xf32, #tpu.memory_space<vmem>>, %arg3: memref<32x32xf32, #tpu.memory_space<vmem>>, %arg4: memref<768x64xf32, #tpu.memory_space<vmem>>, %arg5: memref<16x32xf32, #tpu.memory_space<vmem>>, %arg6: memref<16x32xf32, #tpu.memory_space<vmem>>) attributes {dimension_semantics = [#tpu.dimension_semantics<arbitrary>], iteration_bounds = array<i64: 1>, scalar_prefetch = 0 : i64, scratch_operands = 0 : i64, tpu.core_type = #tpu.core_type<tc>, window_params = [{pipeline_mode = #tpu.pipeline_mode<synchronous>, transform_indices = @transform_0, window_bounds = array<i64: 16, 40>}, {pipeline_mode = #tpu.pipeline_mode<synchronous>, transform_indices = @transform_1, window_bounds = array<i64: 32, 40>}, {pipeline_mode = #tpu.pipeline_mode<synchronous>, transform_indices = @transform_2, window_bounds = array<i64: 32, 32>}, {pipeline_mode = #tpu.pipeline_mode<synchronous>, transform_indices = @transform_3, window_bounds = array<i64: 768, 64>}, {pipeline_mode = #tpu.pipeline_mode<synchronous>, transform_indices = @transform_4, window_bounds = array<i64: 16, 32>}, {pipeline_mode = #tpu.pipeline_mode<synchronous>, transform_indices = @transform_5, window_bounds = array<i64: 16, 32>}]} {
    %0 = tpu.iota {dimensions = array<i32: 1>} : vector<1x40xi32>
    %c32_i32 = arith.constant 32 : i32
    %1 = vector.broadcast %c32_i32 : i32 to vector<1x40xi32>
    %2 = arith.cmpi eq, %0, %1 : vector<1x40xi32>
    %3 = arith.extui %2 : vector<1x40xi1> to vector<1x40xi32>
    %4 = arith.sitofp %3 : vector<1x40xi32> to vector<1x40xf32>
    %c0 = arith.constant 0 : index
    %c0_0 = arith.constant 0 : index
    %5 = vector.load %arg1[%c0, %c0_0] : memref<16x40xf32, #tpu.memory_space<vmem>>, vector<16x40xf32>
    %c0_1 = arith.constant 0 : index
    %c0_2 = arith.constant 0 : index
    %6 = vector.load %arg2[%c0_1, %c0_2] : memref<32x40xf32, #tpu.memory_space<vmem>>, vector<32x40xf32>
    %c0_3 = arith.constant 0 : index
    %c0_4 = arith.constant 0 : index
    %7 = vector.load %arg3[%c0_3, %c0_4] : memref<32x32xf32, #tpu.memory_space<vmem>>, vector<16x16xf32>
    %c16 = arith.constant 16 : index
    %c0_5 = arith.constant 0 : index
    %8 = vector.load %arg3[%c16, %c0_5] : memref<32x32xf32, #tpu.memory_space<vmem>>, vector<16x32xf32>
    %cst = arith.constant dense<0.000000e+00> : vector<16xf32>
    %9 = vector.multi_reduction <add>, %5, %cst [1] : vector<16x40xf32> to vector<16xf32>
    %10 = vector.shape_cast %9 : vector<16xf32> to vector<16x1xf32>
    %cst_6 = arith.constant 3.125000e-02 : f32
    %11 = vector.broadcast %cst_6 : f32 to vector<16x1xf32>
    %12 = arith.mulf %10, %11 : vector<16x1xf32>
    %13 = arith.mulf %5, %5 : vector<16x40xf32>
    %cst_7 = arith.constant dense<0.000000e+00> : vector<16xf32>
    %14 = vector.multi_reduction <add>, %13, %cst_7 [1] : vector<16x40xf32> to vector<16xf32>
    %15 = vector.shape_cast %14 : vector<16xf32> to vector<16x1xf32>
    %cst_8 = arith.constant 3.125000e-02 : f32
    %16 = vector.broadcast %cst_8 : f32 to vector<16x1xf32>
    %17 = arith.mulf %15, %16 : vector<16x1xf32>
    %18 = arith.mulf %12, %12 : vector<16x1xf32>
    %19 = arith.subf %17, %18 : vector<16x1xf32>
    %20 = vector.broadcast %12 : vector<16x1xf32> to vector<16x40xf32>
    %21 = arith.subf %5, %20 : vector<16x40xf32>
    %cst_9 = arith.constant 9.99999997E-7 : f32
    %22 = vector.broadcast %cst_9 : f32 to vector<16x1xf32>
    %23 = arith.addf %19, %22 : vector<16x1xf32>
    %24 = math.rsqrt %23 : vector<16x1xf32>
    %25 = vector.broadcast %24 : vector<16x1xf32> to vector<16x40xf32>
    %26 = arith.mulf %21, %25 : vector<16x40xf32>
    %c32_i32_10 = arith.constant 32 : i32
    %27 = vector.broadcast %c32_i32_10 : i32 to vector<1x40xi32>
    %28 = arith.cmpi slt, %0, %27 : vector<1x40xi32>
    %29 = vector.shape_cast %28 : vector<1x40xi1> to vector<1x40xi1>
    %30 = vector.broadcast %29 : vector<1x40xi1> to vector<16x40xi1>
    %31 = vector.shape_cast %4 : vector<1x40xf32> to vector<1x40xf32>
    %32 = vector.broadcast %31 : vector<1x40xf32> to vector<16x40xf32>
    %33 = arith.select %30, %26, %32 : vector<16x40xi1>, vector<16x40xf32>
    %cst_11 = arith.constant 0.000000e+00 : f32
    %34 = vector.broadcast %cst_11 : f32 to vector<16x40xf32>
    %c0_12 = arith.constant 0 : index
    %c0_13 = arith.constant 0 : index
    %35 = vector.load %arg4[%c0_12, %c0_13] : memref<768x64xf32, #tpu.memory_space<vmem>>, vector<40x40xf32>
    %c160 = arith.constant 160 : index
    %c0_14 = arith.constant 0 : index
    %36 = vector.load %arg4[%c160, %c0_14] : memref<768x64xf32, #tpu.memory_space<vmem>>, vector<40x40xf32>
    %cst_15 = arith.constant dense<0.000000e+00> : vector<16x40xf32>
    %37 = tpu.matmul %33, %35, %cst_15 {dimension_numbers = #tpu.dot_dimension_numbers<[1], [0], [0], [1], [0, 0, 1, 1], [], []>} : vector<16x40xf32>, vector<40x40xf32>, vector<16x40xf32> -> vector<16x40xf32>
    %cst_16 = arith.constant dense<0.000000e+00> : vector<16x16xf32>
    %38 = tpu.matmul %37, %33, %cst_16 {dimension_numbers = #tpu.dot_dimension_numbers<[1], [1], [0], [0], [0, 0, 1, 0], [], []>} : vector<16x40xf32>, vector<16x40xf32>, vector<16x16xf32> -> vector<16x16xf32>
    %39 = arith.addf %38, %7 : vector<16x16xf32>
    %cst_17 = arith.constant dense<0xFF800000> : vector<16xf32>
    %40 = vector.multi_reduction <maximumf>, %39, %cst_17 [1] : vector<16x16xf32> to vector<16xf32>
    %41 = vector.shape_cast %40 : vector<16xf32> to vector<16x1xf32>
    %42 = vector.broadcast %41 : vector<16x1xf32> to vector<16x16xf32>
    %43 = arith.subf %39, %42 : vector<16x16xf32>
    %44 = math.exp %43 : vector<16x16xf32>
    %cst_18 = arith.constant dense<0.000000e+00> : vector<16xf32>
    %45 = vector.multi_reduction <add>, %44, %cst_18 [1] : vector<16x16xf32> to vector<16xf32>
    %46 = vector.shape_cast %45 : vector<16xf32> to vector<16x1xf32>
    %47 = tpu.reciprocal %46 {approx = true} : vector<16x1xf32> -> vector<16x1xf32>
    %48 = vector.broadcast %47 : vector<16x1xf32> to vector<16x16xf32>
    %49 = arith.mulf %44, %48 : vector<16x16xf32>
    %cst_19 = arith.constant dense<0.000000e+00> : vector<16x40xf32>
    %50 = tpu.matmul %33, %36, %cst_19 {dimension_numbers = #tpu.dot_dimension_numbers<[1], [0], [0], [1], [0, 0, 1, 1], [], []>} : vector<16x40xf32>, vector<40x40xf32>, vector<16x40xf32> -> vector<16x40xf32>
    %cst_20 = arith.constant dense<0.000000e+00> : vector<16x40xf32>
    %51 = tpu.matmul %49, %50, %cst_20 {dimension_numbers = #tpu.dot_dimension_numbers<[1], [0], [0], [1], [0, 0, 1, 1], [], []>} : vector<16x16xf32>, vector<16x40xf32>, vector<16x40xf32> -> vector<16x40xf32>
    %52 = arith.addf %34, %51 : vector<16x40xf32>
    %c40 = arith.constant 40 : index
    %c0_21 = arith.constant 0 : index
    %53 = vector.load %arg4[%c40, %c0_21] : memref<768x64xf32, #tpu.memory_space<vmem>>, vector<40x40xf32>
    %c200 = arith.constant 200 : index
    %c0_22 = arith.constant 0 : index
    %54 = vector.load %arg4[%c200, %c0_22] : memref<768x64xf32, #tpu.memory_space<vmem>>, vector<40x40xf32>
    %cst_23 = arith.constant dense<0.000000e+00> : vector<16x40xf32>
    %55 = tpu.matmul %33, %53, %cst_23 {dimension_numbers = #tpu.dot_dimension_numbers<[1], [0], [0], [1], [0, 0, 1, 1], [], []>} : vector<16x40xf32>, vector<40x40xf32>, vector<16x40xf32> -> vector<16x40xf32>
    %cst_24 = arith.constant dense<0.000000e+00> : vector<16x16xf32>
    %56 = tpu.matmul %55, %33, %cst_24 {dimension_numbers = #tpu.dot_dimension_numbers<[1], [1], [0], [0], [0, 0, 1, 0], [], []>} : vector<16x40xf32>, vector<16x40xf32>, vector<16x16xf32> -> vector<16x16xf32>
    %57 = arith.addf %56, %7 : vector<16x16xf32>
    %cst_25 = arith.constant dense<0xFF800000> : vector<16xf32>
    %58 = vector.multi_reduction <maximumf>, %57, %cst_25 [1] : vector<16x16xf32> to vector<16xf32>
    %59 = vector.shape_cast %58 : vector<16xf32> to vector<16x1xf32>
    %60 = vector.broadcast %59 : vector<16x1xf32> to vector<16x16xf32>
    %61 = arith.subf %57, %60 : vector<16x16xf32>
    %62 = math.exp %61 : vector<16x16xf32>
    %cst_26 = arith.constant dense<0.000000e+00> : vector<16xf32>
    %63 = vector.multi_reduction <add>, %62, %cst_26 [1] : vector<16x16xf32> to vector<16xf32>
    %64 = vector.shape_cast %63 : vector<16xf32> to vector<16x1xf32>
    %65 = tpu.reciprocal %64 {approx = true} : vector<16x1xf32> -> vector<16x1xf32>
    %66 = vector.broadcast %65 : vector<16x1xf32> to vector<16x16xf32>
    %67 = arith.mulf %62, %66 : vector<16x16xf32>
    %cst_27 = arith.constant dense<0.000000e+00> : vector<16x40xf32>
    %68 = tpu.matmul %33, %54, %cst_27 {dimension_numbers = #tpu.dot_dimension_numbers<[1], [0], [0], [1], [0, 0, 1, 1], [], []>} : vector<16x40xf32>, vector<40x40xf32>, vector<16x40xf32> -> vector<16x40xf32>
    %cst_28 = arith.constant dense<0.000000e+00> : vector<16x40xf32>
    %69 = tpu.matmul %67, %68, %cst_28 {dimension_numbers = #tpu.dot_dimension_numbers<[1], [0], [0], [1], [0, 0, 1, 1], [], []>} : vector<16x16xf32>, vector<16x40xf32>, vector<16x40xf32> -> vector<16x40xf32>
    %70 = arith.addf %52, %69 : vector<16x40xf32>
    %c80 = arith.constant 80 : index
    %c0_29 = arith.constant 0 : index
    %71 = vector.load %arg4[%c80, %c0_29] : memref<768x64xf32, #tpu.memory_space<vmem>>, vector<40x40xf32>
    %c240 = arith.constant 240 : index
    %c0_30 = arith.constant 0 : index
    %72 = vector.load %arg4[%c240, %c0_30] : memref<768x64xf32, #tpu.memory_space<vmem>>, vector<40x40xf32>
    %cst_31 = arith.constant dense<0.000000e+00> : vector<16x40xf32>
    %73 = tpu.matmul %33, %71, %cst_31 {dimension_numbers = #tpu.dot_dimension_numbers<[1], [0], [0], [1], [0, 0, 1, 1], [], []>} : vector<16x40xf32>, vector<40x40xf32>, vector<16x40xf32> -> vector<16x40xf32>
    %cst_32 = arith.constant dense<0.000000e+00> : vector<16x16xf32>
    %74 = tpu.matmul %73, %33, %cst_32 {dimension_numbers = #tpu.dot_dimension_numbers<[1], [1], [0], [0], [0, 0, 1, 0], [], []>} : vector<16x40xf32>, vector<16x40xf32>, vector<16x16xf32> -> vector<16x16xf32>
    %75 = arith.addf %74, %7 : vector<16x16xf32>
    %cst_33 = arith.constant dense<0xFF800000> : vector<16xf32>
    %76 = vector.multi_reduction <maximumf>, %75, %cst_33 [1] : vector<16x16xf32> to vector<16xf32>
    %77 = vector.shape_cast %76 : vector<16xf32> to vector<16x1xf32>
    %78 = vector.broadcast %77 : vector<16x1xf32> to vector<16x16xf32>
    %79 = arith.subf %75, %78 : vector<16x16xf32>
    %80 = math.exp %79 : vector<16x16xf32>
    %cst_34 = arith.constant dense<0.000000e+00> : vector<16xf32>
    %81 = vector.multi_reduction <add>, %80, %cst_34 [1] : vector<16x16xf32> to vector<16xf32>
    %82 = vector.shape_cast %81 : vector<16xf32> to vector<16x1xf32>
    %83 = tpu.reciprocal %82 {approx = true} : vector<16x1xf32> -> vector<16x1xf32>
    %84 = vector.broadcast %83 : vector<16x1xf32> to vector<16x16xf32>
    %85 = arith.mulf %80, %84 : vector<16x16xf32>
    %cst_35 = arith.constant dense<0.000000e+00> : vector<16x40xf32>
    %86 = tpu.matmul %33, %72, %cst_35 {dimension_numbers = #tpu.dot_dimension_numbers<[1], [0], [0], [1], [0, 0, 1, 1], [], []>} : vector<16x40xf32>, vector<40x40xf32>, vector<16x40xf32> -> vector<16x40xf32>
    %cst_36 = arith.constant dense<0.000000e+00> : vector<16x40xf32>
    %87 = tpu.matmul %85, %86, %cst_36 {dimension_numbers = #tpu.dot_dimension_numbers<[1], [0], [0], [1], [0, 0, 1, 1], [], []>} : vector<16x16xf32>, vector<16x40xf32>, vector<16x40xf32> -> vector<16x40xf32>
    %88 = arith.addf %70, %87 : vector<16x40xf32>
    %c120 = arith.constant 120 : index
    %c0_37 = arith.constant 0 : index
    %89 = vector.load %arg4[%c120, %c0_37] : memref<768x64xf32, #tpu.memory_space<vmem>>, vector<40x40xf32>
    %c280 = arith.constant 280 : index
    %c0_38 = arith.constant 0 : index
    %90 = vector.load %arg4[%c280, %c0_38] : memref<768x64xf32, #tpu.memory_space<vmem>>, vector<40x40xf32>
    %cst_39 = arith.constant dense<0.000000e+00> : vector<16x40xf32>
    %91 = tpu.matmul %33, %89, %cst_39 {dimension_numbers = #tpu.dot_dimension_numbers<[1], [0], [0], [1], [0, 0, 1, 1], [], []>} : vector<16x40xf32>, vector<40x40xf32>, vector<16x40xf32> -> vector<16x40xf32>
    %cst_40 = arith.constant dense<0.000000e+00> : vector<16x16xf32>
    %92 = tpu.matmul %91, %33, %cst_40 {dimension_numbers = #tpu.dot_dimension_numbers<[1], [1], [0], [0], [0, 0, 1, 0], [], []>} : vector<16x40xf32>, vector<16x40xf32>, vector<16x16xf32> -> vector<16x16xf32>
    %93 = arith.addf %92, %7 : vector<16x16xf32>
    %cst_41 = arith.constant dense<0xFF800000> : vector<16xf32>
    %94 = vector.multi_reduction <maximumf>, %93, %cst_41 [1] : vector<16x16xf32> to vector<16xf32>
    %95 = vector.shape_cast %94 : vector<16xf32> to vector<16x1xf32>
    %96 = vector.broadcast %95 : vector<16x1xf32> to vector<16x16xf32>
    %97 = arith.subf %93, %96 : vector<16x16xf32>
    %98 = math.exp %97 : vector<16x16xf32>
    %cst_42 = arith.constant dense<0.000000e+00> : vector<16xf32>
    %99 = vector.multi_reduction <add>, %98, %cst_42 [1] : vector<16x16xf32> to vector<16xf32>
    %100 = vector.shape_cast %99 : vector<16xf32> to vector<16x1xf32>
    %101 = tpu.reciprocal %100 {approx = true} : vector<16x1xf32> -> vector<16x1xf32>
    %102 = vector.broadcast %101 : vector<16x1xf32> to vector<16x16xf32>
    %103 = arith.mulf %98, %102 : vector<16x16xf32>
    %cst_43 = arith.constant dense<0.000000e+00> : vector<16x40xf32>
    %104 = tpu.matmul %33, %90, %cst_43 {dimension_numbers = #tpu.dot_dimension_numbers<[1], [0], [0], [1], [0, 0, 1, 1], [], []>} : vector<16x40xf32>, vector<40x40xf32>, vector<16x40xf32> -> vector<16x40xf32>
    %cst_44 = arith.constant dense<0.000000e+00> : vector<16x40xf32>
    %105 = tpu.matmul %103, %104, %cst_44 {dimension_numbers = #tpu.dot_dimension_numbers<[1], [0], [0], [1], [0, 0, 1, 1], [], []>} : vector<16x16xf32>, vector<16x40xf32>, vector<16x40xf32> -> vector<16x40xf32>
    %106 = arith.addf %88, %105 : vector<16x40xf32>
    %c744 = arith.constant 744 : index
    %c0_45 = arith.constant 0 : index
    %107 = vector.load %arg4[%c744, %c0_45] : memref<768x64xf32, #tpu.memory_space<vmem>>, vector<1x40xf32>
    %108 = vector.broadcast %107 : vector<1x40xf32> to vector<16x40xf32>
    %109 = arith.addf %106, %108 : vector<16x40xf32>
    %110 = arith.addf %109, %5 : vector<16x40xf32>
    %cst_46 = arith.constant dense<0.000000e+00> : vector<16xf32>
    %111 = vector.multi_reduction <add>, %110, %cst_46 [1] : vector<16x40xf32> to vector<16xf32>
    %112 = vector.shape_cast %111 : vector<16xf32> to vector<16x1xf32>
    %cst_47 = arith.constant 3.125000e-02 : f32
    %113 = vector.broadcast %cst_47 : f32 to vector<16x1xf32>
    %114 = arith.mulf %112, %113 : vector<16x1xf32>
    %115 = arith.mulf %110, %110 : vector<16x40xf32>
    %cst_48 = arith.constant dense<0.000000e+00> : vector<16xf32>
    %116 = vector.multi_reduction <add>, %115, %cst_48 [1] : vector<16x40xf32> to vector<16xf32>
    %117 = vector.shape_cast %116 : vector<16xf32> to vector<16x1xf32>
    %cst_49 = arith.constant 3.125000e-02 : f32
    %118 = vector.broadcast %cst_49 : f32 to vector<16x1xf32>
    %119 = arith.mulf %117, %118 : vector<16x1xf32>
    %120 = arith.mulf %114, %114 : vector<16x1xf32>
    %121 = arith.subf %119, %120 : vector<16x1xf32>
    %122 = vector.broadcast %114 : vector<16x1xf32> to vector<16x40xf32>
    %123 = arith.subf %110, %122 : vector<16x40xf32>
    %cst_50 = arith.constant 9.99999997E-7 : f32
    %124 = vector.broadcast %cst_50 : f32 to vector<16x1xf32>
    %125 = arith.addf %121, %124 : vector<16x1xf32>
    %126 = math.rsqrt %125 : vector<16x1xf32>
    %127 = vector.broadcast %126 : vector<16x1xf32> to vector<16x40xf32>
    %128 = arith.mulf %123, %127 : vector<16x40xf32>
    %c32_i32_51 = arith.constant 32 : i32
    %129 = vector.broadcast %c32_i32_51 : i32 to vector<1x40xi32>
    %130 = arith.cmpi slt, %0, %129 : vector<1x40xi32>
    %131 = vector.shape_cast %130 : vector<1x40xi1> to vector<1x40xi1>
    %132 = vector.broadcast %131 : vector<1x40xi1> to vector<16x40xi1>
    %133 = vector.shape_cast %4 : vector<1x40xf32> to vector<1x40xf32>
    %134 = vector.broadcast %133 : vector<1x40xf32> to vector<16x40xf32>
    %135 = arith.select %132, %128, %134 : vector<16x40xi1>, vector<16x40xf32>
    %cst_52 = arith.constant 0.000000e+00 : f32
    %136 = vector.broadcast %cst_52 : f32 to vector<16x40xf32>
    %c320 = arith.constant 320 : index
    %c0_53 = arith.constant 0 : index
    %137 = vector.load %arg4[%c320, %c0_53] : memref<768x64xf32, #tpu.memory_space<vmem>>, vector<40x40xf32>
    %c480 = arith.constant 480 : index
    %c0_54 = arith.constant 0 : index
    %138 = vector.load %arg4[%c480, %c0_54] : memref<768x64xf32, #tpu.memory_space<vmem>>, vector<40x40xf32>
    %cst_55 = arith.constant dense<0.000000e+00> : vector<16x40xf32>
    %139 = tpu.matmul %135, %137, %cst_55 {dimension_numbers = #tpu.dot_dimension_numbers<[1], [0], [0], [1], [0, 0, 1, 1], [], []>} : vector<16x40xf32>, vector<40x40xf32>, vector<16x40xf32> -> vector<16x40xf32>
    %cst_56 = arith.constant dense<0.000000e+00> : vector<16x32xf32>
    %140 = tpu.matmul %139, %6, %cst_56 {dimension_numbers = #tpu.dot_dimension_numbers<[1], [1], [0], [0], [0, 0, 1, 0], [], []>} : vector<16x40xf32>, vector<32x40xf32>, vector<16x32xf32> -> vector<16x32xf32>
    %141 = arith.addf %140, %8 : vector<16x32xf32>
    %cst_57 = arith.constant dense<0xFF800000> : vector<16xf32>
    %142 = vector.multi_reduction <maximumf>, %141, %cst_57 [1] : vector<16x32xf32> to vector<16xf32>
    %143 = vector.shape_cast %142 : vector<16xf32> to vector<16x1xf32>
    %144 = vector.broadcast %143 : vector<16x1xf32> to vector<16x32xf32>
    %145 = arith.subf %141, %144 : vector<16x32xf32>
    %146 = math.exp %145 : vector<16x32xf32>
    %cst_58 = arith.constant dense<0.000000e+00> : vector<16xf32>
    %147 = vector.multi_reduction <add>, %146, %cst_58 [1] : vector<16x32xf32> to vector<16xf32>
    %148 = vector.shape_cast %147 : vector<16xf32> to vector<16x1xf32>
    %149 = tpu.reciprocal %148 {approx = true} : vector<16x1xf32> -> vector<16x1xf32>
    %150 = vector.broadcast %149 : vector<16x1xf32> to vector<16x32xf32>
    %151 = arith.mulf %146, %150 : vector<16x32xf32>
    %cst_59 = arith.constant dense<0.000000e+00> : vector<32x40xf32>
    %152 = tpu.matmul %6, %138, %cst_59 {dimension_numbers = #tpu.dot_dimension_numbers<[1], [0], [0], [1], [0, 0, 1, 1], [], []>} : vector<32x40xf32>, vector<40x40xf32>, vector<32x40xf32> -> vector<32x40xf32>
    %cst_60 = arith.constant dense<0.000000e+00> : vector<16x40xf32>
    %153 = tpu.matmul %151, %152, %cst_60 {dimension_numbers = #tpu.dot_dimension_numbers<[1], [0], [0], [1], [0, 0, 1, 1], [], []>} : vector<16x32xf32>, vector<32x40xf32>, vector<16x40xf32> -> vector<16x40xf32>
    %154 = arith.addf %136, %153 : vector<16x40xf32>
    %c360 = arith.constant 360 : index
    %c0_61 = arith.constant 0 : index
    %155 = vector.load %arg4[%c360, %c0_61] : memref<768x64xf32, #tpu.memory_space<vmem>>, vector<40x40xf32>
    %c520 = arith.constant 520 : index
    %c0_62 = arith.constant 0 : index
    %156 = vector.load %arg4[%c520, %c0_62] : memref<768x64xf32, #tpu.memory_space<vmem>>, vector<40x40xf32>
    %cst_63 = arith.constant dense<0.000000e+00> : vector<16x40xf32>
    %157 = tpu.matmul %135, %155, %cst_63 {dimension_numbers = #tpu.dot_dimension_numbers<[1], [0], [0], [1], [0, 0, 1, 1], [], []>} : vector<16x40xf32>, vector<40x40xf32>, vector<16x40xf32> -> vector<16x40xf32>
    %cst_64 = arith.constant dense<0.000000e+00> : vector<16x32xf32>
    %158 = tpu.matmul %157, %6, %cst_64 {dimension_numbers = #tpu.dot_dimension_numbers<[1], [1], [0], [0], [0, 0, 1, 0], [], []>} : vector<16x40xf32>, vector<32x40xf32>, vector<16x32xf32> -> vector<16x32xf32>
    %159 = arith.addf %158, %8 : vector<16x32xf32>
    %cst_65 = arith.constant dense<0xFF800000> : vector<16xf32>
    %160 = vector.multi_reduction <maximumf>, %159, %cst_65 [1] : vector<16x32xf32> to vector<16xf32>
    %161 = vector.shape_cast %160 : vector<16xf32> to vector<16x1xf32>
    %162 = vector.broadcast %161 : vector<16x1xf32> to vector<16x32xf32>
    %163 = arith.subf %159, %162 : vector<16x32xf32>
    %164 = math.exp %163 : vector<16x32xf32>
    %cst_66 = arith.constant dense<0.000000e+00> : vector<16xf32>
    %165 = vector.multi_reduction <add>, %164, %cst_66 [1] : vector<16x32xf32> to vector<16xf32>
    %166 = vector.shape_cast %165 : vector<16xf32> to vector<16x1xf32>
    %167 = tpu.reciprocal %166 {approx = true} : vector<16x1xf32> -> vector<16x1xf32>
    %168 = vector.broadcast %167 : vector<16x1xf32> to vector<16x32xf32>
    %169 = arith.mulf %164, %168 : vector<16x32xf32>
    %cst_67 = arith.constant dense<0.000000e+00> : vector<32x40xf32>
    %170 = tpu.matmul %6, %156, %cst_67 {dimension_numbers = #tpu.dot_dimension_numbers<[1], [0], [0], [1], [0, 0, 1, 1], [], []>} : vector<32x40xf32>, vector<40x40xf32>, vector<32x40xf32> -> vector<32x40xf32>
    %cst_68 = arith.constant dense<0.000000e+00> : vector<16x40xf32>
    %171 = tpu.matmul %169, %170, %cst_68 {dimension_numbers = #tpu.dot_dimension_numbers<[1], [0], [0], [1], [0, 0, 1, 1], [], []>} : vector<16x32xf32>, vector<32x40xf32>, vector<16x40xf32> -> vector<16x40xf32>
    %172 = arith.addf %154, %171 : vector<16x40xf32>
    %c400 = arith.constant 400 : index
    %c0_69 = arith.constant 0 : index
    %173 = vector.load %arg4[%c400, %c0_69] : memref<768x64xf32, #tpu.memory_space<vmem>>, vector<40x40xf32>
    %c560 = arith.constant 560 : index
    %c0_70 = arith.constant 0 : index
    %174 = vector.load %arg4[%c560, %c0_70] : memref<768x64xf32, #tpu.memory_space<vmem>>, vector<40x40xf32>
    %cst_71 = arith.constant dense<0.000000e+00> : vector<16x40xf32>
    %175 = tpu.matmul %135, %173, %cst_71 {dimension_numbers = #tpu.dot_dimension_numbers<[1], [0], [0], [1], [0, 0, 1, 1], [], []>} : vector<16x40xf32>, vector<40x40xf32>, vector<16x40xf32> -> vector<16x40xf32>
    %cst_72 = arith.constant dense<0.000000e+00> : vector<16x32xf32>
    %176 = tpu.matmul %175, %6, %cst_72 {dimension_numbers = #tpu.dot_dimension_numbers<[1], [1], [0], [0], [0, 0, 1, 0], [], []>} : vector<16x40xf32>, vector<32x40xf32>, vector<16x32xf32> -> vector<16x32xf32>
    %177 = arith.addf %176, %8 : vector<16x32xf32>
    %cst_73 = arith.constant dense<0xFF800000> : vector<16xf32>
    %178 = vector.multi_reduction <maximumf>, %177, %cst_73 [1] : vector<16x32xf32> to vector<16xf32>
    %179 = vector.shape_cast %178 : vector<16xf32> to vector<16x1xf32>
    %180 = vector.broadcast %179 : vector<16x1xf32> to vector<16x32xf32>
    %181 = arith.subf %177, %180 : vector<16x32xf32>
    %182 = math.exp %181 : vector<16x32xf32>
    %cst_74 = arith.constant dense<0.000000e+00> : vector<16xf32>
    %183 = vector.multi_reduction <add>, %182, %cst_74 [1] : vector<16x32xf32> to vector<16xf32>
    %184 = vector.shape_cast %183 : vector<16xf32> to vector<16x1xf32>
    %185 = tpu.reciprocal %184 {approx = true} : vector<16x1xf32> -> vector<16x1xf32>
    %186 = vector.broadcast %185 : vector<16x1xf32> to vector<16x32xf32>
    %187 = arith.mulf %182, %186 : vector<16x32xf32>
    %cst_75 = arith.constant dense<0.000000e+00> : vector<32x40xf32>
    %188 = tpu.matmul %6, %174, %cst_75 {dimension_numbers = #tpu.dot_dimension_numbers<[1], [0], [0], [1], [0, 0, 1, 1], [], []>} : vector<32x40xf32>, vector<40x40xf32>, vector<32x40xf32> -> vector<32x40xf32>
    %cst_76 = arith.constant dense<0.000000e+00> : vector<16x40xf32>
    %189 = tpu.matmul %187, %188, %cst_76 {dimension_numbers = #tpu.dot_dimension_numbers<[1], [0], [0], [1], [0, 0, 1, 1], [], []>} : vector<16x32xf32>, vector<32x40xf32>, vector<16x40xf32> -> vector<16x40xf32>
    %190 = arith.addf %172, %189 : vector<16x40xf32>
    %c440 = arith.constant 440 : index
    %c0_77 = arith.constant 0 : index
    %191 = vector.load %arg4[%c440, %c0_77] : memref<768x64xf32, #tpu.memory_space<vmem>>, vector<40x40xf32>
    %c600 = arith.constant 600 : index
    %c0_78 = arith.constant 0 : index
    %192 = vector.load %arg4[%c600, %c0_78] : memref<768x64xf32, #tpu.memory_space<vmem>>, vector<40x40xf32>
    %cst_79 = arith.constant dense<0.000000e+00> : vector<16x40xf32>
    %193 = tpu.matmul %135, %191, %cst_79 {dimension_numbers = #tpu.dot_dimension_numbers<[1], [0], [0], [1], [0, 0, 1, 1], [], []>} : vector<16x40xf32>, vector<40x40xf32>, vector<16x40xf32> -> vector<16x40xf32>
    %cst_80 = arith.constant dense<0.000000e+00> : vector<16x32xf32>
    %194 = tpu.matmul %193, %6, %cst_80 {dimension_numbers = #tpu.dot_dimension_numbers<[1], [1], [0], [0], [0, 0, 1, 0], [], []>} : vector<16x40xf32>, vector<32x40xf32>, vector<16x32xf32> -> vector<16x32xf32>
    %195 = arith.addf %194, %8 : vector<16x32xf32>
    %cst_81 = arith.constant dense<0xFF800000> : vector<16xf32>
    %196 = vector.multi_reduction <maximumf>, %195, %cst_81 [1] : vector<16x32xf32> to vector<16xf32>
    %197 = vector.shape_cast %196 : vector<16xf32> to vector<16x1xf32>
    %198 = vector.broadcast %197 : vector<16x1xf32> to vector<16x32xf32>
    %199 = arith.subf %195, %198 : vector<16x32xf32>
    %200 = math.exp %199 : vector<16x32xf32>
    %cst_82 = arith.constant dense<0.000000e+00> : vector<16xf32>
    %201 = vector.multi_reduction <add>, %200, %cst_82 [1] : vector<16x32xf32> to vector<16xf32>
    %202 = vector.shape_cast %201 : vector<16xf32> to vector<16x1xf32>
    %203 = tpu.reciprocal %202 {approx = true} : vector<16x1xf32> -> vector<16x1xf32>
    %204 = vector.broadcast %203 : vector<16x1xf32> to vector<16x32xf32>
    %205 = arith.mulf %200, %204 : vector<16x32xf32>
    %cst_83 = arith.constant dense<0.000000e+00> : vector<32x40xf32>
    %206 = tpu.matmul %6, %192, %cst_83 {dimension_numbers = #tpu.dot_dimension_numbers<[1], [0], [0], [1], [0, 0, 1, 1], [], []>} : vector<32x40xf32>, vector<40x40xf32>, vector<32x40xf32> -> vector<32x40xf32>
    %cst_84 = arith.constant dense<0.000000e+00> : vector<16x40xf32>
    %207 = tpu.matmul %205, %206, %cst_84 {dimension_numbers = #tpu.dot_dimension_numbers<[1], [0], [0], [1], [0, 0, 1, 1], [], []>} : vector<16x32xf32>, vector<32x40xf32>, vector<16x40xf32> -> vector<16x40xf32>
    %208 = arith.addf %190, %207 : vector<16x40xf32>
    %c752 = arith.constant 752 : index
    %c0_85 = arith.constant 0 : index
    %209 = vector.load %arg4[%c752, %c0_85] : memref<768x64xf32, #tpu.memory_space<vmem>>, vector<1x40xf32>
    %210 = vector.broadcast %209 : vector<1x40xf32> to vector<16x40xf32>
    %211 = arith.addf %208, %210 : vector<16x40xf32>
    %212 = arith.addf %211, %110 : vector<16x40xf32>
    %cst_86 = arith.constant dense<0.000000e+00> : vector<16xf32>
    %213 = vector.multi_reduction <add>, %212, %cst_86 [1] : vector<16x40xf32> to vector<16xf32>
    %214 = vector.shape_cast %213 : vector<16xf32> to vector<16x1xf32>
    %cst_87 = arith.constant 3.125000e-02 : f32
    %215 = vector.broadcast %cst_87 : f32 to vector<16x1xf32>
    %216 = arith.mulf %214, %215 : vector<16x1xf32>
    %217 = arith.mulf %212, %212 : vector<16x40xf32>
    %cst_88 = arith.constant dense<0.000000e+00> : vector<16xf32>
    %218 = vector.multi_reduction <add>, %217, %cst_88 [1] : vector<16x40xf32> to vector<16xf32>
    %219 = vector.shape_cast %218 : vector<16xf32> to vector<16x1xf32>
    %cst_89 = arith.constant 3.125000e-02 : f32
    %220 = vector.broadcast %cst_89 : f32 to vector<16x1xf32>
    %221 = arith.mulf %219, %220 : vector<16x1xf32>
    %222 = arith.mulf %216, %216 : vector<16x1xf32>
    %223 = arith.subf %221, %222 : vector<16x1xf32>
    %224 = vector.broadcast %216 : vector<16x1xf32> to vector<16x40xf32>
    %225 = arith.subf %212, %224 : vector<16x40xf32>
    %cst_90 = arith.constant 9.99999997E-7 : f32
    %226 = vector.broadcast %cst_90 : f32 to vector<16x1xf32>
    %227 = arith.addf %223, %226 : vector<16x1xf32>
    %228 = math.rsqrt %227 : vector<16x1xf32>
    %229 = vector.broadcast %228 : vector<16x1xf32> to vector<16x40xf32>
    %230 = arith.mulf %225, %229 : vector<16x40xf32>
    %c32_i32_91 = arith.constant 32 : i32
    %231 = vector.broadcast %c32_i32_91 : i32 to vector<1x40xi32>
    %232 = arith.cmpi slt, %0, %231 : vector<1x40xi32>
    %233 = vector.shape_cast %232 : vector<1x40xi1> to vector<1x40xi1>
    %234 = vector.broadcast %233 : vector<1x40xi1> to vector<16x40xi1>
    %235 = vector.shape_cast %4 : vector<1x40xf32> to vector<1x40xf32>
    %236 = vector.broadcast %235 : vector<1x40xf32> to vector<16x40xf32>
    %237 = arith.select %234, %230, %236 : vector<16x40xi1>, vector<16x40xf32>
    %c640 = arith.constant 640 : index
    %c0_92 = arith.constant 0 : index
    %238 = vector.load %arg4[%c640, %c0_92] : memref<768x64xf32, #tpu.memory_space<vmem>>, vector<40x64xf32>
    %cst_93 = arith.constant dense<0.000000e+00> : vector<16x64xf32>
    %239 = tpu.matmul %237, %238, %cst_93 {dimension_numbers = #tpu.dot_dimension_numbers<[1], [0], [0], [1], [0, 0, 1, 1], [], []>} : vector<16x40xf32>, vector<40x64xf32>, vector<16x64xf32> -> vector<16x64xf32>
    %cst_94 = arith.constant 0.000000e+00 : f32
    %240 = vector.broadcast %cst_94 : f32 to vector<16x64xf32>
    %241 = arith.maximumf %239, %240 : vector<16x64xf32>
    %c680 = arith.constant 680 : index
    %c0_95 = arith.constant 0 : index
    %242 = vector.load %arg4[%c680, %c0_95] : memref<768x64xf32, #tpu.memory_space<vmem>>, vector<64x40xf32>
    %cst_96 = arith.constant dense<0.000000e+00> : vector<16x40xf32>
    %243 = tpu.matmul %241, %242, %cst_96 {dimension_numbers = #tpu.dot_dimension_numbers<[1], [0], [0], [1], [0, 0, 1, 1], [], []>} : vector<16x64xf32>, vector<64x40xf32>, vector<16x40xf32> -> vector<16x40xf32>
    %c760 = arith.constant 760 : index
    %c0_97 = arith.constant 0 : index
    %244 = vector.load %arg4[%c760, %c0_97] : memref<768x64xf32, #tpu.memory_space<vmem>>, vector<1x40xf32>
    %245 = vector.broadcast %244 : vector<1x40xf32> to vector<16x40xf32>
    %246 = arith.addf %243, %245 : vector<16x40xf32>
    %247 = arith.addf %246, %212 : vector<16x40xf32>
    %248 = vector.extract_strided_slice %247 {offsets = [0, 0], sizes = [16, 32], strides = [1, 1]} : vector<16x40xf32> to vector<16x32xf32>
    %c0_98 = arith.constant 0 : index
    %c0_99 = arith.constant 0 : index
    %249 = vector.load %arg5[%c0_98, %c0_99] : memref<16x32xf32, #tpu.memory_space<vmem>>, vector<16x32xf32>
    tpu.vector_store %arg5[%c0_98, %c0_99], %248 {strides = array<i32>} : memref<16x32xf32, #tpu.memory_space<vmem>>, vector<16x32xf32>,
    %c0_100 = arith.constant 0 : index
    %c0_101 = arith.constant 0 : index
    %250 = vector.load %arg6[%c0_100, %c0_101] : memref<16x32xf32, #tpu.memory_space<vmem>>, vector<16x32xf32>
    tpu.vector_store %arg6[%c0_100, %c0_101], %151 {strides = array<i32>} : memref<16x32xf32, #tpu.memory_space<vmem>>, vector<16x32xf32>,
    return
  }
  func.func @transform_0(%arg0: i32) -> (i32, i32) {
    %c0_i32 = arith.constant 0 : i32
    %c0_i32_0 = arith.constant 0 : i32
    %c0_i32_1 = arith.constant 0 : i32
    return %c0_i32, %c0_i32_0 : i32, i32
  }
  func.func @transform_1(%arg0: i32) -> (i32, i32) {
    %c0_i32 = arith.constant 0 : i32
    %c0_i32_0 = arith.constant 0 : i32
    %c0_i32_1 = arith.constant 0 : i32
    return %c0_i32, %c0_i32_0 : i32, i32
  }
  func.func @transform_2(%arg0: i32) -> (i32, i32) {
    %c0_i32 = arith.constant 0 : i32
    %c0_i32_0 = arith.constant 0 : i32
    %c0_i32_1 = arith.constant 0 : i32
    return %c0_i32, %c0_i32_0 : i32, i32
  }
  func.func @transform_3(%arg0: i32) -> (i32, i32) {
    %c0_i32 = arith.constant 0 : i32
    %c0_i32_0 = arith.constant 0 : i32
    %c0_i32_1 = arith.constant 0 : i32
    return %c0_i32, %c0_i32_0 : i32, i32
  }
  func.func @transform_4(%arg0: i32) -> (i32, i32) {
    %c0_i32 = arith.constant 0 : i32
    %c0_i32_0 = arith.constant 0 : i32
    %c0_i32_1 = arith.constant 0 : i32
    return %c0_i32, %c0_i32_0 : i32, i32
  }
  func.func @transform_5(%arg0: i32) -> (i32, i32) {
    %c0_i32 = arith.constant 0 : i32
    %c0_i32_0 = arith.constant 0 : i32
    %c0_i32_1 = arith.constant 0 : i32
    return %c0_i32, %c0_i32_0 : i32, i32
  }
}

</mosaic_0001>

<llo_original>
// kernel: tpu_custom_call.1
$region0: #{tpu_custom_call.1}
  #allocation0 [shape = 'u32[]', space=smem, size = 0x4, offset = 0x4, fixed_abs, tag = 'smem constant byte address 0x4 - core index']
  #allocation1 [shape = 'u32[144,128]{1,0:T(1,128)}', space=vmem, size = 0x12000, scoped, tag = 'internal scratch']
  %s0 = inlined_call_operand.vmem [shape: f32[16,40], index: 0, kind: input, shape index: {}]
  %s1 = inlined_call_operand.vmem [shape: f32[32,40], index: 1, kind: input, shape index: {}]
  %s2 = inlined_call_operand.vmem [shape: f32[32,32], index: 2, kind: input, shape index: {}]
  %s3 = inlined_call_operand.vmem [shape: f32[768,64], index: 3, kind: input, shape index: {}]
  %s4 = inlined_call_operand.hbm [shape: f32[16,32], index: 4, kind: output, shape index: {0}]
  %s5 = inlined_call_operand.hbm [shape: f32[16,32], index: 5, kind: output, shape index: {1}]
  %6 = xla_tuple %s4, %s5
  %s7 = sld [smem:[#allocation0]]
  $region34: #{tpu_custom_call.1} parent=0
    _
  %s9 = ssub.s32 1, %s7
  %s10 = scalar_select 0, %s9, %s7
  $region1: #{tpu_custom_call.1} parent=0
    #allocation2 [shape = 'u8[8192]{0}', space=vmem, size = 0x2000, scoped, tag = 'output window, operand 0, single buffered']
    #allocation3 [shape = 's32[1]{0}', space=sflag, size = 0x4, scoped, tag = 'scoped memory for tpu_custom_call.1']
    #allocation4 [shape = 'u8[8192]{0}', space=vmem, size = 0x2000, scoped, tag = 'output window, operand 1, single buffered']
    #allocation5 [shape = 's32[1]{0}', space=sflag, size = 0x4, scoped, tag = 'scoped memory for tpu_custom_call.1']
    %11 = vsyncpa [#allocation3], 0
    %12 = vsyncpa [#allocation5], 0
    // Predicated region
    $region2: #{tpu_custom_call.1} parent=1 // pred_check
      _
    $region3: #{tpu_custom_call.1} parent=1 // pred_check_branch
      %14 = sbr.rel (0) target = $region5
    $region4: #{tpu_custom_call.1} parent=1 // pred_region
      _
    $region5: #{tpu_custom_call.1} parent=1 // pred_fallthru
      _
    // Predicated region
    $region6: #{tpu_custom_call.1} parent=1 // pred_check
      _
    $region7: #{tpu_custom_call.1} parent=1 // pred_check_branch
      %16 = sbr.rel (0) target = $region9
    $region8: #{tpu_custom_call.1} parent=1 // pred_region
      _
    $region9: #{tpu_custom_call.1} parent=1 // pred_fallthru
      _
    // Predicated region
    $region10: #{tpu_custom_call.1} parent=1 // pred_check
      _
    $region11: #{tpu_custom_call.1} parent=1 // pred_check_branch
      %18 = sbr.rel (0) target = $region13
    $region12: #{tpu_custom_call.1} parent=1 // pred_region
      _
    $region13: #{tpu_custom_call.1} parent=1 // pred_fallthru
      _
    // Predicated region
    $region14: #{tpu_custom_call.1} parent=1 // pred_check
      _
    $region15: #{tpu_custom_call.1} parent=1 // pred_check_branch
      %20 = sbr.rel (0) target = $region17
    $region16: #{tpu_custom_call.1} parent=1 // pred_region
      _
    $region17: #{tpu_custom_call.1} parent=1 // pred_fallthru
      _
    %v21 = vlaneseq
    %v22 = vand.u32 %v21, 127
    %vm23 = vcmp.eq.s32.totalorder %v22, 32
    %v24 = vsel %vm23, 1, 0
    %v25 = vcvt.s32.f32 %v24
    %v26 = vld [vmem:[%s0] sm:$0xff]
    %v27 = vld [vmem:[%s0 + $0x8] sm:$0xff]
    %v28 = vld [vmem:[%s1] sm:$0xff]
    %v29 = vld [vmem:[%s1 + $0x8] sm:$0xff]
    %v30 = vld [vmem:[%s1 + $0x10] sm:$0xff]
    %v31 = vld [vmem:[%s1 + $0x18] sm:$0xff]
    %v32 = vld [vmem:[%s2] sm:$0xff]
    %v33 = vld [vmem:[%s2 + $0x8] sm:$0xff]
    %v34 = vld [vmem:[%s2 + $0x10] sm:$0xff]
    %v35 = vld [vmem:[%s2 + $0x18] sm:$0xff]
    %vm36 = vcmask 326656
    %v37 = vsel %vm36, %v26, 0.0
    %38 = vadd.xlane.f32.xlu0 %v37
    %v39 = vpop.xlane.xlu0 %38
    %v40 = vsel %vm36, %v27, 0.0
    %41 = vadd.xlane.f32.xlu0 %v40
    %v42 = vpop.xlane.xlu0 %41
    %v43 = vmul.f32 %v39, 0.03125
    %v44 = vmul.f32 %v42, 0.03125
    %v45 = vmul.f32 %v26, %v26
    %v46 = vmul.f32 %v27, %v27
    %v47 = vsel %vm36, %v45, 0.0
    %48 = vadd.xlane.f32.xlu0 %v47
    %v49 = vpop.xlane.xlu0 %48
    %v50 = vsel %vm36, %v46, 0.0
    %51 = vadd.xlane.f32.xlu0 %v50
    %v52 = vpop.xlane.xlu0 %51
    %v53 = vmul.f32 %v49, 0.03125
    %v54 = vmul.f32 %v52, 0.03125
    %v55 = vmul.f32 %v43, %v43
    %v56 = vmul.f32 %v44, %v44
    %v57 = vsub.f32 %v53, %v55
    %v58 = vsub.f32 %v54, %v56
    %v59 = vsub.f32 %v26, %v43
    %v60 = vsub.f32 %v27, %v44
    %v61 = vadd.f32 %v57, 1e-06
    %v62 = vadd.f32 %v58, 1e-06
    %v63 = vrsqrt.pop %v61
    %v64 = vrsqrt.pop %v62
    %v65 = vmul.f32 %v59, %v63
    %v66 = vmul.f32 %v60, %v64
    %vm67 = vcmp.lt.s32.totalorder %v22, 32
    %v68 = vsel %vm67, 1, 0
    %vm69 = vcmp.eq.s32.totalorder %v68, 1
    %v70 = vsel %vm69, %v65, %v25
    %v71 = vsel %vm69, %v66, %v25
    %v72 = vld [vmem:[%s3] sm:$0xff]
    %v73 = vld [vmem:[%s3 + $0x8] sm:$0xff]
    %v74 = vld [vmem:[%s3 + $0x10] sm:$0xff]
    %v75 = vld [vmem:[%s3 + $0x18] sm:$0xff]
    %v76 = vld [vmem:[%s3 + $0x20] sm:$0xff]
    %v77 = vld [vmem:[%s3 + $0xa0] sm:$0xff]
    %v78 = vld [vmem:[%s3 + $0xa8] sm:$0xff]
    %v79 = vld [vmem:[%s3 + $0xb0] sm:$0xff]
    %v80 = vld [vmem:[%s3 + $0xb8] sm:$0xff]
    %v81 = vld [vmem:[%s3 + $0xc0] sm:$0xff]
    %v83 = vsel %vm36, %v70, 0
    %v86 = vsel %vm36, %v71, 0
    %88 = vmatprep.subr.mxu0 0.0
    %89 = vmatpush1.msra.mxu0 %v72
    %90 = vmatprep.subr.mxu0 0.0
    %91 = vmatpush1.msra.mxu0 %v73
    %92 = vmatprep.subr.mxu0 0.0
    %93 = vmatpush1.msra.mxu0 %v74
    %94 = vmatprep.subr.mxu0 0.0
    %95 = vmatpush1.msra.mxu0 %v75
    %96 = vmatprep.subr.mxu0 0.0
    %97 = vmatpush1.msra.mxu0 %v76
    %98 = vmatprep.subr.mxu0 0.0
    %99 = vmatpush1.msra.mxu0 0.0
    %100 = vmatprep.subr.mxu0 0.0
    %101 = vmatpush1.msra.mxu0 0.0
    %102 = vmatprep.subr.mxu0 0.0
    %103 = vmatpush1.msra.mxu0 0.0
    %104 = vmatprep.subr.mxu0 0.0
    %105 = vmatpush1.msra.mxu0 0.0
    %106 = vmatprep.subr.mxu0 0.0
    %107 = vmatpush1.msra.mxu0 0.0
    %108 = vmatprep.subr.mxu0 0.0
    %109 = vmatpush1.msra.mxu0 0.0
    %110 = vmatprep.subr.mxu0 0.0
    %111 = vmatpush1.msra.mxu0 0.0
    %112 = vmatprep.subr.mxu0 0.0
    %113 = vmatpush1.msra.mxu0 0.0
    %114 = vmatprep.subr.mxu0 0.0
    %115 = vmatpush1.msra.mxu0 0.0
    %116 = vmatprep.subr.mxu0 0.0
    %117 = vmatpush1.msra.mxu0 0.0
    %118 = vmatprep.subr.mxu0 0.0
    %119 = vmatpush1.msra.mxu0 0.0
    %120 = vmatprep.subr.mxu0 0.0
    %121 = vmatpush1.msra.mxu0 0.0
    %122 = vmatprep.subr.mxu0 0.0
    %123 = vmatpush1.msra.mxu0 0.0
    %124 = vmatprep.subr.mxu0 0.0
    %125 = vmatpush1.msra.mxu0 0.0
    %126 = vmatprep.subr.mxu0 0.0
    %127 = vmatpush1.msra.mxu0 0.0
    %128 = vmatprep.subr.mxu0 0.0
    %129 = vmatpush1.msra.mxu0 0.0
    %130 = vmatprep.subr.mxu0 0.0
    %131 = vmatpush1.msra.mxu0 0.0
    %132 = vmatprep.subr.mxu0 0.0
    %133 = vmatpush1.msra.mxu0 0.0
    %134 = vmatprep.subr.mxu0 0.0
    %135 = vmatpush1.msra.mxu0 0.0
    %136 = vmatprep.subr.mxu0 0.0
    %137 = vmatpush1.msra.mxu0 0.0
    %138 = vmatprep.subr.mxu0 0.0
    %139 = vmatpush1.msra.mxu0 0.0
    %140 = vmatprep.subr.mxu0 0.0
    %141 = vmatpush1.msra.mxu0 0.0
    %142 = vmatprep.subr.mxu0 0.0
    %143 = vmatpush1.msra.mxu0 0.0
    %144 = vmatprep.subr.mxu0 0.0
    %145 = vmatpush1.msra.mxu0 0.0
    %146 = vmatprep.subr.mxu0 0.0
    %147 = vmatpush1.msra.mxu0 0.0
    %148 = vmatprep.subr.mxu0 0.0
    %149 = vmatpush1.msra.mxu0 0.0
    %150 = vmatprep.subr.mxu0 0.0
    %151 = vmatpush1.msra.mxu0 0.0
    %152 = vmatprep.mubr.f32.mxu0 0.0
    %153 = vmatmul.mubr.f32.gmra.mrb[0].mxu0 %v83
    %v154 = vpop.f32.mrb[0].mxu0
    %v155 = vadd.f32 0.0, %v154
    %v156 = vpop.f32.mrb[0].mxu0
    %157 = vmatprep.mubr.f32.mxu0 0.0
    %158 = vmatmul.mubr.f32.gmra.mrb[0].mxu0 %v86
    %v159 = vpop.f32.mrb[0].mxu0
    %v160 = vadd.f32 0.0, %v159
    %v161 = vpop.f32.mrb[0].mxu0
    %162 = vdwg.mxu0
    %v164 = vsel %vm36, %v155, 0
    %v167 = vsel %vm36, %v160, 0
    %169 = vmatprep.subr.mxu0 0.0
    %170 = vmatpush1.xpose.msra.mxu0 %v83
    %171 = vmatprep.subr.mxu0 0.0
    %172 = vmatpush1.xpose.msra.mxu0 %v86
    %173 = vmatprep.subr.mxu0 0.0
    %174 = vmatpush1.xpose.msra.mxu0 0.0
    %175 = vmatprep.subr.mxu0 0.0
    %176 = vmatpush1.xpose.msra.mxu0 0.0
    %177 = vmatprep.subr.mxu0 0.0
    %178 = vmatpush1.xpose.msra.mxu0 0.0
    %179 = vmatprep.subr.mxu0 0.0
    %180 = vmatpush1.xpose.msra.mxu0 0.0
    %181 = vmatprep.subr.mxu0 0.0
    %182 = vmatpush1.xpose.msra.mxu0 0.0
    %183 = vmatprep.subr.mxu0 0.0
    %184 = vmatpush1.xpose.msra.mxu0 0.0
    %185 = vmatprep.subr.mxu0 0.0
    %186 = vmatpush1.xpose.msra.mxu0 0.0
    %187 = vmatprep.subr.mxu0 0.0
    %188 = vmatpush1.xpose.msra.mxu0 0.0
    %189 = vmatprep.subr.mxu0 0.0
    %190 = vmatpush1.xpose.msra.mxu0 0.0
    %191 = vmatprep.subr.mxu0 0.0
    %192 = vmatpush1.xpose.msra.mxu0 0.0
    %193 = vmatprep.subr.mxu0 0.0
    %194 = vmatpush1.xpose.msra.mxu0 0.0
    %195 = vmatprep.subr.mxu0 0.0
    %196 = vmatpush1.xpose.msra.mxu0 0.0
    %197 = vmatprep.subr.mxu0 0.0
    %198 = vmatpush1.xpose.msra.mxu0 0.0
    %199 = vmatprep.subr.mxu0 0.0
    %200 = vmatpush1.xpose.msra.mxu0 0.0
    %201 = vmatprep.subr.mxu0 0.0
    %202 = vmatpush1.xpose.msra.mxu0 0.0
    %203 = vmatprep.subr.mxu0 0.0
    %204 = vmatpush1.xpose.msra.mxu0 0.0
    %205 = vmatprep.subr.mxu0 0.0
    %206 = vmatpush1.xpose.msra.mxu0 0.0
    %207 = vmatprep.subr.mxu0 0.0
    %208 = vmatpush1.xpose.msra.mxu0 0.0
    %209 = vmatprep.subr.mxu0 0.0
    %210 = vmatpush1.xpose.msra.mxu0 0.0
    %211 = vmatprep.subr.mxu0 0.0
    %212 = vmatpush1.xpose.msra.mxu0 0.0
    %213 = vmatprep.subr.mxu0 0.0
    %214 = vmatpush1.xpose.msra.mxu0 0.0
    %215 = vmatprep.subr.mxu0 0.0
    %216 = vmatpush1.xpose.msra.mxu0 0.0
    %217 = vmatprep.subr.mxu0 0.0
    %218 = vmatpush1.xpose.msra.mxu0 0.0
    %219 = vmatprep.subr.mxu0 0.0
    %220 = vmatpush1.xpose.msra.mxu0 0.0
    %221 = vmatprep.subr.mxu0 0.0
    %222 = vmatpush1.xpose.msra.mxu0 0.0
    %223 = vmatprep.subr.mxu0 0.0
    %224 = vmatpush1.xpose.msra.mxu0 0.0
    %225 = vmatprep.subr.mxu0 0.0
    %226 = vmatpush1.xpose.msra.mxu0 0.0
    %227 = vmatprep.subr.mxu0 0.0
    %228 = vmatpush1.xpose.msra.mxu0 0.0
    %229 = vmatprep.subr.mxu0 0.0
    %230 = vmatpush1.xpose.msra.mxu0 0.0
    %231 = vmatprep.subr.mxu0 0.0
    %232 = vmatpush1.xpose.msra.mxu0 0.0
    %233 = vmatprep.mubr.f32.mxu0 0.0
    %234 = vmatmul.mubr.f32.gmra.mrb[0].mxu0 %v164
    %v235 = vpop.f32.mrb[0].mxu0
    %v236 = vadd.f32 %v32, %v235
    %v237 = vpop.f32.mrb[0].mxu0
    %238 = vmatprep.mubr.f32.mxu0 0.0
    %239 = vmatmul.mubr.f32.gmra.mrb[0].mxu0 %v167
    %v240 = vpop.f32.mrb[0].mxu0
    %v241 = vadd.f32 %v33, %v240
    %v242 = vpop.f32.mrb[0].mxu0
    %243 = vdwg.mxu0
    %vm244 = vcmask 130048
    %v245 = vsel %vm244, %v236, -inf
    %246 = vmax.xlane.f32.xlu0 %v245
    %v247 = vpop.xlane.xlu0 %246
    %v248 = vsel %vm244, %v241, -inf
    %249 = vmax.xlane.f32.xlu0 %v248
    %v250 = vpop.xlane.xlu0 %249
    %v251 = vsub.f32 %v236, %v247
    %v252 = vsub.f32 %v241, %v250
    %v253 = vmul.f32 %v251, 1.442695
    %v254 = vpow.pop %v253
    %v255 = vmul.f32 %v252, 1.442695
    %v256 = vpow.pop %v255
    %v257 = vsel %vm244, %v254, 0.0
    %258 = vadd.xlane.f32.xlu0 %v257
    %v259 = vpop.xlane.xlu0 %258
    %v260 = vsel %vm244, %v256, 0.0
    %261 = vadd.xlane.f32.xlu0 %v260
    %v262 = vpop.xlane.xlu0 %261
    %v263 = vrcp.pop %v259
    %v264 = vrcp.pop %v262
    %v265 = vmul.f32 %v254, %v263
    %v266 = vmul.f32 %v256, %v264
    %267 = vmatprep.subr.mxu0 0.0
    %268 = vmatpush1.msra.mxu0 %v77
    %269 = vmatprep.subr.mxu0 0.0
    %270 = vmatpush1.msra.mxu0 %v78
    %271 = vmatprep.subr.mxu0 0.0
    %272 = vmatpush1.msra.mxu0 %v79
    %273 = vmatprep.subr.mxu0 0.0
    %274 = vmatpush1.msra.mxu0 %v80
    %275 = vmatprep.subr.mxu0 0.0
    %276 = vmatpush1.msra.mxu0 %v81
    %277 = vmatprep.subr.mxu0 0.0
    %278 = vmatpush1.msra.mxu0 0.0
    %279 = vmatprep.subr.mxu0 0.0
    %280 = vmatpush1.msra.mxu0 0.0
    %281 = vmatprep.subr.mxu0 0.0
    %282 = vmatpush1.msra.mxu0 0.0
    %283 = vmatprep.subr.mxu0 0.0
    %284 = vmatpush1.msra.mxu0 0.0
    %285 = vmatprep.subr.mxu0 0.0
    %286 = vmatpush1.msra.mxu0 0.0
    %287 = vmatprep.subr.mxu0 0.0
    %288 = vmatpush1.msra.mxu0 0.0
    %289 = vmatprep.subr.mxu0 0.0
    %290 = vmatpush1.msra.mxu0 0.0
    %291 = vmatprep.subr.mxu0 0.0
    %292 = vmatpush1.msra.mxu0 0.0
    %293 = vmatprep.subr.mxu0 0.0
    %294 = vmatpush1.msra.mxu0 0.0
    %295 = vmatprep.subr.mxu0 0.0
    %296 = vmatpush1.msra.mxu0 0.0
    %297 = vmatprep.subr.mxu0 0.0
    %298 = vmatpush1.msra.mxu0 0.0
    %299 = vmatprep.subr.mxu0 0.0
    %300 = vmatpush1.msra.mxu0 0.0
    %301 = vmatprep.subr.mxu0 0.0
    %302 = vmatpush1.msra.mxu0 0.0
    %303 = vmatprep.subr.mxu0 0.0
    %304 = vmatpush1.msra.mxu0 0.0
    %305 = vmatprep.subr.mxu0 0.0
    %306 = vmatpush1.msra.mxu0 0.0
    %307 = vmatprep.subr.mxu0 0.0
    %308 = vmatpush1.msra.mxu0 0.0
    %309 = vmatprep.subr.mxu0 0.0
    %310 = vmatpush1.msra.mxu0 0.0
    %311 = vmatprep.subr.mxu0 0.0
    %312 = vmatpush1.msra.mxu0 0.0
    %313 = vmatprep.subr.mxu0 0.0
    %314 = vmatpush1.msra.mxu0 0.0
    %315 = vmatprep.subr.mxu0 0.0
    %316 = vmatpush1.msra.mxu0 0.0
    %317 = vmatprep.subr.mxu0 0.0
    %318 = vmatpush1.msra.mxu0 0.0
    %319 = vmatprep.subr.mxu0 0.0
    %320 = vmatpush1.msra.mxu0 0.0
    %321 = vmatprep.subr.mxu0 0.0
    %322 = vmatpush1.msra.mxu0 0.0
    %323 = vmatprep.subr.mxu0 0.0
    %324 = vmatpush1.msra.mxu0 0.0
    %325 = vmatprep.subr.mxu0 0.0
    %326 = vmatpush1.msra.mxu0 0.0
    %327 = vmatprep.subr.mxu0 0.0
    %328 = vmatpush1.msra.mxu0 0.0
    %329 = vmatprep.subr.mxu0 0.0
    %330 = vmatpush1.msra.mxu0 0.0
    %331 = vmatprep.mubr.f32.mxu0 0.0
    %332 = vmatmul.mubr.f32.gmra.mrb[0].mxu0 %v83
    %v333 = vpop.f32.mrb[0].mxu0
    %v334 = vadd.f32 0.0, %v333
    %v335 = vpop.f32.mrb[0].mxu0
    %336 = vmatprep.mubr.f32.mxu0 0.0
    %337 = vmatmul.mubr.f32.gmra.mrb[0].mxu0 %v86
    %v338 = vpop.f32.mrb[0].mxu0
    %v339 = vadd.f32 0.0, %v338
    %v340 = vpop.f32.mrb[0].mxu0
    %341 = vdwg.mxu0
    %v342 = vld [vmem:[%s3 + $0x28] sm:$0xff]
    %v343 = vld [vmem:[%s3 + $0x30] sm:$0xff]
    %v344 = vld [vmem:[%s3 + $0x38] sm:$0xff]
    %v345 = vld [vmem:[%s3 + $0x40] sm:$0xff]
    %v346 = vld [vmem:[%s3 + $0x48] sm:$0xff]
    %v347 = vld [vmem:[%s3 + $0xc8] sm:$0xff]
    %v348 = vld [vmem:[%s3 + $0xd0] sm:$0xff]
    %v349 = vld [vmem:[%s3 + $0xd8] sm:$0xff]
    %v350 = vld [vmem:[%s3 + $0xe0] sm:$0xff]
    %v351 = vld [vmem:[%s3 + $0xe8] sm:$0xff]
    %352 = vmatprep.subr.mxu0 0.0
    %353 = vmatpush1.msra.mxu0 %v342
    %354 = vmatprep.subr.mxu0 0.0
    %355 = vmatpush1.msra.mxu0 %v343
    %356 = vmatprep.subr.mxu0 0.0
    %357 = vmatpush1.msra.mxu0 %v344
    %358 = vmatprep.subr.mxu0 0.0
    %359 = vmatpush1.msra.mxu0 %v345
    %360 = vmatprep.subr.mxu0 0.0
    %361 = vmatpush1.msra.mxu0 %v346
    %362 = vmatprep.subr.mxu0 0.0
    %363 = vmatpush1.msra.mxu0 0.0
    %364 = vmatprep.subr.mxu0 0.0
    %365 = vmatpush1.msra.mxu0 0.0
    %366 = vmatprep.subr.mxu0 0.0
    %367 = vmatpush1.msra.mxu0 0.0
    %368 = vmatprep.subr.mxu0 0.0
    %369 = vmatpush1.msra.mxu0 0.0
    %370 = vmatprep.subr.mxu0 0.0
    %371 = vmatpush1.msra.mxu0 0.0
    %372 = vmatprep.subr.mxu0 0.0
    %373 = vmatpush1.msra.mxu0 0.0
    %374 = vmatprep.subr.mxu0 0.0
    %375 = vmatpush1.msra.mxu0 0.0
    %376 = vmatprep.subr.mxu0 0.0
    %377 = vmatpush1.msra.mxu0 0.0
    %378 = vmatprep.subr.mxu0 0.0
    %379 = vmatpush1.msra.mxu0 0.0
    %380 = vmatprep.subr.mxu0 0.0
    %381 = vmatpush1.msra.mxu0 0.0
    %382 = vmatprep.subr.mxu0 0.0
    %383 = vmatpush1.msra.mxu0 0.0
    %384 = vmatprep.subr.mxu0 0.0
    %385 = vmatpush1.msra.mxu0 0.0
    %386 = vmatprep.subr.mxu0 0.0
    %387 = vmatpush1.msra.mxu0 0.0
    %388 = vmatprep.subr.mxu0 0.0
    %389 = vmatpush1.msra.mxu0 0.0
    %390 = vmatprep.subr.mxu0 0.0
    %391 = vmatpush1.msra.mxu0 0.0
    %392 = vmatprep.subr.mxu0 0.0
    %393 = vmatpush1.msra.mxu0 0.0
    %394 = vmatprep.subr.mxu0 0.0
    %395 = vmatpush1.msra.mxu0 0.0
    %396 = vmatprep.subr.mxu0 0.0
    %397 = vmatpush1.msra.mxu0 0.0
    %398 = vmatprep.subr.mxu0 0.0
    %399 = vmatpush1.msra.mxu0 0.0
    %400 = vmatprep.subr.mxu0 0.0
    %401 = vmatpush1.msra.mxu0 0.0
    %402 = vmatprep.subr.mxu0 0.0
    %403 = vmatpush1.msra.mxu0 0.0
    %404 = vmatprep.subr.mxu0 0.0
    %405 = vmatpush1.msra.mxu0 0.0
    %406 = vmatprep.subr.mxu0 0.0
    %407 = vmatpush1.msra.mxu0 0.0
    %408 = vmatprep.subr.mxu0 0.0
    %409 = vmatpush1.msra.mxu0 0.0
    %410 = vmatprep.subr.mxu0 0.0
    %411 = vmatpush1.msra.mxu0 0.0
    %412 = vmatprep.subr.mxu0 0.0
    %413 = vmatpush1.msra.mxu0 0.0
    %414 = vmatprep.subr.mxu0 0.0
    %415 = vmatpush1.msra.mxu0 0.0
    %416 = vmatprep.mubr.f32.mxu0 0.0
    %417 = vmatmul.mubr.f32.gmra.mrb[0].mxu0 %v83
    %v418 = vpop.f32.mrb[0].mxu0
    %v419 = vadd.f32 0.0, %v418
    %v420 = vpop.f32.mrb[0].mxu0
    %421 = vmatprep.mubr.f32.mxu0 0.0
    %422 = vmatmul.mubr.f32.gmra.mrb[0].mxu0 %v86
    %v423 = vpop.f32.mrb[0].mxu0
    %v424 = vadd.f32 0.0, %v423
    %v425 = vpop.f32.mrb[0].mxu0
    %426 = vdwg.mxu0
    %v428 = vsel %vm36, %v419, 0
    %v431 = vsel %vm36, %v424, 0
    %433 = vmatprep.subr.mxu0 0.0
    %434 = vmatpush1.xpose.msra.mxu0 %v83
    %435 = vmatprep.subr.mxu0 0.0
    %436 = vmatpush1.xpose.msra.mxu0 %v86
    %437 = vmatprep.subr.mxu0 0.0
    %438 = vmatpush1.xpose.msra.mxu0 0.0
    %439 = vmatprep.subr.mxu0 0.0
    %440 = vmatpush1.xpose.msra.mxu0 0.0
    %441 = vmatprep.subr.mxu0 0.0
    %442 = vmatpush1.xpose.msra.mxu0 0.0
    %443 = vmatprep.subr.mxu0 0.0
    %444 = vmatpush1.xpose.msra.mxu0 0.0
    %445 = vmatprep.subr.mxu0 0.0
    %446 = vmatpush1.xpose.msra.mxu0 0.0
    %447 = vmatprep.subr.mxu0 0.0
    %448 = vmatpush1.xpose.msra.mxu0 0.0
    %449 = vmatprep.subr.mxu0 0.0
    %450 = vmatpush1.xpose.msra.mxu0 0.0
    %451 = vmatprep.subr.mxu0 0.0
    %452 = vmatpush1.xpose.msra.mxu0 0.0
    %453 = vmatprep.subr.mxu0 0.0
    %454 = vmatpush1.xpose.msra.mxu0 0.0
    %455 = vmatprep.subr.mxu0 0.0
    %456 = vmatpush1.xpose.msra.mxu0 0.0
    %457 = vmatprep.subr.mxu0 0.0
    %458 = vmatpush1.xpose.msra.mxu0 0.0
    %459 = vmatprep.subr.mxu0 0.0
    %460 = vmatpush1.xpose.msra.mxu0 0.0
    %461 = vmatprep.subr.mxu0 0.0
    %462 = vmatpush1.xpose.msra.mxu0 0.0
    %463 = vmatprep.subr.mxu0 0.0
    %464 = vmatpush1.xpose.msra.mxu0 0.0
    %465 = vmatprep.subr.mxu0 0.0
    %466 = vmatpush1.xpose.msra.mxu0 0.0
    %467 = vmatprep.subr.mxu0 0.0
    %468 = vmatpush1.xpose.msra.mxu0 0.0
    %469 = vmatprep.subr.mxu0 0.0
    %470 = vmatpush1.xpose.msra.mxu0 0.0
    %471 = vmatprep.subr.mxu0 0.0
    %472 = vmatpush1.xpose.msra.mxu0 0.0
    %473 = vmatprep.subr.mxu0 0.0
    %474 = vmatpush1.xpose.msra.mxu0 0.0
    %475 = vmatprep.subr.mxu0 0.0
    %476 = vmatpush1.xpose.msra.mxu0 0.0
    %477 = vmatprep.subr.mxu0 0.0
    %478 = vmatpush1.xpose.msra.mxu0 0.0
    %479 = vmatprep.subr.mxu0 0.0
    %480 = vmatpush1.xpose.msra.mxu0 0.0
    %481 = vmatprep.subr.mxu0 0.0
    %482 = vmatpush1.xpose.msra.mxu0 0.0
    %483 = vmatprep.subr.mxu0 0.0
    %484 = vmatpush1.xpose.msra.mxu0 0.0
    %485 = vmatprep.subr.mxu0 0.0
    %486 = vmatpush1.xpose.msra.mxu0 0.0
    %487 = vmatprep.subr.mxu0 0.0
    %488 = vmatpush1.xpose.msra.mxu0 0.0
    %489 = vmatprep.subr.mxu0 0.0
    %490 = vmatpush1.xpose.msra.mxu0 0.0
    %491 = vmatprep.subr.mxu0 0.0
    %492 = vmatpush1.xpose.msra.mxu0 0.0
    %493 = vmatprep.subr.mxu0 0.0
    %494 = vmatpush1.xpose.msra.mxu0 0.0
    %495 = vmatprep.subr.mxu0 0.0
    %496 = vmatpush1.xpose.msra.mxu0 0.0
    %497 = vmatprep.mubr.f32.mxu0 0.0
    %498 = vmatmul.mubr.f32.gmra.mrb[0].mxu0 %v428
    %v499 = vpop.f32.mrb[0].mxu0
    %v500 = vadd.f32 %v32, %v499
    %v501 = vpop.f32.mrb[0].mxu0
    %502 = vmatprep.mubr.f32.mxu0 0.0
    %503 = vmatmul.mubr.f32.gmra.mrb[0].mxu0 %v431
    %v504 = vpop.f32.mrb[0].mxu0
    %v505 = vadd.f32 %v33, %v504
    %v506 = vpop.f32.mrb[0].mxu0
    %507 = vdwg.mxu0
    %v508 = vsel %vm244, %v500, -inf
    %509 = vmax.xlane.f32.xlu0 %v508
    %v510 = vpop.xlane.xlu0 %509
    %v511 = vsel %vm244, %v505, -inf
    %512 = vmax.xlane.f32.xlu0 %v511
    %v513 = vpop.xlane.xlu0 %512
    %v514 = vsub.f32 %v500, %v510
    %v515 = vsub.f32 %v505, %v513
    %v516 = vmul.f32 %v514, 1.442695
    %v517 = vpow.pop %v516
    %v518 = vmul.f32 %v515, 1.442695
    %v519 = vpow.pop %v518
    %v520 = vsel %vm244, %v517, 0.0
    %521 = vadd.xlane.f32.xlu0 %v520
    %v522 = vpop.xlane.xlu0 %521
    %v523 = vsel %vm244, %v519, 0.0
    %524 = vadd.xlane.f32.xlu0 %v523
    %v525 = vpop.xlane.xlu0 %524
    %v526 = vrcp.pop %v522
    %v527 = vrcp.pop %v525
    %v528 = vmul.f32 %v517, %v526
    %v529 = vmul.f32 %v519, %v527
    %530 = vmatprep.subr.mxu0 0.0
    %531 = vmatpush1.msra.mxu0 %v347
    %532 = vmatprep.subr.mxu0 0.0
    %533 = vmatpush1.msra.mxu0 %v348
    %534 = vmatprep.subr.mxu0 0.0
    %535 = vmatpush1.msra.mxu0 %v349
    %536 = vmatprep.subr.mxu0 0.0
    %537 = vmatpush1.msra.mxu0 %v350
    %538 = vmatprep.subr.mxu0 0.0
    %539 = vmatpush1.msra.mxu0 %v351
    %540 = vmatprep.subr.mxu0 0.0
    %541 = vmatpush1.msra.mxu0 0.0
    %542 = vmatprep.subr.mxu0 0.0
    %543 = vmatpush1.msra.mxu0 0.0
    %544 = vmatprep.subr.mxu0 0.0
    %545 = vmatpush1.msra.mxu0 0.0
    %546 = vmatprep.subr.mxu0 0.0
    %547 = vmatpush1.msra.mxu0 0.0
    %548 = vmatprep.subr.mxu0 0.0
    %549 = vmatpush1.msra.mxu0 0.0
    %550 = vmatprep.subr.mxu0 0.0
    %551 = vmatpush1.msra.mxu0 0.0
    %552 = vmatprep.subr.mxu0 0.0
    %553 = vmatpush1.msra.mxu0 0.0
    %554 = vmatprep.subr.mxu0 0.0
    %555 = vmatpush1.msra.mxu0 0.0
    %556 = vmatprep.subr.mxu0 0.0
    %557 = vmatpush1.msra.mxu0 0.0
    %558 = vmatprep.subr.mxu0 0.0
    %559 = vmatpush1.msra.mxu0 0.0
    %560 = vmatprep.subr.mxu0 0.0
    %561 = vmatpush1.msra.mxu0 0.0
    %562 = vmatprep.subr.mxu0 0.0
    %563 = vmatpush1.msra.mxu0 0.0
    %564 = vmatprep.subr.mxu0 0.0
    %565 = vmatpush1.msra.mxu0 0.0
    %566 = vmatprep.subr.mxu0 0.0
    %567 = vmatpush1.msra.mxu0 0.0
    %568 = vmatprep.subr.mxu0 0.0
    %569 = vmatpush1.msra.mxu0 0.0
    %570 = vmatprep.subr.mxu0 0.0
    %571 = vmatpush1.msra.mxu0 0.0
    %572 = vmatprep.subr.mxu0 0.0
    %573 = vmatpush1.msra.mxu0 0.0
    %574 = vmatprep.subr.mxu0 0.0
    %575 = vmatpush1.msra.mxu0 0.0
    %576 = vmatprep.subr.mxu0 0.0
    %577 = vmatpush1.msra.mxu0 0.0
    %578 = vmatprep.subr.mxu0 0.0
    %579 = vmatpush1.msra.mxu0 0.0
    %580 = vmatprep.subr.mxu0 0.0
    %581 = vmatpush1.msra.mxu0 0.0
    %582 = vmatprep.subr.mxu0 0.0
    %583 = vmatpush1.msra.mxu0 0.0
    %584 = vmatprep.subr.mxu0 0.0
    %585 = vmatpush1.msra.mxu0 0.0
    %586 = vmatprep.subr.mxu0 0.0
    %587 = vmatpush1.msra.mxu0 0.0
    %588 = vmatprep.subr.mxu0 0.0
    %589 = vmatpush1.msra.mxu0 0.0
    %590 = vmatprep.subr.mxu0 0.0
    %591 = vmatpush1.msra.mxu0 0.0
    %592 = vmatprep.subr.mxu0 0.0
    %593 = vmatpush1.msra.mxu0 0.0
    %594 = vmatprep.mubr.f32.mxu0 0.0
    %595 = vmatmul.mubr.f32.gmra.mrb[0].mxu0 %v83
    %v596 = vpop.f32.mrb[0].mxu0
    %v597 = vadd.f32 0.0, %v596
    %v598 = vpop.f32.mrb[0].mxu0
    %599 = vmatprep.mubr.f32.mxu0 0.0
    %600 = vmatmul.mubr.f32.gmra.mrb[0].mxu0 %v86
    %v601 = vpop.f32.mrb[0].mxu0
    %v602 = vadd.f32 0.0, %v601
    %v603 = vpop.f32.mrb[0].mxu0
    %604 = vdwg.mxu0
    %v606 = vsel %vm244, %v528, 0
    %v609 = vsel %vm244, %v529, 0
    %611 = vmatprep.subr.mxu0 0.0
    %612 = vmatpush1.msra.mxu0 %v597
    %613 = vmatprep.subr.mxu0 0.0
    %614 = vmatpush1.msra.mxu0 %v602
    %615 = vmatprep.subr.mxu0 0.0
    %616 = vmatpush1.msra.mxu0 0.0
    %617 = vmatprep.subr.mxu0 0.0
    %618 = vmatpush1.msra.mxu0 0.0
    %619 = vmatprep.subr.mxu0 0.0
    %620 = vmatpush1.msra.mxu0 0.0
    %621 = vmatprep.subr.mxu0 0.0
    %622 = vmatpush1.msra.mxu0 0.0
    %623 = vmatprep.subr.mxu0 0.0
    %624 = vmatpush1.msra.mxu0 0.0
    %625 = vmatprep.subr.mxu0 0.0
    %626 = vmatpush1.msra.mxu0 0.0
    %627 = vmatprep.subr.mxu0 0.0
    %628 = vmatpush1.msra.mxu0 0.0
    %629 = vmatprep.subr.mxu0 0.0
    %630 = vmatpush1.msra.mxu0 0.0
    %631 = vmatprep.subr.mxu0 0.0
    %632 = vmatpush1.msra.mxu0 0.0
    %633 = vmatprep.subr.mxu0 0.0
    %634 = vmatpush1.msra.mxu0 0.0
    %635 = vmatprep.subr.mxu0 0.0
    %636 = vmatpush1.msra.mxu0 0.0
    %637 = vmatprep.subr.mxu0 0.0
    %638 = vmatpush1.msra.mxu0 0.0
    %639 = vmatprep.subr.mxu0 0.0
    %640 = vmatpush1.msra.mxu0 0.0
    %641 = vmatprep.subr.mxu0 0.0
    %642 = vmatpush1.msra.mxu0 0.0
    %643 = vmatprep.subr.mxu0 0.0
    %644 = vmatpush1.msra.mxu0 0.0
    %645 = vmatprep.subr.mxu0 0.0
    %646 = vmatpush1.msra.mxu0 0.0
    %647 = vmatprep.subr.mxu0 0.0
    %648 = vmatpush1.msra.mxu0 0.0
    %649 = vmatprep.subr.mxu0 0.0
    %650 = vmatpush1.msra.mxu0 0.0
    %651 = vmatprep.subr.mxu0 0.0
    %652 = vmatpush1.msra.mxu0 0.0
    %653 = vmatprep.subr.mxu0 0.0
    %654 = vmatpush1.msra.mxu0 0.0
    %655 = vmatprep.subr.mxu0 0.0
    %656 = vmatpush1.msra.mxu0 0.0
    %657 = vmatprep.subr.mxu0 0.0
    %658 = vmatpush1.msra.mxu0 0.0
    %659 = vmatprep.subr.mxu0 0.0
    %660 = vmatpush1.msra.mxu0 0.0
    %661 = vmatprep.subr.mxu0 0.0
    %662 = vmatpush1.msra.mxu0 0.0
    %663 = vmatprep.subr.mxu0 0.0
    %664 = vmatpush1.msra.mxu0 0.0
    %665 = vmatprep.subr.mxu0 0.0
    %666 = vmatpush1.msra.mxu0 0.0
    %667 = vmatprep.subr.mxu0 0.0
    %668 = vmatpush1.msra.mxu0 0.0
    %669 = vmatprep.subr.mxu0 0.0
    %670 = vmatpush1.msra.mxu0 0.0
    %671 = vmatprep.subr.mxu0 0.0
    %672 = vmatpush1.msra.mxu0 0.0
    %673 = vmatprep.subr.mxu0 0.0
    %674 = vmatpush1.msra.mxu0 0.0
    %675 = vmatprep.mubr.f32.mxu0 0.0
    %676 = vmatmul.mubr.f32.gmra.mrb[0].mxu0 %v606
    %v677 = vpop.f32.mrb[0].mxu0
    %v678 = vadd.f32 0.0, %v677
    %v679 = vpop.f32.mrb[0].mxu0
    %680 = vmatprep.mubr.f32.mxu0 0.0
    %681 = vmatmul.mubr.f32.gmra.mrb[0].mxu0 %v609
    %v682 = vpop.f32.mrb[0].mxu0
    %v683 = vadd.f32 0.0, %v682
    %v684 = vpop.f32.mrb[0].mxu0
    %685 = vdwg.mxu0
    %v687 = vsel %vm244, %v265, 0
    %v690 = vsel %vm244, %v266, 0
    %692 = vmatprep.subr.mxu0 0.0
    %693 = vmatpush1.msra.mxu0 %v334
    %694 = vmatprep.subr.mxu0 0.0
    %695 = vmatpush1.msra.mxu0 %v339
    %696 = vmatprep.subr.mxu0 0.0
    %697 = vmatpush1.msra.mxu0 0.0
    %698 = vmatprep.subr.mxu0 0.0
    %699 = vmatpush1.msra.mxu0 0.0
    %700 = vmatprep.subr.mxu0 0.0
    %701 = vmatpush1.msra.mxu0 0.0
    %702 = vmatprep.subr.mxu0 0.0
    %703 = vmatpush1.msra.mxu0 0.0
    %704 = vmatprep.subr.mxu0 0.0
    %705 = vmatpush1.msra.mxu0 0.0
    %706 = vmatprep.subr.mxu0 0.0
    %707 = vmatpush1.msra.mxu0 0.0
    %708 = vmatprep.subr.mxu0 0.0
    %709 = vmatpush1.msra.mxu0 0.0
    %710 = vmatprep.subr.mxu0 0.0
    %711 = vmatpush1.msra.mxu0 0.0
    %712 = vmatprep.subr.mxu0 0.0
    %713 = vmatpush1.msra.mxu0 0.0
    %714 = vmatprep.subr.mxu0 0.0
    %715 = vmatpush1.msra.mxu0 0.0
    %716 = vmatprep.subr.mxu0 0.0
    %717 = vmatpush1.msra.mxu0 0.0
    %718 = vmatprep.subr.mxu0 0.0
    %719 = vmatpush1.msra.mxu0 0.0
    %720 = vmatprep.subr.mxu0 0.0
    %721 = vmatpush1.msra.mxu0 0.0
    %722 = vmatprep.subr.mxu0 0.0
    %723 = vmatpush1.msra.mxu0 0.0
    %724 = vmatprep.subr.mxu0 0.0
    %725 = vmatpush1.msra.mxu0 0.0
    %726 = vmatprep.subr.mxu0 0.0
    %727 = vmatpush1.msra.mxu0 0.0
    %728 = vmatprep.subr.mxu0 0.0
    %729 = vmatpush1.msra.mxu0 0.0
    %730 = vmatprep.subr.mxu0 0.0
    %731 = vmatpush1.msra.mxu0 0.0
    %732 = vmatprep.subr.mxu0 0.0
    %733 = vmatpush1.msra.mxu0 0.0
    %734 = vmatprep.subr.mxu0 0.0
    %735 = vmatpush1.msra.mxu0 0.0
    %736 = vmatprep.subr.mxu0 0.0
    %737 = vmatpush1.msra.mxu0 0.0
    %738 = vmatprep.subr.mxu0 0.0
    %739 = vmatpush1.msra.mxu0 0.0
    %740 = vmatprep.subr.mxu0 0.0
    %741 = vmatpush1.msra.mxu0 0.0
    %742 = vmatprep.subr.mxu0 0.0
    %743 = vmatpush1.msra.mxu0 0.0
    %744 = vmatprep.subr.mxu0 0.0
    %745 = vmatpush1.msra.mxu0 0.0
    %746 = vmatprep.subr.mxu0 0.0
    %747 = vmatpush1.msra.mxu0 0.0
    %748 = vmatprep.subr.mxu0 0.0
    %749 = vmatpush1.msra.mxu0 0.0
    %750 = vmatprep.subr.mxu0 0.0
    %751 = vmatpush1.msra.mxu0 0.0
    %752 = vmatprep.subr.mxu0 0.0
    %753 = vmatpush1.msra.mxu0 0.0
    %754 = vmatprep.subr.mxu0 0.0
    %755 = vmatpush1.msra.mxu0 0.0
    %756 = vmatprep.mubr.f32.mxu0 0.0
    %757 = vmatmul.mubr.f32.gmra.mrb[0].mxu0 %v687
    %v758 = vpop.f32.mrb[0].mxu0
    %v759 = vadd.f32 %v678, %v758
    %v760 = vpop.f32.mrb[0].mxu0
    %761 = vmatprep.mubr.f32.mxu0 0.0
    %762 = vmatmul.mubr.f32.gmra.mrb[0].mxu0 %v690
    %v763 = vpop.f32.mrb[0].mxu0
    %v764 = vadd.f32 %v683, %v763
    %v765 = vpop.f32.mrb[0].mxu0
    %766 = vdwg.mxu0
    %v767 = vld [vmem:[%s3 + $0x50] sm:$0xff]
    %v768 = vld [vmem:[%s3 + $0x58] sm:$0xff]
    %v769 = vld [vmem:[%s3 + $0x60] sm:$0xff]
    %v770 = vld [vmem:[%s3 + $0x68] sm:$0xff]
    %v771 = vld [vmem:[%s3 + $0x70] sm:$0xff]
    %v772 = vld [vmem:[%s3 + $0xf0] sm:$0xff]
    %v773 = vld [vmem:[%s3 + $0xf8] sm:$0xff]
    %v774 = vld [vmem:[%s3 + $0x100] sm:$0xff]
    %v775 = vld [vmem:[%s3 + $0x108] sm:$0xff]
    %v776 = vld [vmem:[%s3 + $0x110] sm:$0xff]
    %777 = vmatprep.subr.mxu0 0.0
    %778 = vmatpush1.msra.mxu0 %v767
    %779 = vmatprep.subr.mxu0 0.0
    %780 = vmatpush1.msra.mxu0 %v768
    %781 = vmatprep.subr.mxu0 0.0
    %782 = vmatpush1.msra.mxu0 %v769
    %783 = vmatprep.subr.mxu0 0.0
    %784 = vmatpush1.msra.mxu0 %v770
    %785 = vmatprep.subr.mxu0 0.0
    %786 = vmatpush1.msra.mxu0 %v771
    %787 = vmatprep.subr.mxu0 0.0
    %788 = vmatpush1.msra.mxu0 0.0
    %789 = vmatprep.subr.mxu0 0.0
    %790 = vmatpush1.msra.mxu0 0.0
    %791 = vmatprep.subr.mxu0 0.0
    %792 = vmatpush1.msra.mxu0 0.0
    %793 = vmatprep.subr.mxu0 0.0
    %794 = vmatpush1.msra.mxu0 0.0
    %795 = vmatprep.subr.mxu0 0.0
    %796 = vmatpush1.msra.mxu0 0.0
    %797 = vmatprep.subr.mxu0 0.0
    %798 = vmatpush1.msra.mxu0 0.0
    %799 = vmatprep.subr.mxu0 0.0
    %800 = vmatpush1.msra.mxu0 0.0
    %801 = vmatprep.subr.mxu0 0.0
    %802 = vmatpush1.msra.mxu0 0.0
    %803 = vmatprep.subr.mxu0 0.0
    %804 = vmatpush1.msra.mxu0 0.0
    %805 = vmatprep.subr.mxu0 0.0
    %806 = vmatpush1.msra.mxu0 0.0
    %807 = vmatprep.subr.mxu0 0.0
    %808 = vmatpush1.msra.mxu0 0.0
    %809 = vmatprep.subr.mxu0 0.0
    %810 = vmatpush1.msra.mxu0 0.0
    %811 = vmatprep.subr.mxu0 0.0
    %812 = vmatpush1.msra.mxu0 0.0
    %813 = vmatprep.subr.mxu0 0.0
    %814 = vmatpush1.msra.mxu0 0.0
    %815 = vmatprep.subr.mxu0 0.0
    %816 = vmatpush1.msra.mxu0 0.0
    %817 = vmatprep.subr.mxu0 0.0
    %818 = vmatpush1.msra.mxu0 0.0
    %819 = vmatprep.subr.mxu0 0.0
    %820 = vmatpush1.msra.mxu0 0.0
    %821 = vmatprep.subr.mxu0 0.0
    %822 = vmatpush1.msra.mxu0 0.0
    %823 = vmatprep.subr.mxu0 0.0
    %824 = vmatpush1.msra.mxu0 0.0
    %825 = vmatprep.subr.mxu0 0.0
    %826 = vmatpush1.msra.mxu0 0.0
    %827 = vmatprep.subr.mxu0 0.0
    %828 = vmatpush1.msra.mxu0 0.0
    %829 = vmatprep.subr.mxu0 0.0
    %830 = vmatpush1.msra.mxu0 0.0
    %831 = vmatprep.subr.mxu0 0.0
    %832 = vmatpush1.msra.mxu0 0.0
    %833 = vmatprep.subr.mxu0 0.0
    %834 = vmatpush1.msra.mxu0 0.0
    %835 = vmatprep.subr.mxu0 0.0
    %836 = vmatpush1.msra.mxu0 0.0
    %837 = vmatprep.subr.mxu0 0.0
    %838 = vmatpush1.msra.mxu0 0.0
    %839 = vmatprep.subr.mxu0 0.0
    %840 = vmatpush1.msra.mxu0 0.0
    %841 = vmatprep.mubr.f32.mxu0 0.0
    %842 = vmatmul.mubr.f32.gmra.mrb[0].mxu0 %v83
    %v843 = vpop.f32.mrb[0].mxu0
    %v844 = vadd.f32 0.0, %v843
    %v845 = vpop.f32.mrb[0].mxu0
    %846 = vmatprep.mubr.f32.mxu0 0.0
    %847 = vmatmul.mubr.f32.gmra.mrb[0].mxu0 %v86
    %v848 = vpop.f32.mrb[0].mxu0
    %v849 = vadd.f32 0.0, %v848
    %v850 = vpop.f32.mrb[0].mxu0
    %851 = vdwg.mxu0
    %v853 = vsel %vm36, %v844, 0
    %v856 = vsel %vm36, %v849, 0
    %858 = vmatprep.subr.mxu0 0.0
    %859 = vmatpush1.xpose.msra.mxu0 %v83
    %860 = vmatprep.subr.mxu0 0.0
    %861 = vmatpush1.xpose.msra.mxu0 %v86
    %862 = vmatprep.subr.mxu0 0.0
    %863 = vmatpush1.xpose.msra.mxu0 0.0
    %864 = vmatprep.subr.mxu0 0.0
    %865 = vmatpush1.xpose.msra.mxu0 0.0
    %866 = vmatprep.subr.mxu0 0.0
    %867 = vmatpush1.xpose.msra.mxu0 0.0
    %868 = vmatprep.subr.mxu0 0.0
    %869 = vmatpush1.xpose.msra.mxu0 0.0
    %870 = vmatprep.subr.mxu0 0.0
    %871 = vmatpush1.xpose.msra.mxu0 0.0
    %872 = vmatprep.subr.mxu0 0.0
    %873 = vmatpush1.xpose.msra.mxu0 0.0
    %874 = vmatprep.subr.mxu0 0.0
    %875 = vmatpush1.xpose.msra.mxu0 0.0
    %876 = vmatprep.subr.mxu0 0.0
    %877 = vmatpush1.xpose.msra.mxu0 0.0
    %878 = vmatprep.subr.mxu0 0.0
    %879 = vmatpush1.xpose.msra.mxu0 0.0
    %880 = vmatprep.subr.mxu0 0.0
    %881 = vmatpush1.xpose.msra.mxu0 0.0
    %882 = vmatprep.subr.mxu0 0.0
    %883 = vmatpush1.xpose.msra.mxu0 0.0
    %884 = vmatprep.subr.mxu0 0.0
    %885 = vmatpush1.xpose.msra.mxu0 0.0
    %886 = vmatprep.subr.mxu0 0.0
    %887 = vmatpush1.xpose.msra.mxu0 0.0
    %888 = vmatprep.subr.mxu0 0.0
    %889 = vmatpush1.xpose.msra.mxu0 0.0
    %890 = vmatprep.subr.mxu0 0.0
    %891 = vmatpush1.xpose.msra.mxu0 0.0
    %892 = vmatprep.subr.mxu0 0.0
    %893 = vmatpush1.xpose.msra.mxu0 0.0
    %894 = vmatprep.subr.mxu0 0.0
    %895 = vmatpush1.xpose.msra.mxu0 0.0
    %896 = vmatprep.subr.mxu0 0.0
    %897 = vmatpush1.xpose.msra.mxu0 0.0
    %898 = vmatprep.subr.mxu0 0.0
    %899 = vmatpush1.xpose.msra.mxu0 0.0
    %900 = vmatprep.subr.mxu0 0.0
    %901 = vmatpush1.xpose.msra.mxu0 0.0
    %902 = vmatprep.subr.mxu0 0.0
    %903 = vmatpush1.xpose.msra.mxu0 0.0
    %904 = vmatprep.subr.mxu0 0.0
    %905 = vmatpush1.xpose.msra.mxu0 0.0
    %906 = vmatprep.subr.mxu0 0.0
    %907 = vmatpush1.xpose.msra.mxu0 0.0
    %908 = vmatprep.subr.mxu0 0.0
    %909 = vmatpush1.xpose.msra.mxu0 0.0
    %910 = vmatprep.subr.mxu0 0.0
    %911 = vmatpush1.xpose.msra.mxu0 0.0
    %912 = vmatprep.subr.mxu0 0.0
    %913 = vmatpush1.xpose.msra.mxu0 0.0
    %914 = vmatprep.subr.mxu0 0.0
    %915 = vmatpush1.xpose.msra.mxu0 0.0
    %916 = vmatprep.subr.mxu0 0.0
    %917 = vmatpush1.xpose.msra.mxu0 0.0
    %918 = vmatprep.subr.mxu0 0.0
    %919 = vmatpush1.xpose.msra.mxu0 0.0
    %920 = vmatprep.subr.mxu0 0.0
    %921 = vmatpush1.xpose.msra.mxu0 0.0
    %922 = vmatprep.mubr.f32.mxu0 0.0
    %923 = vmatmul.mubr.f32.gmra.mrb[0].mxu0 %v853
    %v924 = vpop.f32.mrb[0].mxu0
    %v925 = vadd.f32 %v32, %v924
    %v926 = vpop.f32.mrb[0].mxu0
    %927 = vmatprep.mubr.f32.mxu0 0.0
    %928 = vmatmul.mubr.f32.gmra.mrb[0].mxu0 %v856
    %v929 = vpop.f32.mrb[0].mxu0
    %v930 = vadd.f32 %v33, %v929
    %v931 = vpop.f32.mrb[0].mxu0
    %932 = vdwg.mxu0
    %v933 = vsel %vm244, %v925, -inf
    %934 = vmax.xlane.f32.xlu0 %v933
    %v935 = vpop.xlane.xlu0 %934
    %v936 = vsel %vm244, %v930, -inf
    %937 = vmax.xlane.f32.xlu0 %v936
    %v938 = vpop.xlane.xlu0 %937
    %v939 = vsub.f32 %v925, %v935
    %v940 = vsub.f32 %v930, %v938
    %v941 = vmul.f32 %v939, 1.442695
    %v942 = vpow.pop %v941
    %v943 = vmul.f32 %v940, 1.442695
    %v944 = vpow.pop %v943
    %v945 = vsel %vm244, %v942, 0.0
    %946 = vadd.xlane.f32.xlu0 %v945
    %v947 = vpop.xlane.xlu0 %946
    %v948 = vsel %vm244, %v944, 0.0
    %949 = vadd.xlane.f32.xlu0 %v948
    %v950 = vpop.xlane.xlu0 %949
    %v951 = vrcp.pop %v947
    %v952 = vrcp.pop %v950
    %v953 = vmul.f32 %v942, %v951
    %v954 = vmul.f32 %v944, %v952
    %955 = vmatprep.subr.mxu0 0.0
    %956 = vmatpush1.msra.mxu0 %v772
    %957 = vmatprep.subr.mxu0 0.0
    %958 = vmatpush1.msra.mxu0 %v773
    %959 = vmatprep.subr.mxu0 0.0
    %960 = vmatpush1.msra.mxu0 %v774
    %961 = vmatprep.subr.mxu0 0.0
    %962 = vmatpush1.msra.mxu0 %v775
    %963 = vmatprep.subr.mxu0 0.0
    %964 = vmatpush1.msra.mxu0 %v776
    %965 = vmatprep.subr.mxu0 0.0
    %966 = vmatpush1.msra.mxu0 0.0
    %967 = vmatprep.subr.mxu0 0.0
    %968 = vmatpush1.msra.mxu0 0.0
    %969 = vmatprep.subr.mxu0 0.0
    %970 = vmatpush1.msra.mxu0 0.0
    %971 = vmatprep.subr.mxu0 0.0
    %972 = vmatpush1.msra.mxu0 0.0
    %973 = vmatprep.subr.mxu0 0.0
    %974 = vmatpush1.msra.mxu0 0.0
    %975 = vmatprep.subr.mxu0 0.0
    %976 = vmatpush1.msra.mxu0 0.0
    %977 = vmatprep.subr.mxu0 0.0
    %978 = vmatpush1.msra.mxu0 0.0
    %979 = vmatprep.subr.mxu0 0.0
    %980 = vmatpush1.msra.mxu0 0.0
    %981 = vmatprep.subr.mxu0 0.0
    %982 = vmatpush1.msra.mxu0 0.0
    %983 = vmatprep.subr.mxu0 0.0
    %984 = vmatpush1.msra.mxu0 0.0
    %985 = vmatprep.subr.mxu0 0.0
    %986 = vmatpush1.msra.mxu0 0.0
    %987 = vmatprep.subr.mxu0 0.0
    %988 = vmatpush1.msra.mxu0 0.0
    %989 = vmatprep.subr.mxu0 0.0
    %990 = vmatpush1.msra.mxu0 0.0
    %991 = vmatprep.subr.mxu0 0.0
    %992 = vmatpush1.msra.mxu0 0.0
    %993 = vmatprep.subr.mxu0 0.0
    %994 = vmatpush1.msra.mxu0 0.0
    %995 = vmatprep.subr.mxu0 0.0
    %996 = vmatpush1.msra.mxu0 0.0
    %997 = vmatprep.subr.mxu0 0.0
    %998 = vmatpush1.msra.mxu0 0.0
    %999 = vmatprep.subr.mxu0 0.0
    %1000 = vmatpush1.msra.mxu0 0.0
    %1001 = vmatprep.subr.mxu0 0.0
    %1002 = vmatpush1.msra.mxu0 0.0
    %1003 = vmatprep.subr.mxu0 0.0
    %1004 = vmatpush1.msra.mxu0 0.0
    %1005 = vmatprep.subr.mxu0 0.0
    %1006 = vmatpush1.msra.mxu0 0.0
    %1007 = vmatprep.subr.mxu0 0.0
    %1008 = vmatpush1.msra.mxu0 0.0
    %1009 = vmatprep.subr.mxu0 0.0
    %1010 = vmatpush1.msra.mxu0 0.0
    %1011 = vmatprep.subr.mxu0 0.0
    %1012 = vmatpush1.msra.mxu0 0.0
    %1013 = vmatprep.subr.mxu0 0.0
    %1014 = vmatpush1.msra.mxu0 0.0
    %1015 = vmatprep.subr.mxu0 0.0
    %1016 = vmatpush1.msra.mxu0 0.0
    %1017 = vmatprep.subr.mxu0 0.0
    %1018 = vmatpush1.msra.mxu0 0.0
    %1019 = vmatprep.mubr.f32.mxu0 0.0
    %1020 = vmatmul.mubr.f32.gmra.mrb[0].mxu0 %v83
    %v1021 = vpop.f32.mrb[0].mxu0
    %v1022 = vadd.f32 0.0, %v1021
    %v1023 = vpop.f32.mrb[0].mxu0
    %1024 = vmatprep.mubr.f32.mxu0 0.0
    %1025 = vmatmul.mubr.f32.gmra.mrb[0].mxu0 %v86
    %v1026 = vpop.f32.mrb[0].mxu0
    %v1027 = vadd.f32 0.0, %v1026
    %v1028 = vpop.f32.mrb[0].mxu0
    %1029 = vdwg.mxu0
    %v1031 = vsel %vm244, %v953, 0
    %v1034 = vsel %vm244, %v954, 0
    %1036 = vmatprep.subr.mxu0 0.0
    %1037 = vmatpush1.msra.mxu0 %v1022
    %1038 = vmatprep.subr.mxu0 0.0
    %1039 = vmatpush1.msra.mxu0 %v1027
    %1040 = vmatprep.subr.mxu0 0.0
    %1041 = vmatpush1.msra.mxu0 0.0
    %1042 = vmatprep.subr.mxu0 0.0
    %1043 = vmatpush1.msra.mxu0 0.0
    %1044 = vmatprep.subr.mxu0 0.0
    %1045 = vmatpush1.msra.mxu0 0.0
    %1046 = vmatprep.subr.mxu0 0.0
    %1047 = vmatpush1.msra.mxu0 0.0
    %1048 = vmatprep.subr.mxu0 0.0
    %1049 = vmatpush1.msra.mxu0 0.0
    %1050 = vmatprep.subr.mxu0 0.0
    %1051 = vmatpush1.msra.mxu0 0.0
    %1052 = vmatprep.subr.mxu0 0.0
    %1053 = vmatpush1.msra.mxu0 0.0
    %1054 = vmatprep.subr.mxu0 0.0
    %1055 = vmatpush1.msra.mxu0 0.0
    %1056 = vmatprep.subr.mxu0 0.0
    %1057 = vmatpush1.msra.mxu0 0.0
    %1058 = vmatprep.subr.mxu0 0.0
    %1059 = vmatpush1.msra.mxu0 0.0
    %1060 = vmatprep.subr.mxu0 0.0
    %1061 = vmatpush1.msra.mxu0 0.0
    %1062 = vmatprep.subr.mxu0 0.0
    %1063 = vmatpush1.msra.mxu0 0.0
    %1064 = vmatprep.subr.mxu0 0.0
    %1065 = vmatpush1.msra.mxu0 0.0
    %1066 = vmatprep.subr.mxu0 0.0
    %1067 = vmatpush1.msra.mxu0 0.0
    %1068 = vmatprep.subr.mxu0 0.0
    %1069 = vmatpush1.msra.mxu0 0.0
    %1070 = vmatprep.subr.mxu0 0.0
    %1071 = vmatpush1.msra.mxu0 0.0
    %1072 = vmatprep.subr.mxu0 0.0
    %1073 = vmatpush1.msra.mxu0 0.0
    %1074 = vmatprep.subr.mxu0 0.0
    %1075 = vmatpush1.msra.mxu0 0.0
    %1076 = vmatprep.subr.mxu0 0.0
    %1077 = vmatpush1.msra.mxu0 0.0
    %1078 = vmatprep.subr.mxu0 0.0
    %1079 = vmatpush1.msra.mxu0 0.0
    %1080 = vmatprep.subr.mxu0 0.0
    %1081 = vmatpush1.msra.mxu0 0.0
    %1082 = vmatprep.subr.mxu0 0.0
    %1083 = vmatpush1.msra.mxu0 0.0
    %1084 = vmatprep.subr.mxu0 0.0
    %1085 = vmatpush1.msra.mxu0 0.0
    %1086 = vmatprep.subr.mxu0 0.0
    %1087 = vmatpush1.msra.mxu0 0.0
    %1088 = vmatprep.subr.mxu0 0.0
    %1089 = vmatpush1.msra.mxu0 0.0
    %1090 = vmatprep.subr.mxu0 0.0
    %1091 = vmatpush1.msra.mxu0 0.0
    %1092 = vmatprep.subr.mxu0 0.0
    %1093 = vmatpush1.msra.mxu0 0.0
    %1094 = vmatprep.subr.mxu0 0.0
    %1095 = vmatpush1.msra.mxu0 0.0
    %1096 = vmatprep.subr.mxu0 0.0
    %1097 = vmatpush1.msra.mxu0 0.0
    %1098 = vmatprep.subr.mxu0 0.0
    %1099 = vmatpush1.msra.mxu0 0.0
    %1100 = vmatprep.mubr.f32.mxu0 0.0
    %1101 = vmatmul.mubr.f32.gmra.mrb[0].mxu0 %v1031
    %v1102 = vpop.f32.mrb[0].mxu0
    %v1103 = vadd.f32 0.0, %v1102
    %v1104 = vpop.f32.mrb[0].mxu0
    %1105 = vmatprep.mubr.f32.mxu0 0.0
    %1106 = vmatmul.mubr.f32.gmra.mrb[0].mxu0 %v1034
    %v1107 = vpop.f32.mrb[0].mxu0
    %v1108 = vadd.f32 0.0, %v1107
    %v1109 = vpop.f32.mrb[0].mxu0
    %1110 = vdwg.mxu0
    %v1111 = vadd.f32 %v759, %v1103
    %v1112 = vadd.f32 %v764, %v1108
    %v1113 = vld [vmem:[%s3 + $0x78] sm:$0xff]
    %v1114 = vld [vmem:[%s3 + $0x80] sm:$0xff]
    %v1115 = vld [vmem:[%s3 + $0x88] sm:$0xff]
    %v1116 = vld [vmem:[%s3 + $0x90] sm:$0xff]
    %v1117 = vld [vmem:[%s3 + $0x98] sm:$0xff]
    %v1118 = vld [vmem:[%s3 + $0x118] sm:$0xff]
    %v1119 = vld [vmem:[%s3 + $0x120] sm:$0xff]
    %v1120 = vld [vmem:[%s3 + $0x128] sm:$0xff]
    %v1121 = vld [vmem:[%s3 + $0x130] sm:$0xff]
    %v1122 = vld [vmem:[%s3 + $0x138] sm:$0xff]
    %1123 = vmatprep.subr.mxu0 0.0
    %1124 = vmatpush1.msra.mxu0 %v1113
    %1125 = vmatprep.subr.mxu0 0.0
    %1126 = vmatpush1.msra.mxu0 %v1114
    %1127 = vmatprep.subr.mxu0 0.0
    %1128 = vmatpush1.msra.mxu0 %v1115
    %1129 = vmatprep.subr.mxu0 0.0
    %1130 = vmatpush1.msra.mxu0 %v1116
    %1131 = vmatprep.subr.mxu0 0.0
    %1132 = vmatpush1.msra.mxu0 %v1117
    %1133 = vmatprep.subr.mxu0 0.0
    %1134 = vmatpush1.msra.mxu0 0.0
    %1135 = vmatprep.subr.mxu0 0.0
    %1136 = vmatpush1.msra.mxu0 0.0
    %1137 = vmatprep.subr.mxu0 0.0
    %1138 = vmatpush1.msra.mxu0 0.0
    %1139 = vmatprep.subr.mxu0 0.0
    %1140 = vmatpush1.msra.mxu0 0.0
    %1141 = vmatprep.subr.mxu0 0.0
    %1142 = vmatpush1.msra.mxu0 0.0
    %1143 = vmatprep.subr.mxu0 0.0
    %1144 = vmatpush1.msra.mxu0 0.0
    %1145 = vmatprep.subr.mxu0 0.0
    %1146 = vmatpush1.msra.mxu0 0.0
    %1147 = vmatprep.subr.mxu0 0.0
    %1148 = vmatpush1.msra.mxu0 0.0
    %1149 = vmatprep.subr.mxu0 0.0
    %1150 = vmatpush1.msra.mxu0 0.0
    %1151 = vmatprep.subr.mxu0 0.0
    %1152 = vmatpush1.msra.mxu0 0.0
    %1153 = vmatprep.subr.mxu0 0.0
    %1154 = vmatpush1.msra.mxu0 0.0
    %1155 = vmatprep.subr.mxu0 0.0
    %1156 = vmatpush1.msra.mxu0 0.0
    %1157 = vmatprep.subr.mxu0 0.0
    %1158 = vmatpush1.msra.mxu0 0.0
    %1159 = vmatprep.subr.mxu0 0.0
    %1160 = vmatpush1.msra.mxu0 0.0
    %1161 = vmatprep.subr.mxu0 0.0
    %1162 = vmatpush1.msra.mxu0 0.0
    %1163 = vmatprep.subr.mxu0 0.0
    %1164 = vmatpush1.msra.mxu0 0.0
    %1165 = vmatprep.subr.mxu0 0.0
    %1166 = vmatpush1.msra.mxu0 0.0
    %1167 = vmatprep.subr.mxu0 0.0
    %1168 = vmatpush1.msra.mxu0 0.0
    %1169 = vmatprep.subr.mxu0 0.0
    %1170 = vmatpush1.msra.mxu0 0.0
    %1171 = vmatprep.subr.mxu0 0.0
    %1172 = vmatpush1.msra.mxu0 0.0
    %1173 = vmatprep.subr.mxu0 0.0
    %1174 = vmatpush1.msra.mxu0 0.0
    %1175 = vmatprep.subr.mxu0 0.0
    %1176 = vmatpush1.msra.mxu0 0.0
    %1177 = vmatprep.subr.mxu0 0.0
    %1178 = vmatpush1.msra.mxu0 0.0
    %1179 = vmatprep.subr.mxu0 0.0
    %1180 = vmatpush1.msra.mxu0 0.0
    %1181 = vmatprep.subr.mxu0 0.0
    %1182 = vmatpush1.msra.mxu0 0.0
    %1183 = vmatprep.subr.mxu0 0.0
    %1184 = vmatpush1.msra.mxu0 0.0
    %1185 = vmatprep.subr.mxu0 0.0
    %1186 = vmatpush1.msra.mxu0 0.0
    %1187 = vmatprep.mubr.f32.mxu0 0.0
    %1188 = vmatmul.mubr.f32.gmra.mrb[0].mxu0 %v83
    %v1189 = vpop.f32.mrb[0].mxu0
    %v1190 = vadd.f32 0.0, %v1189
    %v1191 = vpop.f32.mrb[0].mxu0
    %1192 = vmatprep.mubr.f32.mxu0 0.0
    %1193 = vmatmul.mubr.f32.gmra.mrb[0].mxu0 %v86
    %v1194 = vpop.f32.mrb[0].mxu0
    %v1195 = vadd.f32 0.0, %v1194
    %v1196 = vpop.f32.mrb[0].mxu0
    %1197 = vdwg.mxu0
    %v1199 = vsel %vm36, %v1190, 0
    %v1202 = vsel %vm36, %v1195, 0
    %1204 = vmatprep.subr.mxu0 0.0
    %1205 = vmatpush1.xpose.msra.mxu0 %v83
    %1206 = vmatprep.subr.mxu0 0.0
    %1207 = vmatpush1.xpose.msra.mxu0 %v86
    %1208 = vmatprep.subr.mxu0 0.0
    %1209 = vmatpush1.xpose.msra.mxu0 0.0
    %1210 = vmatprep.subr.mxu0 0.0
    %1211 = vmatpush1.xpose.msra.mxu0 0.0
    %1212 = vmatprep.subr.mxu0 0.0
    %1213 = vmatpush1.xpose.msra.mxu0 0.0
    %1214 = vmatprep.subr.mxu0 0.0
    %1215 = vmatpush1.xpose.msra.mxu0 0.0
    %1216 = vmatprep.subr.mxu0 0.0
    %1217 = vmatpush1.xpose.msra.mxu0 0.0
    %1218 = vmatprep.subr.mxu0 0.0
    %1219 = vmatpush1.xpose.msra.mxu0 0.0
    %1220 = vmatprep.subr.mxu0 0.0
    %1221 = vmatpush1.xpose.msra.mxu0 0.0
    %1222 = vmatprep.subr.mxu0 0.0
    %1223 = vmatpush1.xpose.msra.mxu0 0.0
    %1224 = vmatprep.subr.mxu0 0.0
    %1225 = vmatpush1.xpose.msra.mxu0 0.0
    %1226 = vmatprep.subr.mxu0 0.0
    %1227 = vmatpush1.xpose.msra.mxu0 0.0
    %1228 = vmatprep.subr.mxu0 0.0
    %1229 = vmatpush1.xpose.msra.mxu0 0.0
    %1230 = vmatprep.subr.mxu0 0.0
    %1231 = vmatpush1.xpose.msra.mxu0 0.0
    %1232 = vmatprep.subr.mxu0 0.0
    %1233 = vmatpush1.xpose.msra.mxu0 0.0
    %1234 = vmatprep.subr.mxu0 0.0
    %1235 = vmatpush1.xpose.msra.mxu0 0.0
    %1236 = vmatprep.subr.mxu0 0.0
    %1237 = vmatpush1.xpose.msra.mxu0 0.0
    %1238 = vmatprep.subr.mxu0 0.0
    %1239 = vmatpush1.xpose.msra.mxu0 0.0
    %1240 = vmatprep.subr.mxu0 0.0
    %1241 = vmatpush1.xpose.msra.mxu0 0.0
    %1242 = vmatprep.subr.mxu0 0.0
    %1243 = vmatpush1.xpose.msra.mxu0 0.0
    %1244 = vmatprep.subr.mxu0 0.0
    %1245 = vmatpush1.xpose.msra.mxu0 0.0
    %1246 = vmatprep.subr.mxu0 0.0
    %1247 = vmatpush1.xpose.msra.mxu0 0.0
    %1248 = vmatprep.subr.mxu0 0.0
    %1249 = vmatpush1.xpose.msra.mxu0 0.0
    %1250 = vmatprep.subr.mxu0 0.0
    %1251 = vmatpush1.xpose.msra.mxu0 0.0
    %1252 = vmatprep.subr.mxu0 0.0
    %1253 = vmatpush1.xpose.msra.mxu0 0.0
    %1254 = vmatprep.subr.mxu0 0.0
    %1255 = vmatpush1.xpose.msra.mxu0 0.0
    %1256 = vmatprep.subr.mxu0 0.0
    %1257 = vmatpush1.xpose.msra.mxu0 0.0
    %1258 = vmatprep.subr.mxu0 0.0
    %1259 = vmatpush1.xpose.msra.mxu0 0.0
    %1260 = vmatprep.subr.mxu0 0.0
    %1261 = vmatpush1.xpose.msra.mxu0 0.0
    %1262 = vmatprep.subr.mxu0 0.0
    %1263 = vmatpush1.xpose.msra.mxu0 0.0
    %1264 = vmatprep.subr.mxu0 0.0
    %1265 = vmatpush1.xpose.msra.mxu0 0.0
    %1266 = vmatprep.subr.mxu0 0.0
    %1267 = vmatpush1.xpose.msra.mxu0 0.0
    %1268 = vmatprep.mubr.f32.mxu0 0.0
    %1269 = vmatmul.mubr.f32.gmra.mrb[0].mxu0 %v1199
    %v1270 = vpop.f32.mrb[0].mxu0
    %v1271 = vadd.f32 %v32, %v1270
    %v1272 = vpop.f32.mrb[0].mxu0
    %1273 = vmatprep.mubr.f32.mxu0 0.0
    %1274 = vmatmul.mubr.f32.gmra.mrb[0].mxu0 %v1202
    %v1275 = vpop.f32.mrb[0].mxu0
    %v1276 = vadd.f32 %v33, %v1275
    %v1277 = vpop.f32.mrb[0].mxu0
    %1278 = vdwg.mxu0
    %v1279 = vsel %vm244, %v1271, -inf
    %1280 = vmax.xlane.f32.xlu0 %v1279
    %v1281 = vpop.xlane.xlu0 %1280
    %v1282 = vsel %vm244, %v1276, -inf
    %1283 = vmax.xlane.f32.xlu0 %v1282
    %v1284 = vpop.xlane.xlu0 %1283
    %v1285 = vsub.f32 %v1271, %v1281
    %v1286 = vsub.f32 %v1276, %v1284
    %v1287 = vmul.f32 %v1285, 1.442695
    %v1288 = vpow.pop %v1287
    %v1289 = vmul.f32 %v1286, 1.442695
    %v1290 = vpow.pop %v1289
    %v1291 = vsel %vm244, %v1288, 0.0
    %1292 = vadd.xlane.f32.xlu0 %v1291
    %v1293 = vpop.xlane.xlu0 %1292
    %v1294 = vsel %vm244, %v1290, 0.0
    %1295 = vadd.xlane.f32.xlu0 %v1294
    %v1296 = vpop.xlane.xlu0 %1295
    %v1297 = vrcp.pop %v1293
    %v1298 = vrcp.pop %v1296
    %v1299 = vmul.f32 %v1288, %v1297
    %v1300 = vmul.f32 %v1290, %v1298
    %1301 = vmatprep.subr.mxu0 0.0
    %1302 = vmatpush1.msra.mxu0 %v1118
    %1303 = vmatprep.subr.mxu0 0.0
    %1304 = vmatpush1.msra.mxu0 %v1119
    %1305 = vmatprep.subr.mxu0 0.0
    %1306 = vmatpush1.msra.mxu0 %v1120
    %1307 = vmatprep.subr.mxu0 0.0
    %1308 = vmatpush1.msra.mxu0 %v1121
    %1309 = vmatprep.subr.mxu0 0.0
    %1310 = vmatpush1.msra.mxu0 %v1122
    %1311 = vmatprep.subr.mxu0 0.0
    %1312 = vmatpush1.msra.mxu0 0.0
    %1313 = vmatprep.subr.mxu0 0.0
    %1314 = vmatpush1.msra.mxu0 0.0
    %1315 = vmatprep.subr.mxu0 0.0
    %1316 = vmatpush1.msra.mxu0 0.0
    %1317 = vmatprep.subr.mxu0 0.0
    %1318 = vmatpush1.msra.mxu0 0.0
    %1319 = vmatprep.subr.mxu0 0.0
    %1320 = vmatpush1.msra.mxu0 0.0
    %1321 = vmatprep.subr.mxu0 0.0
    %1322 = vmatpush1.msra.mxu0 0.0
    %1323 = vmatprep.subr.mxu0 0.0
    %1324 = vmatpush1.msra.mxu0 0.0
    %1325 = vmatprep.subr.mxu0 0.0
    %1326 = vmatpush1.msra.mxu0 0.0
    %1327 = vmatprep.subr.mxu0 0.0
    %1328 = vmatpush1.msra.mxu0 0.0
    %1329 = vmatprep.subr.mxu0 0.0
    %1330 = vmatpush1.msra.mxu0 0.0
    %1331 = vmatprep.subr.mxu0 0.0
    %1332 = vmatpush1.msra.mxu0 0.0
    %1333 = vmatprep.subr.mxu0 0.0
    %1334 = vmatpush1.msra.mxu0 0.0
    %1335 = vmatprep.subr.mxu0 0.0
    %1336 = vmatpush1.msra.mxu0 0.0
    %1337 = vmatprep.subr.mxu0 0.0
    %1338 = vmatpush1.msra.mxu0 0.0
    %1339 = vmatprep.subr.mxu0 0.0
    %1340 = vmatpush1.msra.mxu0 0.0
    %1341 = vmatprep.subr.mxu0 0.0
    %1342 = vmatpush1.msra.mxu0 0.0
    %1343 = vmatprep.subr.mxu0 0.0
    %1344 = vmatpush1.msra.mxu0 0.0
    %1345 = vmatprep.subr.mxu0 0.0
    %1346 = vmatpush1.msra.mxu0 0.0
    %1347 = vmatprep.subr.mxu0 0.0
    %1348 = vmatpush1.msra.mxu0 0.0
    %1349 = vmatprep.subr.mxu0 0.0
    %1350 = vmatpush1.msra.mxu0 0.0
    %1351 = vmatprep.subr.mxu0 0.0
    %1352 = vmatpush1.msra.mxu0 0.0
    %1353 = vmatprep.subr.mxu0 0.0
    %1354 = vmatpush1.msra.mxu0 0.0
    %1355 = vmatprep.subr.mxu0 0.0
    %1356 = vmatpush1.msra.mxu0 0.0
    %1357 = vmatprep.subr.mxu0 0.0
    %1358 = vmatpush1.msra.mxu0 0.0
    %1359 = vmatprep.subr.mxu0 0.0
    %1360 = vmatpush1.msra.mxu0 0.0
    %1361 = vmatprep.subr.mxu0 0.0
    %1362 = vmatpush1.msra.mxu0 0.0
    %1363 = vmatprep.subr.mxu0 0.0
    %1364 = vmatpush1.msra.mxu0 0.0
    %1365 = vmatprep.mubr.f32.mxu0 0.0
    %1366 = vmatmul.mubr.f32.gmra.mrb[0].mxu0 %v83
    %v1367 = vpop.f32.mrb[0].mxu0
    %v1368 = vadd.f32 0.0, %v1367
    %v1369 = vpop.f32.mrb[0].mxu0
    %1370 = vmatprep.mubr.f32.mxu0 0.0
    %1371 = vmatmul.mubr.f32.gmra.mrb[0].mxu0 %v86
    %v1372 = vpop.f32.mrb[0].mxu0
    %v1373 = vadd.f32 0.0, %v1372
    %v1374 = vpop.f32.mrb[0].mxu0
    %1375 = vdwg.mxu0
    %v1377 = vsel %vm244, %v1299, 0
    %v1380 = vsel %vm244, %v1300, 0
    %1382 = vmatprep.subr.mxu0 0.0
    %1383 = vmatpush1.msra.mxu0 %v1368
    %1384 = vmatprep.subr.mxu0 0.0
    %1385 = vmatpush1.msra.mxu0 %v1373
    %1386 = vmatprep.subr.mxu0 0.0
    %1387 = vmatpush1.msra.mxu0 0.0
    %1388 = vmatprep.subr.mxu0 0.0
    %1389 = vmatpush1.msra.mxu0 0.0
    %1390 = vmatprep.subr.mxu0 0.0
    %1391 = vmatpush1.msra.mxu0 0.0
    %1392 = vmatprep.subr.mxu0 0.0
    %1393 = vmatpush1.msra.mxu0 0.0
    %1394 = vmatprep.subr.mxu0 0.0
    %1395 = vmatpush1.msra.mxu0 0.0
    %1396 = vmatprep.subr.mxu0 0.0
    %1397 = vmatpush1.msra.mxu0 0.0
    %1398 = vmatprep.subr.mxu0 0.0
    %1399 = vmatpush1.msra.mxu0 0.0
    %1400 = vmatprep.subr.mxu0 0.0
    %1401 = vmatpush1.msra.mxu0 0.0
    %1402 = vmatprep.subr.mxu0 0.0
    %1403 = vmatpush1.msra.mxu0 0.0
    %1404 = vmatprep.subr.mxu0 0.0
    %1405 = vmatpush1.msra.mxu0 0.0
    %1406 = vmatprep.subr.mxu0 0.0
    %1407 = vmatpush1.msra.mxu0 0.0
    %1408 = vmatprep.subr.mxu0 0.0
    %1409 = vmatpush1.msra.mxu0 0.0
    %1410 = vmatprep.subr.mxu0 0.0
    %1411 = vmatpush1.msra.mxu0 0.0
    %1412 = vmatprep.subr.mxu0 0.0
    %1413 = vmatpush1.msra.mxu0 0.0
    %1414 = vmatprep.subr.mxu0 0.0
    %1415 = vmatpush1.msra.mxu0 0.0
    %1416 = vmatprep.subr.mxu0 0.0
    %1417 = vmatpush1.msra.mxu0 0.0
    %1418 = vmatprep.subr.mxu0 0.0
    %1419 = vmatpush1.msra.mxu0 0.0
    %1420 = vmatprep.subr.mxu0 0.0
    %1421 = vmatpush1.msra.mxu0 0.0
    %1422 = vmatprep.subr.mxu0 0.0
    %1423 = vmatpush1.msra.mxu0 0.0
    %1424 = vmatprep.subr.mxu0 0.0
    %1425 = vmatpush1.msra.mxu0 0.0
    %1426 = vmatprep.subr.mxu0 0.0
    %1427 = vmatpush1.msra.mxu0 0.0
    %1428 = vmatprep.subr.mxu0 0.0
    %1429 = vmatpush1.msra.mxu0 0.0
    %1430 = vmatprep.subr.mxu0 0.0
    %1431 = vmatpush1.msra.mxu0 0.0
    %1432 = vmatprep.subr.mxu0 0.0
    %1433 = vmatpush1.msra.mxu0 0.0
    %1434 = vmatprep.subr.mxu0 0.0
    %1435 = vmatpush1.msra.mxu0 0.0
    %1436 = vmatprep.subr.mxu0 0.0
    %1437 = vmatpush1.msra.mxu0 0.0
    %1438 = vmatprep.subr.mxu0 0.0
    %1439 = vmatpush1.msra.mxu0 0.0
    %1440 = vmatprep.subr.mxu0 0.0
    %1441 = vmatpush1.msra.mxu0 0.0
    %1442 = vmatprep.subr.mxu0 0.0
    %1443 = vmatpush1.msra.mxu0 0.0
    %1444 = vmatprep.subr.mxu0 0.0
    %1445 = vmatpush1.msra.mxu0 0.0
    %1446 = vmatprep.mubr.f32.mxu0 0.0
    %1447 = vmatmul.mubr.f32.gmra.mrb[0].mxu0 %v1377
    %v1448 = vpop.f32.mrb[0].mxu0
    %v1449 = vadd.f32 0.0, %v1448
    %v1450 = vpop.f32.mrb[0].mxu0
    %1451 = vmatprep.mubr.f32.mxu0 0.0
    %1452 = vmatmul.mubr.f32.gmra.mrb[0].mxu0 %v1380
    %v1453 = vpop.f32.mrb[0].mxu0
    %v1454 = vadd.f32 0.0, %v1453
    %v1455 = vpop.f32.mrb[0].mxu0
    %1456 = vdwg.mxu0
    %v1457 = vadd.f32 %v1111, %v1449
    %v1458 = vadd.f32 %v1112, %v1454
    %v1459 = vld [vmem:[%s3 + $0x2e8] sm:$0x1]
    %v1460 = vlaneseq
    %v1461 = vshrl.u32 %v1460, 7
    %v1462 = vsub.s32 0, %v1461
    %v1463 = vrot.slane %v1459, %v1462
    %v1464 = vadd.f32 %v1457, %v1463
    %v1465 = vadd.f32 %v1458, %v1463
    %v1466 = vadd.f32 %v1464, %v26
    %v1467 = vadd.f32 %v1465, %v27
    %v1468 = vsel %vm36, %v1466, 0.0
    %1469 = vadd.xlane.f32.xlu0 %v1468
    %v1470 = vpop.xlane.xlu0 %1469
    %v1471 = vsel %vm36, %v1467, 0.0
    %1472 = vadd.xlane.f32.xlu0 %v1471
    %v1473 = vpop.xlane.xlu0 %1472
    %v1474 = vmul.f32 %v1470, 0.03125
    %v1475 = vmul.f32 %v1473, 0.03125
    %v1476 = vmul.f32 %v1466, %v1466
    %v1477 = vmul.f32 %v1467, %v1467
    %v1478 = vsel %vm36, %v1476, 0.0
    %1479 = vadd.xlane.f32.xlu0 %v1478
    %v1480 = vpop.xlane.xlu0 %1479
    %v1481 = vsel %vm36, %v1477, 0.0
    %1482 = vadd.xlane.f32.xlu0 %v1481
    %v1483 = vpop.xlane.xlu0 %1482
    %v1484 = vmul.f32 %v1480, 0.03125
    %v1485 = vmul.f32 %v1483, 0.03125
    %v1486 = vmul.f32 %v1474, %v1474
    %v1487 = vmul.f32 %v1475, %v1475
    %v1488 = vsub.f32 %v1484, %v1486
    %v1489 = vsub.f32 %v1485, %v1487
    %v1490 = vsub.f32 %v1466, %v1474
    %v1491 = vsub.f32 %v1467, %v1475
    %v1492 = vadd.f32 %v1488, 1e-06
    %v1493 = vadd.f32 %v1489, 1e-06
    %v1494 = vrsqrt.pop %v1492
    %v1495 = vrsqrt.pop %v1493
    %v1496 = vmul.f32 %v1490, %v1494
    %v1497 = vmul.f32 %v1491, %v1495
    %v1498 = vsel %vm69, %v1496, %v25
    %v1499 = vsel %vm69, %v1497, %v25
    %v1500 = vld [vmem:[%s3 + $0x140] sm:$0xff]
    %v1501 = vld [vmem:[%s3 + $0x148] sm:$0xff]
    %v1502 = vld [vmem:[%s3 + $0x150] sm:$0xff]
    %v1503 = vld [vmem:[%s3 + $0x158] sm:$0xff]
    %v1504 = vld [vmem:[%s3 + $0x160] sm:$0xff]
    %v1505 = vld [vmem:[%s3 + $0x1e0] sm:$0xff]
    %v1506 = vld [vmem:[%s3 + $0x1e8] sm:$0xff]
    %v1507 = vld [vmem:[%s3 + $0x1f0] sm:$0xff]
    %v1508 = vld [vmem:[%s3 + $0x1f8] sm:$0xff]
    %v1509 = vld [vmem:[%s3 + $0x200] sm:$0xff]
    %v1511 = vsel %vm36, %v1498, 0
    %v1514 = vsel %vm36, %v1499, 0
    %1516 = vmatprep.subr.mxu0 0.0
    %1517 = vmatpush1.msra.mxu0 %v1500
    %1518 = vmatprep.subr.mxu0 0.0
    %1519 = vmatpush1.msra.mxu0 %v1501
    %1520 = vmatprep.subr.mxu0 0.0
    %1521 = vmatpush1.msra.mxu0 %v1502
    %1522 = vmatprep.subr.mxu0 0.0
    %1523 = vmatpush1.msra.mxu0 %v1503
    %1524 = vmatprep.subr.mxu0 0.0
    %1525 = vmatpush1.msra.mxu0 %v1504
    %1526 = vmatprep.subr.mxu0 0.0
    %1527 = vmatpush1.msra.mxu0 0.0
    %1528 = vmatprep.subr.mxu0 0.0
    %1529 = vmatpush1.msra.mxu0 0.0
    %1530 = vmatprep.subr.mxu0 0.0
    %1531 = vmatpush1.msra.mxu0 0.0
    %1532 = vmatprep.subr.mxu0 0.0
    %1533 = vmatpush1.msra.mxu0 0.0
    %1534 = vmatprep.subr.mxu0 0.0
    %1535 = vmatpush1.msra.mxu0 0.0
    %1536 = vmatprep.subr.mxu0 0.0
    %1537 = vmatpush1.msra.mxu0 0.0
    %1538 = vmatprep.subr.mxu0 0.0
    %1539 = vmatpush1.msra.mxu0 0.0
    %1540 = vmatprep.subr.mxu0 0.0
    %1541 = vmatpush1.msra.mxu0 0.0
    %1542 = vmatprep.subr.mxu0 0.0
    %1543 = vmatpush1.msra.mxu0 0.0
    %1544 = vmatprep.subr.mxu0 0.0
    %1545 = vmatpush1.msra.mxu0 0.0
    %1546 = vmatprep.subr.mxu0 0.0
    %1547 = vmatpush1.msra.mxu0 0.0
    %1548 = vmatprep.subr.mxu0 0.0
    %1549 = vmatpush1.msra.mxu0 0.0
    %1550 = vmatprep.subr.mxu0 0.0
    %1551 = vmatpush1.msra.mxu0 0.0
    %1552 = vmatprep.subr.mxu0 0.0
    %1553 = vmatpush1.msra.mxu0 0.0
    %1554 = vmatprep.subr.mxu0 0.0
    %1555 = vmatpush1.msra.mxu0 0.0
    %1556 = vmatprep.subr.mxu0 0.0
    %1557 = vmatpush1.msra.mxu0 0.0
    %1558 = vmatprep.subr.mxu0 0.0
    %1559 = vmatpush1.msra.mxu0 0.0
    %1560 = vmatprep.subr.mxu0 0.0
    %1561 = vmatpush1.msra.mxu0 0.0
    %1562 = vmatprep.subr.mxu0 0.0
    %1563 = vmatpush1.msra.mxu0 0.0
    %1564 = vmatprep.subr.mxu0 0.0
    %1565 = vmatpush1.msra.mxu0 0.0
    %1566 = vmatprep.subr.mxu0 0.0
    %1567 = vmatpush1.msra.mxu0 0.0
    %1568 = vmatprep.subr.mxu0 0.0
    %1569 = vmatpush1.msra.mxu0 0.0
    %1570 = vmatprep.subr.mxu0 0.0
    %1571 = vmatpush1.msra.mxu0 0.0
    %1572 = vmatprep.subr.mxu0 0.0
    %1573 = vmatpush1.msra.mxu0 0.0
    %1574 = vmatprep.subr.mxu0 0.0
    %1575 = vmatpush1.msra.mxu0 0.0
    %1576 = vmatprep.subr.mxu0 0.0
    %1577 = vmatpush1.msra.mxu0 0.0
    %1578 = vmatprep.subr.mxu0 0.0
    %1579 = vmatpush1.msra.mxu0 0.0
    %1580 = vmatprep.mubr.f32.mxu0 0.0
    %1581 = vmatmul.mubr.f32.gmra.mrb[0].mxu0 %v1511
    %v1582 = vpop.f32.mrb[0].mxu0
    %v1583 = vadd.f32 0.0, %v1582
    %v1584 = vpop.f32.mrb[0].mxu0
    %1585 = vmatprep.mubr.f32.mxu0 0.0
    %1586 = vmatmul.mubr.f32.gmra.mrb[0].mxu0 %v1514
    %v1587 = vpop.f32.mrb[0].mxu0
    %v1588 = vadd.f32 0.0, %v1587
    %v1589 = vpop.f32.mrb[0].mxu0
    %1590 = vdwg.mxu0
    %v1592 = vsel %vm36, %v1583, 0
    %v1595 = vsel %vm36, %v1588, 0
    %v1598 = vsel %vm36, %v28, 0
    %v1601 = vsel %vm36, %v29, 0
    %v1604 = vsel %vm36, %v30, 0
    %v1607 = vsel %vm36, %v31, 0
    %1609 = vmatprep.subr.mxu0 0.0
    %1610 = vmatpush1.xpose.msra.mxu0 %v1598
    %1611 = vmatprep.subr.mxu0 0.0
    %1612 = vmatpush1.xpose.msra.mxu0 %v1601
    %1613 = vmatprep.subr.mxu0 0.0
    %1614 = vmatpush1.xpose.msra.mxu0 %v1604
    %1615 = vmatprep.subr.mxu0 0.0
    %1616 = vmatpush1.xpose.msra.mxu0 %v1607
    %1617 = vmatprep.subr.mxu0 0.0
    %1618 = vmatpush1.xpose.msra.mxu0 0.0
    %1619 = vmatprep.subr.mxu0 0.0
    %1620 = vmatpush1.xpose.msra.mxu0 0.0
    %1621 = vmatprep.subr.mxu0 0.0
    %1622 = vmatpush1.xpose.msra.mxu0 0.0
    %1623 = vmatprep.subr.mxu0 0.0
    %1624 = vmatpush1.xpose.msra.mxu0 0.0
    %1625 = vmatprep.subr.mxu0 0.0
    %1626 = vmatpush1.xpose.msra.mxu0 0.0
    %1627 = vmatprep.subr.mxu0 0.0
    %1628 = vmatpush1.xpose.msra.mxu0 0.0
    %1629 = vmatprep.subr.mxu0 0.0
    %1630 = vmatpush1.xpose.msra.mxu0 0.0
    %1631 = vmatprep.subr.mxu0 0.0
    %1632 = vmatpush1.xpose.msra.mxu0 0.0
    %1633 = vmatprep.subr.mxu0 0.0
    %1634 = vmatpush1.xpose.msra.mxu0 0.0
    %1635 = vmatprep.subr.mxu0 0.0
    %1636 = vmatpush1.xpose.msra.mxu0 0.0
    %1637 = vmatprep.subr.mxu0 0.0
    %1638 = vmatpush1.xpose.msra.mxu0 0.0
    %1639 = vmatprep.subr.mxu0 0.0
    %1640 = vmatpush1.xpose.msra.mxu0 0.0
    %1641 = vmatprep.subr.mxu0 0.0
    %1642 = vmatpush1.xpose.msra.mxu0 0.0
    %1643 = vmatprep.subr.mxu0 0.0
    %1644 = vmatpush1.xpose.msra.mxu0 0.0
    %1645 = vmatprep.subr.mxu0 0.0
    %1646 = vmatpush1.xpose.msra.mxu0 0.0
    %1647 = vmatprep.subr.mxu0 0.0
    %1648 = vmatpush1.xpose.msra.mxu0 0.0
    %1649 = vmatprep.subr.mxu0 0.0
    %1650 = vmatpush1.xpose.msra.mxu0 0.0
    %1651 = vmatprep.subr.mxu0 0.0
    %1652 = vmatpush1.xpose.msra.mxu0 0.0
    %1653 = vmatprep.subr.mxu0 0.0
    %1654 = vmatpush1.xpose.msra.mxu0 0.0
    %1655 = vmatprep.subr.mxu0 0.0
    %1656 = vmatpush1.xpose.msra.mxu0 0.0
    %1657 = vmatprep.subr.mxu0 0.0
    %1658 = vmatpush1.xpose.msra.mxu0 0.0
    %1659 = vmatprep.subr.mxu0 0.0
    %1660 = vmatpush1.xpose.msra.mxu0 0.0
    %1661 = vmatprep.subr.mxu0 0.0
    %1662 = vmatpush1.xpose.msra.mxu0 0.0
    %1663 = vmatprep.subr.mxu0 0.0
    %1664 = vmatpush1.xpose.msra.mxu0 0.0
    %1665 = vmatprep.subr.mxu0 0.0
    %1666 = vmatpush1.xpose.msra.mxu0 0.0
    %1667 = vmatprep.subr.mxu0 0.0
    %1668 = vmatpush1.xpose.msra.mxu0 0.0
    %1669 = vmatprep.subr.mxu0 0.0
    %1670 = vmatpush1.xpose.msra.mxu0 0.0
    %1671 = vmatprep.subr.mxu0 0.0
    %1672 = vmatpush1.xpose.msra.mxu0 0.0
    %1673 = vmatprep.mubr.f32.mxu0 0.0
    %1674 = vmatmul.mubr.f32.gmra.mrb[0].mxu0 %v1592
    %v1675 = vpop.f32.mrb[0].mxu0
    %v1676 = vadd.f32 %v34, %v1675
    %v1677 = vpop.f32.mrb[0].mxu0
    %1678 = vmatprep.mubr.f32.mxu0 0.0
    %1679 = vmatmul.mubr.f32.gmra.mrb[0].mxu0 %v1595
    %v1680 = vpop.f32.mrb[0].mxu0
    %v1681 = vadd.f32 %v35, %v1680
    %v1682 = vpop.f32.mrb[0].mxu0
    %1683 = vdwg.mxu0
    %vm1684 = vcmask 261120
    %v1685 = vsel %vm1684, %v1676, -inf
    %1686 = vmax.xlane.f32.xlu0 %v1685
    %v1687 = vpop.xlane.xlu0 %1686
    %v1688 = vsel %vm1684, %v1681, -inf
    %1689 = vmax.xlane.f32.xlu0 %v1688
    %v1690 = vpop.xlane.xlu0 %1689
    %v1691 = vsub.f32 %v1676, %v1687
    %v1692 = vsub.f32 %v1681, %v1690
    %v1693 = vmul.f32 %v1691, 1.442695
    %v1694 = vpow.pop %v1693
    %v1695 = vmul.f32 %v1692, 1.442695
    %v1696 = vpow.pop %v1695
    %v1697 = vsel %vm1684, %v1694, 0.0
    %1698 = vadd.xlane.f32.xlu0 %v1697
    %v1699 = vpop.xlane.xlu0 %1698
    %v1700 = vsel %vm1684, %v1696, 0.0
    %1701 = vadd.xlane.f32.xlu0 %v1700
    %v1702 = vpop.xlane.xlu0 %1701
    %v1703 = vrcp.pop %v1699
    %v1704 = vrcp.pop %v1702
    %v1705 = vmul.f32 %v1694, %v1703
    %v1706 = vmul.f32 %v1696, %v1704
    %1707 = vmatprep.subr.mxu0 0.0
    %1708 = vmatpush1.msra.mxu0 %v1505
    %1709 = vmatprep.subr.mxu0 0.0
    %1710 = vmatpush1.msra.mxu0 %v1506
    %1711 = vmatprep.subr.mxu0 0.0
    %1712 = vmatpush1.msra.mxu0 %v1507
    %1713 = vmatprep.subr.mxu0 0.0
    %1714 = vmatpush1.msra.mxu0 %v1508
    %1715 = vmatprep.subr.mxu0 0.0
    %1716 = vmatpush1.msra.mxu0 %v1509
    %1717 = vmatprep.subr.mxu0 0.0
    %1718 = vmatpush1.msra.mxu0 0.0
    %1719 = vmatprep.subr.mxu0 0.0
    %1720 = vmatpush1.msra.mxu0 0.0
    %1721 = vmatprep.subr.mxu0 0.0
    %1722 = vmatpush1.msra.mxu0 0.0
    %1723 = vmatprep.subr.mxu0 0.0
    %1724 = vmatpush1.msra.mxu0 0.0
    %1725 = vmatprep.subr.mxu0 0.0
    %1726 = vmatpush1.msra.mxu0 0.0
    %1727 = vmatprep.subr.mxu0 0.0
    %1728 = vmatpush1.msra.mxu0 0.0
    %1729 = vmatprep.subr.mxu0 0.0
    %1730 = vmatpush1.msra.mxu0 0.0
    %1731 = vmatprep.subr.mxu0 0.0
    %1732 = vmatpush1.msra.mxu0 0.0
    %1733 = vmatprep.subr.mxu0 0.0
    %1734 = vmatpush1.msra.mxu0 0.0
    %1735 = vmatprep.subr.mxu0 0.0
    %1736 = vmatpush1.msra.mxu0 0.0
    %1737 = vmatprep.subr.mxu0 0.0
    %1738 = vmatpush1.msra.mxu0 0.0
    %1739 = vmatprep.subr.mxu0 0.0
    %1740 = vmatpush1.msra.mxu0 0.0
    %1741 = vmatprep.subr.mxu0 0.0
    %1742 = vmatpush1.msra.mxu0 0.0
    %1743 = vmatprep.subr.mxu0 0.0
    %1744 = vmatpush1.msra.mxu0 0.0
    %1745 = vmatprep.subr.mxu0 0.0
    %1746 = vmatpush1.msra.mxu0 0.0
    %1747 = vmatprep.subr.mxu0 0.0
    %1748 = vmatpush1.msra.mxu0 0.0
    %1749 = vmatprep.subr.mxu0 0.0
    %1750 = vmatpush1.msra.mxu0 0.0
    %1751 = vmatprep.subr.mxu0 0.0
    %1752 = vmatpush1.msra.mxu0 0.0
    %1753 = vmatprep.subr.mxu0 0.0
    %1754 = vmatpush1.msra.mxu0 0.0
    %1755 = vmatprep.subr.mxu0 0.0
    %1756 = vmatpush1.msra.mxu0 0.0
    %1757 = vmatprep.subr.mxu0 0.0
    %1758 = vmatpush1.msra.mxu0 0.0
    %1759 = vmatprep.subr.mxu0 0.0
    %1760 = vmatpush1.msra.mxu0 0.0
    %1761 = vmatprep.subr.mxu0 0.0
    %1762 = vmatpush1.msra.mxu0 0.0
    %1763 = vmatprep.subr.mxu0 0.0
    %1764 = vmatpush1.msra.mxu0 0.0
    %1765 = vmatprep.subr.mxu0 0.0
    %1766 = vmatpush1.msra.mxu0 0.0
    %1767 = vmatprep.subr.mxu0 0.0
    %1768 = vmatpush1.msra.mxu0 0.0
    %1769 = vmatprep.subr.mxu0 0.0
    %1770 = vmatpush1.msra.mxu0 0.0
    %1771 = vmatprep.mubr.f32.mxu0 0.0
    %1772 = vmatmul.mubr.f32.gmra.mrb[0].mxu0 %v1598
    %v1773 = vpop.f32.mrb[0].mxu0
    %v1774 = vadd.f32 0.0, %v1773
    %v1775 = vpop.f32.mrb[0].mxu0
    %1776 = vmatprep.mubr.f32.mxu0 0.0
    %1777 = vmatmul.mubr.f32.gmra.mrb[0].mxu0 %v1601
    %v1778 = vpop.f32.mrb[0].mxu0
    %v1779 = vadd.f32 0.0, %v1778
    %v1780 = vpop.f32.mrb[0].mxu0
    %1781 = vmatprep.mubr.f32.mxu0 0.0
    %1782 = vmatmul.mubr.f32.gmra.mrb[0].mxu0 %v1604
    %v1783 = vpop.f32.mrb[0].mxu0
    %v1784 = vadd.f32 0.0, %v1783
    %v1785 = vpop.f32.mrb[0].mxu0
    %1786 = vmatprep.mubr.f32.mxu0 0.0
    %1787 = vmatmul.mubr.f32.gmra.mrb[0].mxu0 %v1607
    %v1788 = vpop.f32.mrb[0].mxu0
    %v1789 = vadd.f32 0.0, %v1788
    %v1790 = vpop.f32.mrb[0].mxu0
    %1791 = vdwg.mxu0
    %v1792 = vld [vmem:[%s3 + $0x168] sm:$0xff]
    %v1793 = vld [vmem:[%s3 + $0x170] sm:$0xff]
    %v1794 = vld [vmem:[%s3 + $0x178] sm:$0xff]
    %v1795 = vld [vmem:[%s3 + $0x180] sm:$0xff]
    %v1796 = vld [vmem:[%s3 + $0x188] sm:$0xff]
    %v1797 = vld [vmem:[%s3 + $0x208] sm:$0xff]
    %v1798 = vld [vmem:[%s3 + $0x210] sm:$0xff]
    %v1799 = vld [vmem:[%s3 + $0x218] sm:$0xff]
    %v1800 = vld [vmem:[%s3 + $0x220] sm:$0xff]
    %v1801 = vld [vmem:[%s3 + $0x228] sm:$0xff]
    %1802 = vmatprep.subr.mxu0 0.0
    %1803 = vmatpush1.msra.mxu0 %v1792
    %1804 = vmatprep.subr.mxu0 0.0
    %1805 = vmatpush1.msra.mxu0 %v1793
    %1806 = vmatprep.subr.mxu0 0.0
    %1807 = vmatpush1.msra.mxu0 %v1794
    %1808 = vmatprep.subr.mxu0 0.0
    %1809 = vmatpush1.msra.mxu0 %v1795
    %1810 = vmatprep.subr.mxu0 0.0
    %1811 = vmatpush1.msra.mxu0 %v1796
    %1812 = vmatprep.subr.mxu0 0.0
    %1813 = vmatpush1.msra.mxu0 0.0
    %1814 = vmatprep.subr.mxu0 0.0
    %1815 = vmatpush1.msra.mxu0 0.0
    %1816 = vmatprep.subr.mxu0 0.0
    %1817 = vmatpush1.msra.mxu0 0.0
    %1818 = vmatprep.subr.mxu0 0.0
    %1819 = vmatpush1.msra.mxu0 0.0
    %1820 = vmatprep.subr.mxu0 0.0
    %1821 = vmatpush1.msra.mxu0 0.0
    %1822 = vmatprep.subr.mxu0 0.0
    %1823 = vmatpush1.msra.mxu0 0.0
    %1824 = vmatprep.subr.mxu0 0.0
    %1825 = vmatpush1.msra.mxu0 0.0
    %1826 = vmatprep.subr.mxu0 0.0
    %1827 = vmatpush1.msra.mxu0 0.0
    %1828 = vmatprep.subr.mxu0 0.0
    %1829 = vmatpush1.msra.mxu0 0.0
    %1830 = vmatprep.subr.mxu0 0.0
    %1831 = vmatpush1.msra.mxu0 0.0
    %1832 = vmatprep.subr.mxu0 0.0
    %1833 = vmatpush1.msra.mxu0 0.0
    %1834 = vmatprep.subr.mxu0 0.0
    %1835 = vmatpush1.msra.mxu0 0.0
    %1836 = vmatprep.subr.mxu0 0.0
    %1837 = vmatpush1.msra.mxu0 0.0
    %1838 = vmatprep.subr.mxu0 0.0
    %1839 = vmatpush1.msra.mxu0 0.0
    %1840 = vmatprep.subr.mxu0 0.0
    %1841 = vmatpush1.msra.mxu0 0.0
    %1842 = vmatprep.subr.mxu0 0.0
    %1843 = vmatpush1.msra.mxu0 0.0
    %1844 = vmatprep.subr.mxu0 0.0
    %1845 = vmatpush1.msra.mxu0 0.0
    %1846 = vmatprep.subr.mxu0 0.0
    %1847 = vmatpush1.msra.mxu0 0.0
    %1848 = vmatprep.subr.mxu0 0.0
    %1849 = vmatpush1.msra.mxu0 0.0
    %1850 = vmatprep.subr.mxu0 0.0
    %1851 = vmatpush1.msra.mxu0 0.0
    %1852 = vmatprep.subr.mxu0 0.0
    %1853 = vmatpush1.msra.mxu0 0.0
    %1854 = vmatprep.subr.mxu0 0.0
    %1855 = vmatpush1.msra.mxu0 0.0
    %1856 = vmatprep.subr.mxu0 0.0
    %1857 = vmatpush1.msra.mxu0 0.0
    %1858 = vmatprep.subr.mxu0 0.0
    %1859 = vmatpush1.msra.mxu0 0.0
    %1860 = vmatprep.subr.mxu0 0.0
    %1861 = vmatpush1.msra.mxu0 0.0
    %1862 = vmatprep.subr.mxu0 0.0
    %1863 = vmatpush1.msra.mxu0 0.0
    %1864 = vmatprep.subr.mxu0 0.0
    %1865 = vmatpush1.msra.mxu0 0.0
    %1866 = vmatprep.mubr.f32.mxu0 0.0
    %1867 = vmatmul.mubr.f32.gmra.mrb[0].mxu0 %v1511
    %v1868 = vpop.f32.mrb[0].mxu0
    %v1869 = vadd.f32 0.0, %v1868
    %v1870 = vpop.f32.mrb[0].mxu0
    %1871 = vmatprep.mubr.f32.mxu0 0.0
    %1872 = vmatmul.mubr.f32.gmra.mrb[0].mxu0 %v1514
    %v1873 = vpop.f32.mrb[0].mxu0
    %v1874 = vadd.f32 0.0, %v1873
    %v1875 = vpop.f32.mrb[0].mxu0
    %1876 = vdwg.mxu0
    %v1878 = vsel %vm36, %v1869, 0
    %v1881 = vsel %vm36, %v1874, 0
    %1883 = vmatprep.subr.mxu0 0.0
    %1884 = vmatpush1.xpose.msra.mxu0 %v1598
    %1885 = vmatprep.subr.mxu0 0.0
    %1886 = vmatpush1.xpose.msra.mxu0 %v1601
    %1887 = vmatprep.subr.mxu0 0.0
    %1888 = vmatpush1.xpose.msra.mxu0 %v1604
    %1889 = vmatprep.subr.mxu0 0.0
    %1890 = vmatpush1.xpose.msra.mxu0 %v1607
    %1891 = vmatprep.subr.mxu0 0.0
    %1892 = vmatpush1.xpose.msra.mxu0 0.0
    %1893 = vmatprep.subr.mxu0 0.0
    %1894 = vmatpush1.xpose.msra.mxu0 0.0
    %1895 = vmatprep.subr.mxu0 0.0
    %1896 = vmatpush1.xpose.msra.mxu0 0.0
    %1897 = vmatprep.subr.mxu0 0.0
    %1898 = vmatpush1.xpose.msra.mxu0 0.0
    %1899 = vmatprep.subr.mxu0 0.0
    %1900 = vmatpush1.xpose.msra.mxu0 0.0
    %1901 = vmatprep.subr.mxu0 0.0
    %1902 = vmatpush1.xpose.msra.mxu0 0.0
    %1903 = vmatprep.subr.mxu0 0.0
    %1904 = vmatpush1.xpose.msra.mxu0 0.0
    %1905 = vmatprep.subr.mxu0 0.0
    %1906 = vmatpush1.xpose.msra.mxu0 0.0
    %1907 = vmatprep.subr.mxu0 0.0
    %1908 = vmatpush1.xpose.msra.mxu0 0.0
    %1909 = vmatprep.subr.mxu0 0.0
    %1910 = vmatpush1.xpose.msra.mxu0 0.0
    %1911 = vmatprep.subr.mxu0 0.0
    %1912 = vmatpush1.xpose.msra.mxu0 0.0
    %1913 = vmatprep.subr.mxu0 0.0
    %1914 = vmatpush1.xpose.msra.mxu0 0.0
    %1915 = vmatprep.subr.mxu0 0.0
    %1916 = vmatpush1.xpose.msra.mxu0 0.0
    %1917 = vmatprep.subr.mxu0 0.0
    %1918 = vmatpush1.xpose.msra.mxu0 0.0
    %1919 = vmatprep.subr.mxu0 0.0
    %1920 = vmatpush1.xpose.msra.mxu0 0.0
    %1921 = vmatprep.subr.mxu0 0.0
    %1922 = vmatpush1.xpose.msra.mxu0 0.0
    %1923 = vmatprep.subr.mxu0 0.0
    %1924 = vmatpush1.xpose.msra.mxu0 0.0
    %1925 = vmatprep.subr.mxu0 0.0
    %1926 = vmatpush1.xpose.msra.mxu0 0.0
    %1927 = vmatprep.subr.mxu0 0.0
    %1928 = vmatpush1.xpose.msra.mxu0 0.0
    %1929 = vmatprep.subr.mxu0 0.0
    %1930 = vmatpush1.xpose.msra.mxu0 0.0
    %1931 = vmatprep.subr.mxu0 0.0
    %1932 = vmatpush1.xpose.msra.mxu0 0.0
    %1933 = vmatprep.subr.mxu0 0.0
    %1934 = vmatpush1.xpose.msra.mxu0 0.0
    %1935 = vmatprep.subr.mxu0 0.0
    %1936 = vmatpush1.xpose.msra.mxu0 0.0
    %1937 = vmatprep.subr.mxu0 0.0
    %1938 = vmatpush1.xpose.msra.mxu0 0.0
    %1939 = vmatprep.subr.mxu0 0.0
    %1940 = vmatpush1.xpose.msra.mxu0 0.0
    %1941 = vmatprep.subr.mxu0 0.0
    %1942 = vmatpush1.xpose.msra.mxu0 0.0
    %1943 = vmatprep.subr.mxu0 0.0
    %1944 = vmatpush1.xpose.msra.mxu0 0.0
    %1945 = vmatprep.subr.mxu0 0.0
    %1946 = vmatpush1.xpose.msra.mxu0 0.0
    %1947 = vmatprep.mubr.f32.mxu0 0.0
    %1948 = vmatmul.mubr.f32.gmra.mrb[0].mxu0 %v1878
    %v1949 = vpop.f32.mrb[0].mxu0
    %v1950 = vadd.f32 %v34, %v1949
    %v1951 = vpop.f32.mrb[0].mxu0
    %1952 = vmatprep.mubr.f32.mxu0 0.0
    %1953 = vmatmul.mubr.f32.gmra.mrb[0].mxu0 %v1881
    %v1954 = vpop.f32.mrb[0].mxu0
    %v1955 = vadd.f32 %v35, %v1954
    %v1956 = vpop.f32.mrb[0].mxu0
    %1957 = vdwg.mxu0
    %v1958 = vsel %vm1684, %v1950, -inf
    %1959 = vmax.xlane.f32.xlu0 %v1958
    %v1960 = vpop.xlane.xlu0 %1959
    %v1961 = vsel %vm1684, %v1955, -inf
    %1962 = vmax.xlane.f32.xlu0 %v1961
    %v1963 = vpop.xlane.xlu0 %1962
    %v1964 = vsub.f32 %v1950, %v1960
    %v1965 = vsub.f32 %v1955, %v1963
    %v1966 = vmul.f32 %v1964, 1.442695
    %v1967 = vpow.pop %v1966
    %v1968 = vmul.f32 %v1965, 1.442695
    %v1969 = vpow.pop %v1968
    %v1970 = vsel %vm1684, %v1967, 0.0
    %1971 = vadd.xlane.f32.xlu0 %v1970
    %v1972 = vpop.xlane.xlu0 %1971
    %v1973 = vsel %vm1684, %v1969, 0.0
    %1974 = vadd.xlane.f32.xlu0 %v1973
    %v1975 = vpop.xlane.xlu0 %1974
    %v1976 = vrcp.pop %v1972
    %v1977 = vrcp.pop %v1975
    %v1978 = vmul.f32 %v1967, %v1976
    %v1979 = vmul.f32 %v1969, %v1977
    %1980 = vmatprep.subr.mxu0 0.0
    %1981 = vmatpush1.msra.mxu0 %v1797
    %1982 = vmatprep.subr.mxu0 0.0
    %1983 = vmatpush1.msra.mxu0 %v1798
    %1984 = vmatprep.subr.mxu0 0.0
    %1985 = vmatpush1.msra.mxu0 %v1799
    %1986 = vmatprep.subr.mxu0 0.0
    %1987 = vmatpush1.msra.mxu0 %v1800
    %1988 = vmatprep.subr.mxu0 0.0
    %1989 = vmatpush1.msra.mxu0 %v1801
    %1990 = vmatprep.subr.mxu0 0.0
    %1991 = vmatpush1.msra.mxu0 0.0
    %1992 = vmatprep.subr.mxu0 0.0
    %1993 = vmatpush1.msra.mxu0 0.0
    %1994 = vmatprep.subr.mxu0 0.0
    %1995 = vmatpush1.msra.mxu0 0.0
    %1996 = vmatprep.subr.mxu0 0.0
    %1997 = vmatpush1.msra.mxu0 0.0
    %1998 = vmatprep.subr.mxu0 0.0
    %1999 = vmatpush1.msra.mxu0 0.0
    %2000 = vmatprep.subr.mxu0 0.0
    %2001 = vmatpush1.msra.mxu0 0.0
    %2002 = vmatprep.subr.mxu0 0.0
    %2003 = vmatpush1.msra.mxu0 0.0
    %2004 = vmatprep.subr.mxu0 0.0
    %2005 = vmatpush1.msra.mxu0 0.0
    %2006 = vmatprep.subr.mxu0 0.0
    %2007 = vmatpush1.msra.mxu0 0.0
    %2008 = vmatprep.subr.mxu0 0.0
    %2009 = vmatpush1.msra.mxu0 0.0
    %2010 = vmatprep.subr.mxu0 0.0
    %2011 = vmatpush1.msra.mxu0 0.0
    %2012 = vmatprep.subr.mxu0 0.0
    %2013 = vmatpush1.msra.mxu0 0.0
    %2014 = vmatprep.subr.mxu0 0.0
    %2015 = vmatpush1.msra.mxu0 0.0
    %2016 = vmatprep.subr.mxu0 0.0
    %2017 = vmatpush1.msra.mxu0 0.0
    %2018 = vmatprep.subr.mxu0 0.0
    %2019 = vmatpush1.msra.mxu0 0.0
    %2020 = vmatprep.subr.mxu0 0.0
    %2021 = vmatpush1.msra.mxu0 0.0
    %2022 = vmatprep.subr.mxu0 0.0
    %2023 = vmatpush1.msra.mxu0 0.0
    %2024 = vmatprep.subr.mxu0 0.0
    %2025 = vmatpush1.msra.mxu0 0.0
    %2026 = vmatprep.subr.mxu0 0.0
    %2027 = vmatpush1.msra.mxu0 0.0
    %2028 = vmatprep.subr.mxu0 0.0
    %2029 = vmatpush1.msra.mxu0 0.0
    %2030 = vmatprep.subr.mxu0 0.0
    %2031 = vmatpush1.msra.mxu0 0.0
    %2032 = vmatprep.subr.mxu0 0.0
    %2033 = vmatpush1.msra.mxu0 0.0
    %2034 = vmatprep.subr.mxu0 0.0
    %2035 = vmatpush1.msra.mxu0 0.0
    %2036 = vmatprep.subr.mxu0 0.0
    %2037 = vmatpush1.msra.mxu0 0.0
    %2038 = vmatprep.subr.mxu0 0.0
    %2039 = vmatpush1.msra.mxu0 0.0
    %2040 = vmatprep.subr.mxu0 0.0
    %2041 = vmatpush1.msra.mxu0 0.0
    %2042 = vmatprep.subr.mxu0 0.0
    %2043 = vmatpush1.msra.mxu0 0.0
    %2044 = vmatprep.mubr.f32.mxu0 0.0
    %2045 = vmatmul.mubr.f32.gmra.mrb[0].mxu0 %v1598
    %v2046 = vpop.f32.mrb[0].mxu0
    %v2047 = vadd.f32 0.0, %v2046
    %v2048 = vpop.f32.mrb[0].mxu0
    %2049 = vmatprep.mubr.f32.mxu0 0.0
    %2050 = vmatmul.mubr.f32.gmra.mrb[0].mxu0 %v1601
    %v2051 = vpop.f32.mrb[0].mxu0
    %v2052 = vadd.f32 0.0, %v2051
    %v2053 = vpop.f32.mrb[0].mxu0
    %2054 = vmatprep.mubr.f32.mxu0 0.0
    %2055 = vmatmul.mubr.f32.gmra.mrb[0].mxu0 %v1604
    %v2056 = vpop.f32.mrb[0].mxu0
    %v2057 = vadd.f32 0.0, %v2056
    %v2058 = vpop.f32.mrb[0].mxu0
    %2059 = vmatprep.mubr.f32.mxu0 0.0
    %2060 = vmatmul.mubr.f32.gmra.mrb[0].mxu0 %v1607
    %v2061 = vpop.f32.mrb[0].mxu0
    %v2062 = vadd.f32 0.0, %v2061
    %v2063 = vpop.f32.mrb[0].mxu0
    %2064 = vdwg.mxu0
    %v2066 = vsel %vm1684, %v1978, 0
    %v2069 = vsel %vm1684, %v1979, 0
    %2071 = vmatprep.subr.mxu0 0.0
    %2072 = vmatpush1.msra.mxu0 %v2047
    %2073 = vmatprep.subr.mxu0 0.0
    %2074 = vmatpush1.msra.mxu0 %v2052
    %2075 = vmatprep.subr.mxu0 0.0
    %2076 = vmatpush1.msra.mxu0 %v2057
    %2077 = vmatprep.subr.mxu0 0.0
    %2078 = vmatpush1.msra.mxu0 %v2062
    %2079 = vmatprep.subr.mxu0 0.0
    %2080 = vmatpush1.msra.mxu0 0.0
    %2081 = vmatprep.subr.mxu0 0.0
    %2082 = vmatpush1.msra.mxu0 0.0
    %2083 = vmatprep.subr.mxu0 0.0
    %2084 = vmatpush1.msra.mxu0 0.0
    %2085 = vmatprep.subr.mxu0 0.0
    %2086 = vmatpush1.msra.mxu0 0.0
    %2087 = vmatprep.subr.mxu0 0.0
    %2088 = vmatpush1.msra.mxu0 0.0
    %2089 = vmatprep.subr.mxu0 0.0
    %2090 = vmatpush1.msra.mxu0 0.0
    %2091 = vmatprep.subr.mxu0 0.0
    %2092 = vmatpush1.msra.mxu0 0.0
    %2093 = vmatprep.subr.mxu0 0.0
    %2094 = vmatpush1.msra.mxu0 0.0
    %2095 = vmatprep.subr.mxu0 0.0
    %2096 = vmatpush1.msra.mxu0 0.0
    %2097 = vmatprep.subr.mxu0 0.0
    %2098 = vmatpush1.msra.mxu0 0.0
    %2099 = vmatprep.subr.mxu0 0.0
    %2100 = vmatpush1.msra.mxu0 0.0
    %2101 = vmatprep.subr.mxu0 0.0
    %2102 = vmatpush1.msra.mxu0 0.0
    %2103 = vmatprep.subr.mxu0 0.0
    %2104 = vmatpush1.msra.mxu0 0.0
    %2105 = vmatprep.subr.mxu0 0.0
    %2106 = vmatpush1.msra.mxu0 0.0
    %2107 = vmatprep.subr.mxu0 0.0
    %2108 = vmatpush1.msra.mxu0 0.0
    %2109 = vmatprep.subr.mxu0 0.0
    %2110 = vmatpush1.msra.mxu0 0.0
    %2111 = vmatprep.subr.mxu0 0.0
    %2112 = vmatpush1.msra.mxu0 0.0
    %2113 = vmatprep.subr.mxu0 0.0
    %2114 = vmatpush1.msra.mxu0 0.0
    %2115 = vmatprep.subr.mxu0 0.0
    %2116 = vmatpush1.msra.mxu0 0.0
    %2117 = vmatprep.subr.mxu0 0.0
    %2118 = vmatpush1.msra.mxu0 0.0
    %2119 = vmatprep.subr.mxu0 0.0
    %2120 = vmatpush1.msra.mxu0 0.0
    %2121 = vmatprep.subr.mxu0 0.0
    %2122 = vmatpush1.msra.mxu0 0.0
    %2123 = vmatprep.subr.mxu0 0.0
    %2124 = vmatpush1.msra.mxu0 0.0
    %2125 = vmatprep.subr.mxu0 0.0
    %2126 = vmatpush1.msra.mxu0 0.0
    %2127 = vmatprep.subr.mxu0 0.0
    %2128 = vmatpush1.msra.mxu0 0.0
    %2129 = vmatprep.subr.mxu0 0.0
    %2130 = vmatpush1.msra.mxu0 0.0
    %2131 = vmatprep.subr.mxu0 0.0
    %2132 = vmatpush1.msra.mxu0 0.0
    %2133 = vmatprep.subr.mxu0 0.0
    %2134 = vmatpush1.msra.mxu0 0.0
    %2135 = vmatprep.mubr.f32.mxu0 0.0
    %2136 = vmatmul.mubr.f32.gmra.mrb[0].mxu0 %v2066
    %v2137 = vpop.f32.mrb[0].mxu0
    %v2138 = vadd.f32 0.0, %v2137
    %v2139 = vpop.f32.mrb[0].mxu0
    %2140 = vmatprep.mubr.f32.mxu0 0.0
    %2141 = vmatmul.mubr.f32.gmra.mrb[0].mxu0 %v2069
    %v2142 = vpop.f32.mrb[0].mxu0
    %v2143 = vadd.f32 0.0, %v2142
    %v2144 = vpop.f32.mrb[0].mxu0
    %2145 = vdwg.mxu0
    %v2147 = vsel %vm1684, %v1705, 0
    %v2150 = vsel %vm1684, %v1706, 0
    %2152 = vmatprep.subr.mxu0 0.0
    %2153 = vmatpush1.msra.mxu0 %v1774
    %2154 = vmatprep.subr.mxu0 0.0
    %2155 = vmatpush1.msra.mxu0 %v1779
    %2156 = vmatprep.subr.mxu0 0.0
    %2157 = vmatpush1.msra.mxu0 %v1784
    %2158 = vmatprep.subr.mxu0 0.0
    %2159 = vmatpush1.msra.mxu0 %v1789
    %2160 = vmatprep.subr.mxu0 0.0
    %2161 = vmatpush1.msra.mxu0 0.0
    %2162 = vmatprep.subr.mxu0 0.0
    %2163 = vmatpush1.msra.mxu0 0.0
    %2164 = vmatprep.subr.mxu0 0.0
    %2165 = vmatpush1.msra.mxu0 0.0
    %2166 = vmatprep.subr.mxu0 0.0
    %2167 = vmatpush1.msra.mxu0 0.0
    %2168 = vmatprep.subr.mxu0 0.0
    %2169 = vmatpush1.msra.mxu0 0.0
    %2170 = vmatprep.subr.mxu0 0.0
    %2171 = vmatpush1.msra.mxu0 0.0
    %2172 = vmatprep.subr.mxu0 0.0
    %2173 = vmatpush1.msra.mxu0 0.0
    %2174 = vmatprep.subr.mxu0 0.0
    %2175 = vmatpush1.msra.mxu0 0.0
    %2176 = vmatprep.subr.mxu0 0.0
    %2177 = vmatpush1.msra.mxu0 0.0
    %2178 = vmatprep.subr.mxu0 0.0
    %2179 = vmatpush1.msra.mxu0 0.0
    %2180 = vmatprep.subr.mxu0 0.0
    %2181 = vmatpush1.msra.mxu0 0.0
    %2182 = vmatprep.subr.mxu0 0.0
    %2183 = vmatpush1.msra.mxu0 0.0
    %2184 = vmatprep.subr.mxu0 0.0
    %2185 = vmatpush1.msra.mxu0 0.0
    %2186 = vmatprep.subr.mxu0 0.0
    %2187 = vmatpush1.msra.mxu0 0.0
    %2188 = vmatprep.subr.mxu0 0.0
    %2189 = vmatpush1.msra.mxu0 0.0
    %2190 = vmatprep.subr.mxu0 0.0
    %2191 = vmatpush1.msra.mxu0 0.0
    %2192 = vmatprep.subr.mxu0 0.0
    %2193 = vmatpush1.msra.mxu0 0.0
    %2194 = vmatprep.subr.mxu0 0.0
    %2195 = vmatpush1.msra.mxu0 0.0
    %2196 = vmatprep.subr.mxu0 0.0
    %2197 = vmatpush1.msra.mxu0 0.0
    %2198 = vmatprep.subr.mxu0 0.0
    %2199 = vmatpush1.msra.mxu0 0.0
    %2200 = vmatprep.subr.mxu0 0.0
    %2201 = vmatpush1.msra.mxu0 0.0
    %2202 = vmatprep.subr.mxu0 0.0
    %2203 = vmatpush1.msra.mxu0 0.0
    %2204 = vmatprep.subr.mxu0 0.0
    %2205 = vmatpush1.msra.mxu0 0.0
    %2206 = vmatprep.subr.mxu0 0.0
    %2207 = vmatpush1.msra.mxu0 0.0
    %2208 = vmatprep.subr.mxu0 0.0
    %2209 = vmatpush1.msra.mxu0 0.0
    %2210 = vmatprep.subr.mxu0 0.0
    %2211 = vmatpush1.msra.mxu0 0.0
    %2212 = vmatprep.subr.mxu0 0.0
    %2213 = vmatpush1.msra.mxu0 0.0
    %2214 = vmatprep.subr.mxu0 0.0
    %2215 = vmatpush1.msra.mxu0 0.0
    %2216 = vmatprep.mubr.f32.mxu0 0.0
    %2217 = vmatmul.mubr.f32.gmra.mrb[0].mxu0 %v2147
    %v2218 = vpop.f32.mrb[0].mxu0
    %v2219 = vadd.f32 %v2138, %v2218
    %v2220 = vpop.f32.mrb[0].mxu0
    %2221 = vmatprep.mubr.f32.mxu0 0.0
    %2222 = vmatmul.mubr.f32.gmra.mrb[0].mxu0 %v2150
    %v2223 = vpop.f32.mrb[0].mxu0
    %v2224 = vadd.f32 %v2143, %v2223
    %v2225 = vpop.f32.mrb[0].mxu0
    %2226 = vdwg.mxu0
    %v2227 = vld [vmem:[%s3 + $0x190] sm:$0xff]
    %v2228 = vld [vmem:[%s3 + $0x198] sm:$0xff]
    %v2229 = vld [vmem:[%s3 + $0x1a0] sm:$0xff]
    %v2230 = vld [vmem:[%s3 + $0x1a8] sm:$0xff]
    %v2231 = vld [vmem:[%s3 + $0x1b0] sm:$0xff]
    %v2232 = vld [vmem:[%s3 + $0x230] sm:$0xff]
    %v2233 = vld [vmem:[%s3 + $0x238] sm:$0xff]
    %v2234 = vld [vmem:[%s3 + $0x240] sm:$0xff]
    %v2235 = vld [vmem:[%s3 + $0x248] sm:$0xff]
    %v2236 = vld [vmem:[%s3 + $0x250] sm:$0xff]
    %2237 = vmatprep.subr.mxu0 0.0
    %2238 = vmatpush1.msra.mxu0 %v2227
    %2239 = vmatprep.subr.mxu0 0.0
    %2240 = vmatpush1.msra.mxu0 %v2228
    %2241 = vmatprep.subr.mxu0 0.0
    %2242 = vmatpush1.msra.mxu0 %v2229
    %2243 = vmatprep.subr.mxu0 0.0
    %2244 = vmatpush1.msra.mxu0 %v2230
    %2245 = vmatprep.subr.mxu0 0.0
    %2246 = vmatpush1.msra.mxu0 %v2231
    %2247 = vmatprep.subr.mxu0 0.0
    %2248 = vmatpush1.msra.mxu0 0.0
    %2249 = vmatprep.subr.mxu0 0.0
    %2250 = vmatpush1.msra.mxu0 0.0
    %2251 = vmatprep.subr.mxu0 0.0
    %2252 = vmatpush1.msra.mxu0 0.0
    %2253 = vmatprep.subr.mxu0 0.0
    %2254 = vmatpush1.msra.mxu0 0.0
    %2255 = vmatprep.subr.mxu0 0.0
    %2256 = vmatpush1.msra.mxu0 0.0
    %2257 = vmatprep.subr.mxu0 0.0
    %2258 = vmatpush1.msra.mxu0 0.0
    %2259 = vmatprep.subr.mxu0 0.0
    %2260 = vmatpush1.msra.mxu0 0.0
    %2261 = vmatprep.subr.mxu0 0.0
    %2262 = vmatpush1.msra.mxu0 0.0
    %2263 = vmatprep.subr.mxu0 0.0
    %2264 = vmatpush1.msra.mxu0 0.0
    %2265 = vmatprep.subr.mxu0 0.0
    %2266 = vmatpush1.msra.mxu0 0.0
    %2267 = vmatprep.subr.mxu0 0.0
    %2268 = vmatpush1.msra.mxu0 0.0
    %2269 = vmatprep.subr.mxu0 0.0
    %2270 = vmatpush1.msra.mxu0 0.0
    %2271 = vmatprep.subr.mxu0 0.0
    %2272 = vmatpush1.msra.mxu0 0.0
    %2273 = vmatprep.subr.mxu0 0.0
    %2274 = vmatpush1.msra.mxu0 0.0
    %2275 = vmatprep.subr.mxu0 0.0
    %2276 = vmatpush1.msra.mxu0 0.0
    %2277 = vmatprep.subr.mxu0 0.0
    %2278 = vmatpush1.msra.mxu0 0.0
    %2279 = vmatprep.subr.mxu0 0.0
    %2280 = vmatpush1.msra.mxu0 0.0
    %2281 = vmatprep.subr.mxu0 0.0
    %2282 = vmatpush1.msra.mxu0 0.0
    %2283 = vmatprep.subr.mxu0 0.0
    %2284 = vmatpush1.msra.mxu0 0.0
    %2285 = vmatprep.subr.mxu0 0.0
    %2286 = vmatpush1.msra.mxu0 0.0
    %2287 = vmatprep.subr.mxu0 0.0
    %2288 = vmatpush1.msra.mxu0 0.0
    %2289 = vmatprep.subr.mxu0 0.0
    %2290 = vmatpush1.msra.mxu0 0.0
    %2291 = vmatprep.subr.mxu0 0.0
    %2292 = vmatpush1.msra.mxu0 0.0
    %2293 = vmatprep.subr.mxu0 0.0
    %2294 = vmatpush1.msra.mxu0 0.0
    %2295 = vmatprep.subr.mxu0 0.0
    %2296 = vmatpush1.msra.mxu0 0.0
    %2297 = vmatprep.subr.mxu0 0.0
    %2298 = vmatpush1.msra.mxu0 0.0
    %2299 = vmatprep.subr.mxu0 0.0
    %2300 = vmatpush1.msra.mxu0 0.0
    %2301 = vmatprep.mubr.f32.mxu0 0.0
    %2302 = vmatmul.mubr.f32.gmra.mrb[0].mxu0 %v1511
    %v2303 = vpop.f32.mrb[0].mxu0
    %v2304 = vadd.f32 0.0, %v2303
    %v2305 = vpop.f32.mrb[0].mxu0
    %2306 = vmatprep.mubr.f32.mxu0 0.0
    %2307 = vmatmul.mubr.f32.gmra.mrb[0].mxu0 %v1514
    %v2308 = vpop.f32.mrb[0].mxu0
    %v2309 = vadd.f32 0.0, %v2308
    %v2310 = vpop.f32.mrb[0].mxu0
    %2311 = vdwg.mxu0
    %v2313 = vsel %vm36, %v2304, 0
    %v2316 = vsel %vm36, %v2309, 0
    %2318 = vmatprep.subr.mxu0 0.0
    %2319 = vmatpush1.xpose.msra.mxu0 %v1598
    %2320 = vmatprep.subr.mxu0 0.0
    %2321 = vmatpush1.xpose.msra.mxu0 %v1601
    %2322 = vmatprep.subr.mxu0 0.0
    %2323 = vmatpush1.xpose.msra.mxu0 %v1604
    %2324 = vmatprep.subr.mxu0 0.0
    %2325 = vmatpush1.xpose.msra.mxu0 %v1607
    %2326 = vmatprep.subr.mxu0 0.0
    %2327 = vmatpush1.xpose.msra.mxu0 0.0
    %2328 = vmatprep.subr.mxu0 0.0
    %2329 = vmatpush1.xpose.msra.mxu0 0.0
    %2330 = vmatprep.subr.mxu0 0.0
    %2331 = vmatpush1.xpose.msra.mxu0 0.0
    %2332 = vmatprep.subr.mxu0 0.0
    %2333 = vmatpush1.xpose.msra.mxu0 0.0
    %2334 = vmatprep.subr.mxu0 0.0
    %2335 = vmatpush1.xpose.msra.mxu0 0.0
    %2336 = vmatprep.subr.mxu0 0.0
    %2337 = vmatpush1.xpose.msra.mxu0 0.0
    %2338 = vmatprep.subr.mxu0 0.0
    %2339 = vmatpush1.xpose.msra.mxu0 0.0
    %2340 = vmatprep.subr.mxu0 0.0
    %2341 = vmatpush1.xpose.msra.mxu0 0.0
    %2342 = vmatprep.subr.mxu0 0.0
    %2343 = vmatpush1.xpose.msra.mxu0 0.0
    %2344 = vmatprep.subr.mxu0 0.0
    %2345 = vmatpush1.xpose.msra.mxu0 0.0
    %2346 = vmatprep.subr.mxu0 0.0
    %2347 = vmatpush1.xpose.msra.mxu0 0.0
    %2348 = vmatprep.subr.mxu0 0.0
    %2349 = vmatpush1.xpose.msra.mxu0 0.0
    %2350 = vmatprep.subr.mxu0 0.0
    %2351 = vmatpush1.xpose.msra.mxu0 0.0
    %2352 = vmatprep.subr.mxu0 0.0
    %2353 = vmatpush1.xpose.msra.mxu0 0.0
    %2354 = vmatprep.subr.mxu0 0.0
    %2355 = vmatpush1.xpose.msra.mxu0 0.0
    %2356 = vmatprep.subr.mxu0 0.0
    %2357 = vmatpush1.xpose.msra.mxu0 0.0
    %2358 = vmatprep.subr.mxu0 0.0
    %2359 = vmatpush1.xpose.msra.mxu0 0.0
    %2360 = vmatprep.subr.mxu0 0.0
    %2361 = vmatpush1.xpose.msra.mxu0 0.0
    %2362 = vmatprep.subr.mxu0 0.0
    %2363 = vmatpush1.xpose.msra.mxu0 0.0
    %2364 = vmatprep.subr.mxu0 0.0
    %2365 = vmatpush1.xpose.msra.mxu0 0.0
    %2366 = vmatprep.subr.mxu0 0.0
    %2367 = vmatpush1.xpose.msra.mxu0 0.0
    %2368 = vmatprep.subr.mxu0 0.0
    %2369 = vmatpush1.xpose.msra.mxu0 0.0
    %2370 = vmatprep.subr.mxu0 0.0
    %2371 = vmatpush1.xpose.msra.mxu0 0.0
    %2372 = vmatprep.subr.mxu0 0.0
    %2373 = vmatpush1.xpose.msra.mxu0 0.0
    %2374 = vmatprep.subr.mxu0 0.0
    %2375 = vmatpush1.xpose.msra.mxu0 0.0
    %2376 = vmatprep.subr.mxu0 0.0
    %2377 = vmatpush1.xpose.msra.mxu0 0.0
    %2378 = vmatprep.subr.mxu0 0.0
    %2379 = vmatpush1.xpose.msra.mxu0 0.0
    %2380 = vmatprep.subr.mxu0 0.0
    %2381 = vmatpush1.xpose.msra.mxu0 0.0
    %2382 = vmatprep.mubr.f32.mxu0 0.0
    %2383 = vmatmul.mubr.f32.gmra.mrb[0].mxu0 %v2313
    %v2384 = vpop.f32.mrb[0].mxu0
    %v2385 = vadd.f32 %v34, %v2384
    %v2386 = vpop.f32.mrb[0].mxu0
    %2387 = vmatprep.mubr.f32.mxu0 0.0
    %2388 = vmatmul.mubr.f32.gmra.mrb[0].mxu0 %v2316
    %v2389 = vpop.f32.mrb[0].mxu0
    %v2390 = vadd.f32 %v35, %v2389
    %v2391 = vpop.f32.mrb[0].mxu0
    %2392 = vdwg.mxu0
    %v2393 = vsel %vm1684, %v2385, -inf
    %2394 = vmax.xlane.f32.xlu0 %v2393
    %v2395 = vpop.xlane.xlu0 %2394
    %v2396 = vsel %vm1684, %v2390, -inf
    %2397 = vmax.xlane.f32.xlu0 %v2396
    %v2398 = vpop.xlane.xlu0 %2397
    %v2399 = vsub.f32 %v2385, %v2395
    %v2400 = vsub.f32 %v2390, %v2398
    %v2401 = vmul.f32 %v2399, 1.442695
    %v2402 = vpow.pop %v2401
    %v2403 = vmul.f32 %v2400, 1.442695
    %v2404 = vpow.pop %v2403
    %v2405 = vsel %vm1684, %v2402, 0.0
    %2406 = vadd.xlane.f32.xlu0 %v2405
    %v2407 = vpop.xlane.xlu0 %2406
    %v2408 = vsel %vm1684, %v2404, 0.0
    %2409 = vadd.xlane.f32.xlu0 %v2408
    %v2410 = vpop.xlane.xlu0 %2409
    %v2411 = vrcp.pop %v2407
    %v2412 = vrcp.pop %v2410
    %v2413 = vmul.f32 %v2402, %v2411
    %v2414 = vmul.f32 %v2404, %v2412
    %2415 = vmatprep.subr.mxu0 0.0
    %2416 = vmatpush1.msra.mxu0 %v2232
    %2417 = vmatprep.subr.mxu0 0.0
    %2418 = vmatpush1.msra.mxu0 %v2233
    %2419 = vmatprep.subr.mxu0 0.0
    %2420 = vmatpush1.msra.mxu0 %v2234
    %2421 = vmatprep.subr.mxu0 0.0
    %2422 = vmatpush1.msra.mxu0 %v2235
    %2423 = vmatprep.subr.mxu0 0.0
    %2424 = vmatpush1.msra.mxu0 %v2236
    %2425 = vmatprep.subr.mxu0 0.0
    %2426 = vmatpush1.msra.mxu0 0.0
    %2427 = vmatprep.subr.mxu0 0.0
    %2428 = vmatpush1.msra.mxu0 0.0
    %2429 = vmatprep.subr.mxu0 0.0
    %2430 = vmatpush1.msra.mxu0 0.0
    %2431 = vmatprep.subr.mxu0 0.0
    %2432 = vmatpush1.msra.mxu0 0.0
    %2433 = vmatprep.subr.mxu0 0.0
    %2434 = vmatpush1.msra.mxu0 0.0
    %2435 = vmatprep.subr.mxu0 0.0
    %2436 = vmatpush1.msra.mxu0 0.0
    %2437 = vmatprep.subr.mxu0 0.0
    %2438 = vmatpush1.msra.mxu0 0.0
    %2439 = vmatprep.subr.mxu0 0.0
    %2440 = vmatpush1.msra.mxu0 0.0
    %2441 = vmatprep.subr.mxu0 0.0
    %2442 = vmatpush1.msra.mxu0 0.0
    %2443 = vmatprep.subr.mxu0 0.0
    %2444 = vmatpush1.msra.mxu0 0.0
    %2445 = vmatprep.subr.mxu0 0.0
    %2446 = vmatpush1.msra.mxu0 0.0
    %2447 = vmatprep.subr.mxu0 0.0
    %2448 = vmatpush1.msra.mxu0 0.0
    %2449 = vmatprep.subr.mxu0 0.0
    %2450 = vmatpush1.msra.mxu0 0.0
    %2451 = vmatprep.subr.mxu0 0.0
    %2452 = vmatpush1.msra.mxu0 0.0
    %2453 = vmatprep.subr.mxu0 0.0
    %2454 = vmatpush1.msra.mxu0 0.0
    %2455 = vmatprep.subr.mxu0 0.0
    %2456 = vmatpush1.msra.mxu0 0.0
    %2457 = vmatprep.subr.mxu0 0.0
    %2458 = vmatpush1.msra.mxu0 0.0
    %2459 = vmatprep.subr.mxu0 0.0
    %2460 = vmatpush1.msra.mxu0 0.0
    %2461 = vmatprep.subr.mxu0 0.0
    %2462 = vmatpush1.msra.mxu0 0.0
    %2463 = vmatprep.subr.mxu0 0.0
    %2464 = vmatpush1.msra.mxu0 0.0
    %2465 = vmatprep.subr.mxu0 0.0
    %2466 = vmatpush1.msra.mxu0 0.0
    %2467 = vmatprep.subr.mxu0 0.0
    %2468 = vmatpush1.msra.mxu0 0.0
    %2469 = vmatprep.subr.mxu0 0.0
    %2470 = vmatpush1.msra.mxu0 0.0
    %2471 = vmatprep.subr.mxu0 0.0
    %2472 = vmatpush1.msra.mxu0 0.0
    %2473 = vmatprep.subr.mxu0 0.0
    %2474 = vmatpush1.msra.mxu0 0.0
    %2475 = vmatprep.subr.mxu0 0.0
    %2476 = vmatpush1.msra.mxu0 0.0
    %2477 = vmatprep.subr.mxu0 0.0
    %2478 = vmatpush1.msra.mxu0 0.0
    %2479 = vmatprep.mubr.f32.mxu0 0.0
    %2480 = vmatmul.mubr.f32.gmra.mrb[0].mxu0 %v1598
    %v2481 = vpop.f32.mrb[0].mxu0
    %v2482 = vadd.f32 0.0, %v2481
    %v2483 = vpop.f32.mrb[0].mxu0
    %2484 = vmatprep.mubr.f32.mxu0 0.0
    %2485 = vmatmul.mubr.f32.gmra.mrb[0].mxu0 %v1601
    %v2486 = vpop.f32.mrb[0].mxu0
    %v2487 = vadd.f32 0.0, %v2486
    %v2488 = vpop.f32.mrb[0].mxu0
    %2489 = vmatprep.mubr.f32.mxu0 0.0
    %2490 = vmatmul.mubr.f32.gmra.mrb[0].mxu0 %v1604
    %v2491 = vpop.f32.mrb[0].mxu0
    %v2492 = vadd.f32 0.0, %v2491
    %v2493 = vpop.f32.mrb[0].mxu0
    %2494 = vmatprep.mubr.f32.mxu0 0.0
    %2495 = vmatmul.mubr.f32.gmra.mrb[0].mxu0 %v1607
    %v2496 = vpop.f32.mrb[0].mxu0
    %v2497 = vadd.f32 0.0, %v2496
    %v2498 = vpop.f32.mrb[0].mxu0
    %2499 = vdwg.mxu0
    %v2501 = vsel %vm1684, %v2413, 0
    %v2504 = vsel %vm1684, %v2414, 0
    %2506 = vmatprep.subr.mxu0 0.0
    %2507 = vmatpush1.msra.mxu0 %v2482
    %2508 = vmatprep.subr.mxu0 0.0
    %2509 = vmatpush1.msra.mxu0 %v2487
    %2510 = vmatprep.subr.mxu0 0.0
    %2511 = vmatpush1.msra.mxu0 %v2492
    %2512 = vmatprep.subr.mxu0 0.0
    %2513 = vmatpush1.msra.mxu0 %v2497
    %2514 = vmatprep.subr.mxu0 0.0
    %2515 = vmatpush1.msra.mxu0 0.0
    %2516 = vmatprep.subr.mxu0 0.0
    %2517 = vmatpush1.msra.mxu0 0.0
    %2518 = vmatprep.subr.mxu0 0.0
    %2519 = vmatpush1.msra.mxu0 0.0
    %2520 = vmatprep.subr.mxu0 0.0
    %2521 = vmatpush1.msra.mxu0 0.0
    %2522 = vmatprep.subr.mxu0 0.0
    %2523 = vmatpush1.msra.mxu0 0.0
    %2524 = vmatprep.subr.mxu0 0.0
    %2525 = vmatpush1.msra.mxu0 0.0
    %2526 = vmatprep.subr.mxu0 0.0
    %2527 = vmatpush1.msra.mxu0 0.0
    %2528 = vmatprep.subr.mxu0 0.0
    %2529 = vmatpush1.msra.mxu0 0.0
    %2530 = vmatprep.subr.mxu0 0.0
    %2531 = vmatpush1.msra.mxu0 0.0
    %2532 = vmatprep.subr.mxu0 0.0
    %2533 = vmatpush1.msra.mxu0 0.0
    %2534 = vmatprep.subr.mxu0 0.0
    %2535 = vmatpush1.msra.mxu0 0.0
    %2536 = vmatprep.subr.mxu0 0.0
    %2537 = vmatpush1.msra.mxu0 0.0
    %2538 = vmatprep.subr.mxu0 0.0
    %2539 = vmatpush1.msra.mxu0 0.0
    %2540 = vmatprep.subr.mxu0 0.0
    %2541 = vmatpush1.msra.mxu0 0.0
    %2542 = vmatprep.subr.mxu0 0.0
    %2543 = vmatpush1.msra.mxu0 0.0
    %2544 = vmatprep.subr.mxu0 0.0
    %2545 = vmatpush1.msra.mxu0 0.0
    %2546 = vmatprep.subr.mxu0 0.0
    %2547 = vmatpush1.msra.mxu0 0.0
    %2548 = vmatprep.subr.mxu0 0.0
    %2549 = vmatpush1.msra.mxu0 0.0
    %2550 = vmatprep.subr.mxu0 0.0
    %2551 = vmatpush1.msra.mxu0 0.0
    %2552 = vmatprep.subr.mxu0 0.0
    %2553 = vmatpush1.msra.mxu0 0.0
    %2554 = vmatprep.subr.mxu0 0.0
    %2555 = vmatpush1.msra.mxu0 0.0
    %2556 = vmatprep.subr.mxu0 0.0
    %2557 = vmatpush1.msra.mxu0 0.0
    %2558 = vmatprep.subr.mxu0 0.0
    %2559 = vmatpush1.msra.mxu0 0.0
    %2560 = vmatprep.subr.mxu0 0.0
    %2561 = vmatpush1.msra.mxu0 0.0
    %2562 = vmatprep.subr.mxu0 0.0
    %2563 = vmatpush1.msra.mxu0 0.0
    %2564 = vmatprep.subr.mxu0 0.0
    %2565 = vmatpush1.msra.mxu0 0.0
    %2566 = vmatprep.subr.mxu0 0.0
    %2567 = vmatpush1.msra.mxu0 0.0
    %2568 = vmatprep.subr.mxu0 0.0
    %2569 = vmatpush1.msra.mxu0 0.0
    %2570 = vmatprep.mubr.f32.mxu0 0.0
    %2571 = vmatmul.mubr.f32.gmra.mrb[0].mxu0 %v2501
    %v2572 = vpop.f32.mrb[0].mxu0
    %v2573 = vadd.f32 0.0, %v2572
    %v2574 = vpop.f32.mrb[0].mxu0
    %2575 = vmatprep.mubr.f32.mxu0 0.0
    %2576 = vmatmul.mubr.f32.gmra.mrb[0].mxu0 %v2504
    %v2577 = vpop.f32.mrb[0].mxu0
    %v2578 = vadd.f32 0.0, %v2577
    %v2579 = vpop.f32.mrb[0].mxu0
    %2580 = vdwg.mxu0
    %v2581 = vadd.f32 %v2219, %v2573
    %v2582 = vadd.f32 %v2224, %v2578
    %v2583 = vld [vmem:[%s3 + $0x1b8] sm:$0xff]
    %v2584 = vld [vmem:[%s3 + $0x1c0] sm:$0xff]
    %v2585 = vld [vmem:[%s3 + $0x1c8] sm:$0xff]
    %v2586 = vld [vmem:[%s3 + $0x1d0] sm:$0xff]
    %v2587 = vld [vmem:[%s3 + $0x1d8] sm:$0xff]
    %v2588 = vld [vmem:[%s3 + $0x258] sm:$0xff]
    %v2589 = vld [vmem:[%s3 + $0x260] sm:$0xff]
    %v2590 = vld [vmem:[%s3 + $0x268] sm:$0xff]
    %v2591 = vld [vmem:[%s3 + $0x270] sm:$0xff]
    %v2592 = vld [vmem:[%s3 + $0x278] sm:$0xff]
    %2593 = vmatprep.subr.mxu0 0.0
    %2594 = vmatpush1.msra.mxu0 %v2583
    %2595 = vmatprep.subr.mxu0 0.0
    %2596 = vmatpush1.msra.mxu0 %v2584
    %2597 = vmatprep.subr.mxu0 0.0
    %2598 = vmatpush1.msra.mxu0 %v2585
    %2599 = vmatprep.subr.mxu0 0.0
    %2600 = vmatpush1.msra.mxu0 %v2586
    %2601 = vmatprep.subr.mxu0 0.0
    %2602 = vmatpush1.msra.mxu0 %v2587
    %2603 = vmatprep.subr.mxu0 0.0
    %2604 = vmatpush1.msra.mxu0 0.0
    %2605 = vmatprep.subr.mxu0 0.0
    %2606 = vmatpush1.msra.mxu0 0.0
    %2607 = vmatprep.subr.mxu0 0.0
    %2608 = vmatpush1.msra.mxu0 0.0
    %2609 = vmatprep.subr.mxu0 0.0
    %2610 = vmatpush1.msra.mxu0 0.0
    %2611 = vmatprep.subr.mxu0 0.0
    %2612 = vmatpush1.msra.mxu0 0.0
    %2613 = vmatprep.subr.mxu0 0.0
    %2614 = vmatpush1.msra.mxu0 0.0
    %2615 = vmatprep.subr.mxu0 0.0
    %2616 = vmatpush1.msra.mxu0 0.0
    %2617 = vmatprep.subr.mxu0 0.0
    %2618 = vmatpush1.msra.mxu0 0.0
    %2619 = vmatprep.subr.mxu0 0.0
    %2620 = vmatpush1.msra.mxu0 0.0
    %2621 = vmatprep.subr.mxu0 0.0
    %2622 = vmatpush1.msra.mxu0 0.0
    %2623 = vmatprep.subr.mxu0 0.0
    %2624 = vmatpush1.msra.mxu0 0.0
    %2625 = vmatprep.subr.mxu0 0.0
    %2626 = vmatpush1.msra.mxu0 0.0
    %2627 = vmatprep.subr.mxu0 0.0
    %2628 = vmatpush1.msra.mxu0 0.0
    %2629 = vmatprep.subr.mxu0 0.0
    %2630 = vmatpush1.msra.mxu0 0.0
    %2631 = vmatprep.subr.mxu0 0.0
    %2632 = vmatpush1.msra.mxu0 0.0
    %2633 = vmatprep.subr.mxu0 0.0
    %2634 = vmatpush1.msra.mxu0 0.0
    %2635 = vmatprep.subr.mxu0 0.0
    %2636 = vmatpush1.msra.mxu0 0.0
    %2637 = vmatprep.subr.mxu0 0.0
    %2638 = vmatpush1.msra.mxu0 0.0
    %2639 = vmatprep.subr.mxu0 0.0
    %2640 = vmatpush1.msra.mxu0 0.0
    %2641 = vmatprep.subr.mxu0 0.0
    %2642 = vmatpush1.msra.mxu0 0.0
    %2643 = vmatprep.subr.mxu0 0.0
    %2644 = vmatpush1.msra.mxu0 0.0
    %2645 = vmatprep.subr.mxu0 0.0
    %2646 = vmatpush1.msra.mxu0 0.0
    %2647 = vmatprep.subr.mxu0 0.0
    %2648 = vmatpush1.msra.mxu0 0.0
    %2649 = vmatprep.subr.mxu0 0.0
    %2650 = vmatpush1.msra.mxu0 0.0
    %2651 = vmatprep.subr.mxu0 0.0
    %2652 = vmatpush1.msra.mxu0 0.0
    %2653 = vmatprep.subr.mxu0 0.0
    %2654 = vmatpush1.msra.mxu0 0.0
    %2655 = vmatprep.subr.mxu0 0.0
    %2656 = vmatpush1.msra.mxu0 0.0
    %2657 = vmatprep.mubr.f32.mxu0 0.0
    %2658 = vmatmul.mubr.f32.gmra.mrb[0].mxu0 %v1511
    %v2659 = vpop.f32.mrb[0].mxu0
    %v2660 = vadd.f32 0.0, %v2659
    %v2661 = vpop.f32.mrb[0].mxu0
    %2662 = vmatprep.mubr.f32.mxu0 0.0
    %2663 = vmatmul.mubr.f32.gmra.mrb[0].mxu0 %v1514
    %v2664 = vpop.f32.mrb[0].mxu0
    %v2665 = vadd.f32 0.0, %v2664
    %v2666 = vpop.f32.mrb[0].mxu0
    %2667 = vdwg.mxu0
    %v2669 = vsel %vm36, %v2660, 0
    %v2672 = vsel %vm36, %v2665, 0
    %2674 = vmatprep.subr.mxu0 0.0
    %2675 = vmatpush1.xpose.msra.mxu0 %v1598
    %2676 = vmatprep.subr.mxu0 0.0
    %2677 = vmatpush1.xpose.msra.mxu0 %v1601
    %2678 = vmatprep.subr.mxu0 0.0
    %2679 = vmatpush1.xpose.msra.mxu0 %v1604
    %2680 = vmatprep.subr.mxu0 0.0
    %2681 = vmatpush1.xpose.msra.mxu0 %v1607
    %2682 = vmatprep.subr.mxu0 0.0
    %2683 = vmatpush1.xpose.msra.mxu0 0.0
    %2684 = vmatprep.subr.mxu0 0.0
    %2685 = vmatpush1.xpose.msra.mxu0 0.0
    %2686 = vmatprep.subr.mxu0 0.0
    %2687 = vmatpush1.xpose.msra.mxu0 0.0
    %2688 = vmatprep.subr.mxu0 0.0
    %2689 = vmatpush1.xpose.msra.mxu0 0.0
    %2690 = vmatprep.subr.mxu0 0.0
    %2691 = vmatpush1.xpose.msra.mxu0 0.0
    %2692 = vmatprep.subr.mxu0 0.0
    %2693 = vmatpush1.xpose.msra.mxu0 0.0
    %2694 = vmatprep.subr.mxu0 0.0
    %2695 = vmatpush1.xpose.msra.mxu0 0.0
    %2696 = vmatprep.subr.mxu0 0.0
    %2697 = vmatpush1.xpose.msra.mxu0 0.0
    %2698 = vmatprep.subr.mxu0 0.0
    %2699 = vmatpush1.xpose.msra.mxu0 0.0
    %2700 = vmatprep.subr.mxu0 0.0
    %2701 = vmatpush1.xpose.msra.mxu0 0.0
    %2702 = vmatprep.subr.mxu0 0.0
    %2703 = vmatpush1.xpose.msra.mxu0 0.0
    %2704 = vmatprep.subr.mxu0 0.0
    %2705 = vmatpush1.xpose.msra.mxu0 0.0
    %2706 = vmatprep.subr.mxu0 0.0
    %2707 = vmatpush1.xpose.msra.mxu0 0.0
    %2708 = vmatprep.subr.mxu0 0.0
    %2709 = vmatpush1.xpose.msra.mxu0 0.0
    %2710 = vmatprep.subr.mxu0 0.0
    %2711 = vmatpush1.xpose.msra.mxu0 0.0
    %2712 = vmatprep.subr.mxu0 0.0
    %2713 = vmatpush1.xpose.msra.mxu0 0.0
    %2714 = vmatprep.subr.mxu0 0.0
    %2715 = vmatpush1.xpose.msra.mxu0 0.0
    %2716 = vmatprep.subr.mxu0 0.0
    %2717 = vmatpush1.xpose.msra.mxu0 0.0
    %2718 = vmatprep.subr.mxu0 0.0
    %2719 = vmatpush1.xpose.msra.mxu0 0.0
    %2720 = vmatprep.subr.mxu0 0.0
    %2721 = vmatpush1.xpose.msra.mxu0 0.0
    %2722 = vmatprep.subr.mxu0 0.0
    %2723 = vmatpush1.xpose.msra.mxu0 0.0
    %2724 = vmatprep.subr.mxu0 0.0
    %2725 = vmatpush1.xpose.msra.mxu0 0.0
    %2726 = vmatprep.subr.mxu0 0.0
    %2727 = vmatpush1.xpose.msra.mxu0 0.0
    %2728 = vmatprep.subr.mxu0 0.0
    %2729 = vmatpush1.xpose.msra.mxu0 0.0
    %2730 = vmatprep.subr.mxu0 0.0
    %2731 = vmatpush1.xpose.msra.mxu0 0.0
    %2732 = vmatprep.subr.mxu0 0.0
    %2733 = vmatpush1.xpose.msra.mxu0 0.0
    %2734 = vmatprep.subr.mxu0 0.0
    %2735 = vmatpush1.xpose.msra.mxu0 0.0
    %2736 = vmatprep.subr.mxu0 0.0
    %2737 = vmatpush1.xpose.msra.mxu0 0.0
    %2738 = vmatprep.mubr.f32.mxu0 0.0
    %2739 = vmatmul.mubr.f32.gmra.mrb[0].mxu0 %v2669
    %v2740 = vpop.f32.mrb[0].mxu0
    %v2741 = vadd.f32 %v34, %v2740
    %v2742 = vpop.f32.mrb[0].mxu0
    %2743 = vmatprep.mubr.f32.mxu0 0.0
    %2744 = vmatmul.mubr.f32.gmra.mrb[0].mxu0 %v2672
    %v2745 = vpop.f32.mrb[0].mxu0
    %v2746 = vadd.f32 %v35, %v2745
    %v2747 = vpop.f32.mrb[0].mxu0
    %2748 = vdwg.mxu0
    %v2749 = vsel %vm1684, %v2741, -inf
    %2750 = vmax.xlane.f32.xlu0 %v2749
    %v2751 = vpop.xlane.xlu0 %2750
    %v2752 = vsel %vm1684, %v2746, -inf
    %2753 = vmax.xlane.f32.xlu0 %v2752
    %v2754 = vpop.xlane.xlu0 %2753
    %v2755 = vsub.f32 %v2741, %v2751
    %v2756 = vsub.f32 %v2746, %v2754
    %v2757 = vmul.f32 %v2755, 1.442695
    %v2758 = vpow.pop %v2757
    %v2759 = vmul.f32 %v2756, 1.442695
    %v2760 = vpow.pop %v2759
    %v2761 = vsel %vm1684, %v2758, 0.0
    %2762 = vadd.xlane.f32.xlu0 %v2761
    %v2763 = vpop.xlane.xlu0 %2762
    %v2764 = vsel %vm1684, %v2760, 0.0
    %2765 = vadd.xlane.f32.xlu0 %v2764
    %v2766 = vpop.xlane.xlu0 %2765
    %v2767 = vrcp.pop %v2763
    %v2768 = vrcp.pop %v2766
    %v2769 = vmul.f32 %v2758, %v2767
    %v2770 = vmul.f32 %v2760, %v2768
    %2771 = vmatprep.subr.mxu0 0.0
    %2772 = vmatpush1.msra.mxu0 %v2588
    %2773 = vmatprep.subr.mxu0 0.0
    %2774 = vmatpush1.msra.mxu0 %v2589
    %2775 = vmatprep.subr.mxu0 0.0
    %2776 = vmatpush1.msra.mxu0 %v2590
    %2777 = vmatprep.subr.mxu0 0.0
    %2778 = vmatpush1.msra.mxu0 %v2591
    %2779 = vmatprep.subr.mxu0 0.0
    %2780 = vmatpush1.msra.mxu0 %v2592
    %2781 = vmatprep.subr.mxu0 0.0
    %2782 = vmatpush1.msra.mxu0 0.0
    %2783 = vmatprep.subr.mxu0 0.0
    %2784 = vmatpush1.msra.mxu0 0.0
    %2785 = vmatprep.subr.mxu0 0.0
    %2786 = vmatpush1.msra.mxu0 0.0
    %2787 = vmatprep.subr.mxu0 0.0
    %2788 = vmatpush1.msra.mxu0 0.0
    %2789 = vmatprep.subr.mxu0 0.0
    %2790 = vmatpush1.msra.mxu0 0.0
    %2791 = vmatprep.subr.mxu0 0.0
    %2792 = vmatpush1.msra.mxu0 0.0
    %2793 = vmatprep.subr.mxu0 0.0
    %2794 = vmatpush1.msra.mxu0 0.0
    %2795 = vmatprep.subr.mxu0 0.0
    %2796 = vmatpush1.msra.mxu0 0.0
    %2797 = vmatprep.subr.mxu0 0.0
    %2798 = vmatpush1.msra.mxu0 0.0
    %2799 = vmatprep.subr.mxu0 0.0
    %2800 = vmatpush1.msra.mxu0 0.0
    %2801 = vmatprep.subr.mxu0 0.0
    %2802 = vmatpush1.msra.mxu0 0.0
    %2803 = vmatprep.subr.mxu0 0.0
    %2804 = vmatpush1.msra.mxu0 0.0
    %2805 = vmatprep.subr.mxu0 0.0
    %2806 = vmatpush1.msra.mxu0 0.0
    %2807 = vmatprep.subr.mxu0 0.0
    %2808 = vmatpush1.msra.mxu0 0.0
    %2809 = vmatprep.subr.mxu0 0.0
    %2810 = vmatpush1.msra.mxu0 0.0
    %2811 = vmatprep.subr.mxu0 0.0
    %2812 = vmatpush1.msra.mxu0 0.0
    %2813 = vmatprep.subr.mxu0 0.0
    %2814 = vmatpush1.msra.mxu0 0.0
    %2815 = vmatprep.subr.mxu0 0.0
    %2816 = vmatpush1.msra.mxu0 0.0
    %2817 = vmatprep.subr.mxu0 0.0
    %2818 = vmatpush1.msra.mxu0 0.0
    %2819 = vmatprep.subr.mxu0 0.0
    %2820 = vmatpush1.msra.mxu0 0.0
    %2821 = vmatprep.subr.mxu0 0.0
    %2822 = vmatpush1.msra.mxu0 0.0
    %2823 = vmatprep.subr.mxu0 0.0
    %2824 = vmatpush1.msra.mxu0 0.0
    %2825 = vmatprep.subr.mxu0 0.0
    %2826 = vmatpush1.msra.mxu0 0.0
    %2827 = vmatprep.subr.mxu0 0.0
    %2828 = vmatpush1.msra.mxu0 0.0
    %2829 = vmatprep.subr.mxu0 0.0
    %2830 = vmatpush1.msra.mxu0 0.0
    %2831 = vmatprep.subr.mxu0 0.0
    %2832 = vmatpush1.msra.mxu0 0.0
    %2833 = vmatprep.subr.mxu0 0.0
    %2834 = vmatpush1.msra.mxu0 0.0
    %2835 = vmatprep.mubr.f32.mxu0 0.0
    %2836 = vmatmul.mubr.f32.gmra.mrb[0].mxu0 %v1598
    %v2837 = vpop.f32.mrb[0].mxu0
    %v2838 = vadd.f32 0.0, %v2837
    %v2839 = vpop.f32.mrb[0].mxu0
    %2840 = vmatprep.mubr.f32.mxu0 0.0
    %2841 = vmatmul.mubr.f32.gmra.mrb[0].mxu0 %v1601
    %v2842 = vpop.f32.mrb[0].mxu0
    %v2843 = vadd.f32 0.0, %v2842
    %v2844 = vpop.f32.mrb[0].mxu0
    %2845 = vmatprep.mubr.f32.mxu0 0.0
    %2846 = vmatmul.mubr.f32.gmra.mrb[0].mxu0 %v1604
    %v2847 = vpop.f32.mrb[0].mxu0
    %v2848 = vadd.f32 0.0, %v2847
    %v2849 = vpop.f32.mrb[0].mxu0
    %2850 = vmatprep.mubr.f32.mxu0 0.0
    %2851 = vmatmul.mubr.f32.gmra.mrb[0].mxu0 %v1607
    %v2852 = vpop.f32.mrb[0].mxu0
    %v2853 = vadd.f32 0.0, %v2852
    %v2854 = vpop.f32.mrb[0].mxu0
    %2855 = vdwg.mxu0
    %v2857 = vsel %vm1684, %v2769, 0
    %v2860 = vsel %vm1684, %v2770, 0
    %2862 = vmatprep.subr.mxu0 0.0
    %2863 = vmatpush1.msra.mxu0 %v2838
    %2864 = vmatprep.subr.mxu0 0.0
    %2865 = vmatpush1.msra.mxu0 %v2843
    %2866 = vmatprep.subr.mxu0 0.0
    %2867 = vmatpush1.msra.mxu0 %v2848
    %2868 = vmatprep.subr.mxu0 0.0
    %2869 = vmatpush1.msra.mxu0 %v2853
    %2870 = vmatprep.subr.mxu0 0.0
    %2871 = vmatpush1.msra.mxu0 0.0
    %2872 = vmatprep.subr.mxu0 0.0
    %2873 = vmatpush1.msra.mxu0 0.0
    %2874 = vmatprep.subr.mxu0 0.0
    %2875 = vmatpush1.msra.mxu0 0.0
    %2876 = vmatprep.subr.mxu0 0.0
    %2877 = vmatpush1.msra.mxu0 0.0
    %2878 = vmatprep.subr.mxu0 0.0
    %2879 = vmatpush1.msra.mxu0 0.0
    %2880 = vmatprep.subr.mxu0 0.0
    %2881 = vmatpush1.msra.mxu0 0.0
    %2882 = vmatprep.subr.mxu0 0.0
    %2883 = vmatpush1.msra.mxu0 0.0
    %2884 = vmatprep.subr.mxu0 0.0
    %2885 = vmatpush1.msra.mxu0 0.0
    %2886 = vmatprep.subr.mxu0 0.0
    %2887 = vmatpush1.msra.mxu0 0.0
    %2888 = vmatprep.subr.mxu0 0.0
    %2889 = vmatpush1.msra.mxu0 0.0
    %2890 = vmatprep.subr.mxu0 0.0
    %2891 = vmatpush1.msra.mxu0 0.0
    %2892 = vmatprep.subr.mxu0 0.0
    %2893 = vmatpush1.msra.mxu0 0.0
    %2894 = vmatprep.subr.mxu0 0.0
    %2895 = vmatpush1.msra.mxu0 0.0
    %2896 = vmatprep.subr.mxu0 0.0
    %2897 = vmatpush1.msra.mxu0 0.0
    %2898 = vmatprep.subr.mxu0 0.0
    %2899 = vmatpush1.msra.mxu0 0.0
    %2900 = vmatprep.subr.mxu0 0.0
    %2901 = vmatpush1.msra.mxu0 0.0
    %2902 = vmatprep.subr.mxu0 0.0
    %2903 = vmatpush1.msra.mxu0 0.0
    %2904 = vmatprep.subr.mxu0 0.0
    %2905 = vmatpush1.msra.mxu0 0.0
    %2906 = vmatprep.subr.mxu0 0.0
    %2907 = vmatpush1.msra.mxu0 0.0
    %2908 = vmatprep.subr.mxu0 0.0
    %2909 = vmatpush1.msra.mxu0 0.0
    %2910 = vmatprep.subr.mxu0 0.0
    %2911 = vmatpush1.msra.mxu0 0.0
    %2912 = vmatprep.subr.mxu0 0.0
    %2913 = vmatpush1.msra.mxu0 0.0
    %2914 = vmatprep.subr.mxu0 0.0
    %2915 = vmatpush1.msra.mxu0 0.0
    %2916 = vmatprep.subr.mxu0 0.0
    %2917 = vmatpush1.msra.mxu0 0.0
    %2918 = vmatprep.subr.mxu0 0.0
    %2919 = vmatpush1.msra.mxu0 0.0
    %2920 = vmatprep.subr.mxu0 0.0
    %2921 = vmatpush1.msra.mxu0 0.0
    %2922 = vmatprep.subr.mxu0 0.0
    %2923 = vmatpush1.msra.mxu0 0.0
    %2924 = vmatprep.subr.mxu0 0.0
    %2925 = vmatpush1.msra.mxu0 0.0
    %2926 = vmatprep.mubr.f32.mxu0 0.0
    %2927 = vmatmul.mubr.f32.gmra.mrb[0].mxu0 %v2857
    %v2928 = vpop.f32.mrb[0].mxu0
    %v2929 = vadd.f32 0.0, %v2928
    %v2930 = vpop.f32.mrb[0].mxu0
    %2931 = vmatprep.mubr.f32.mxu0 0.0
    %2932 = vmatmul.mubr.f32.gmra.mrb[0].mxu0 %v2860
    %v2933 = vpop.f32.mrb[0].mxu0
    %v2934 = vadd.f32 0.0, %v2933
    %v2935 = vpop.f32.mrb[0].mxu0
    %2936 = vdwg.mxu0
    %v2937 = vadd.f32 %v2581, %v2929
    %v2938 = vadd.f32 %v2582, %v2934
    %v2939 = vld [vmem:[%s3 + $0x2f0] sm:$0x1]
    %v2940 = vlaneseq
    %v2941 = vshrl.u32 %v2940, 7
    %v2942 = vsub.s32 0, %v2941
    %v2943 = vrot.slane %v2939, %v2942
    %v2944 = vadd.f32 %v2937, %v2943
    %v2945 = vadd.f32 %v2938, %v2943
    %v2946 = vadd.f32 %v2944, %v1466
    %v2947 = vadd.f32 %v2945, %v1467
    %v2948 = vsel %vm36, %v2946, 0.0
    %2949 = vadd.xlane.f32.xlu0 %v2948
    %v2950 = vpop.xlane.xlu0 %2949
    %v2951 = vsel %vm36, %v2947, 0.0
    %2952 = vadd.xlane.f32.xlu0 %v2951
    %v2953 = vpop.xlane.xlu0 %2952
    %v2954 = vmul.f32 %v2950, 0.03125
    %v2955 = vmul.f32 %v2953, 0.03125
    %v2956 = vmul.f32 %v2946, %v2946
    %v2957 = vmul.f32 %v2947, %v2947
    %v2958 = vsel %vm36, %v2956, 0.0
    %2959 = vadd.xlane.f32.xlu0 %v2958
    %v2960 = vpop.xlane.xlu0 %2959
    %v2961 = vsel %vm36, %v2957, 0.0
    %2962 = vadd.xlane.f32.xlu0 %v2961
    %v2963 = vpop.xlane.xlu0 %2962
    %v2964 = vmul.f32 %v2960, 0.03125
    %v2965 = vmul.f32 %v2963, 0.03125
    %v2966 = vmul.f32 %v2954, %v2954
    %v2967 = vmul.f32 %v2955, %v2955
    %v2968 = vsub.f32 %v2964, %v2966
    %v2969 = vsub.f32 %v2965, %v2967
    %v2970 = vsub.f32 %v2946, %v2954
    %v2971 = vsub.f32 %v2947, %v2955
    %v2972 = vadd.f32 %v2968, 1e-06
    %v2973 = vadd.f32 %v2969, 1e-06
    %v2974 = vrsqrt.pop %v2972
    %v2975 = vrsqrt.pop %v2973
    %v2976 = vmul.f32 %v2970, %v2974
    %v2977 = vmul.f32 %v2971, %v2975
    %v2978 = vsel %vm69, %v2976, %v25
    %v2979 = vsel %vm69, %v2977, %v25
    %v2980 = vld [vmem:[%s3 + $0x280] sm:$0xff]
    %v2981 = vld [vmem:[%s3 + $0x288] sm:$0xff]
    %v2982 = vld [vmem:[%s3 + $0x290] sm:$0xff]
    %v2983 = vld [vmem:[%s3 + $0x298] sm:$0xff]
    %v2984 = vld [vmem:[%s3 + $0x2a0] sm:$0xff]
    %v2986 = vsel %vm36, %v2978, 0
    %v2989 = vsel %vm36, %v2979, 0
    %2991 = vmatprep.subr.mxu0 0.0
    %2992 = vmatpush1.msra.mxu0 %v2980
    %2993 = vmatprep.subr.mxu0 0.0
    %2994 = vmatpush1.msra.mxu0 %v2981
    %2995 = vmatprep.subr.mxu0 0.0
    %2996 = vmatpush1.msra.mxu0 %v2982
    %2997 = vmatprep.subr.mxu0 0.0
    %2998 = vmatpush1.msra.mxu0 %v2983
    %2999 = vmatprep.subr.mxu0 0.0
    %3000 = vmatpush1.msra.mxu0 %v2984
    %3001 = vmatprep.subr.mxu0 0.0
    %3002 = vmatpush1.msra.mxu0 0.0
    %3003 = vmatprep.subr.mxu0 0.0
    %3004 = vmatpush1.msra.mxu0 0.0
    %3005 = vmatprep.subr.mxu0 0.0
    %3006 = vmatpush1.msra.mxu0 0.0
    %3007 = vmatprep.subr.mxu0 0.0
    %3008 = vmatpush1.msra.mxu0 0.0
    %3009 = vmatprep.subr.mxu0 0.0
    %3010 = vmatpush1.msra.mxu0 0.0
    %3011 = vmatprep.subr.mxu0 0.0
    %3012 = vmatpush1.msra.mxu0 0.0
    %3013 = vmatprep.subr.mxu0 0.0
    %3014 = vmatpush1.msra.mxu0 0.0
    %3015 = vmatprep.subr.mxu0 0.0
    %3016 = vmatpush1.msra.mxu0 0.0
    %3017 = vmatprep.subr.mxu0 0.0
    %3018 = vmatpush1.msra.mxu0 0.0
    %3019 = vmatprep.subr.mxu0 0.0
    %3020 = vmatpush1.msra.mxu0 0.0
    %3021 = vmatprep.subr.mxu0 0.0
    %3022 = vmatpush1.msra.mxu0 0.0
    %3023 = vmatprep.subr.mxu0 0.0
    %3024 = vmatpush1.msra.mxu0 0.0
    %3025 = vmatprep.subr.mxu0 0.0
    %3026 = vmatpush1.msra.mxu0 0.0
    %3027 = vmatprep.subr.mxu0 0.0
    %3028 = vmatpush1.msra.mxu0 0.0
    %3029 = vmatprep.subr.mxu0 0.0
    %3030 = vmatpush1.msra.mxu0 0.0
    %3031 = vmatprep.subr.mxu0 0.0
    %3032 = vmatpush1.msra.mxu0 0.0
    %3033 = vmatprep.subr.mxu0 0.0
    %3034 = vmatpush1.msra.mxu0 0.0
    %3035 = vmatprep.subr.mxu0 0.0
    %3036 = vmatpush1.msra.mxu0 0.0
    %3037 = vmatprep.subr.mxu0 0.0
    %3038 = vmatpush1.msra.mxu0 0.0
    %3039 = vmatprep.subr.mxu0 0.0
    %3040 = vmatpush1.msra.mxu0 0.0
    %3041 = vmatprep.subr.mxu0 0.0
    %3042 = vmatpush1.msra.mxu0 0.0
    %3043 = vmatprep.subr.mxu0 0.0
    %3044 = vmatpush1.msra.mxu0 0.0
    %3045 = vmatprep.subr.mxu0 0.0
    %3046 = vmatpush1.msra.mxu0 0.0
    %3047 = vmatprep.subr.mxu0 0.0
    %3048 = vmatpush1.msra.mxu0 0.0
    %3049 = vmatprep.subr.mxu0 0.0
    %3050 = vmatpush1.msra.mxu0 0.0
    %3051 = vmatprep.subr.mxu0 0.0
    %3052 = vmatpush1.msra.mxu0 0.0
    %3053 = vmatprep.subr.mxu0 0.0
    %3054 = vmatpush1.msra.mxu0 0.0
    %3055 = vmatprep.mubr.f32.mxu0 0.0
    %3056 = vmatmul.mubr.f32.gmra.mrb[0].mxu0 %v2986
    %v3057 = vpop.f32.mrb[0].mxu0
    %v3058 = vadd.f32 0.0, %v3057
    %v3059 = vpop.f32.mrb[0].mxu0
    %3060 = vmatprep.mubr.f32.mxu0 0.0
    %3061 = vmatmul.mubr.f32.gmra.mrb[0].mxu0 %v2989
    %v3062 = vpop.f32.mrb[0].mxu0
    %v3063 = vadd.f32 0.0, %v3062
    %v3064 = vpop.f32.mrb[0].mxu0
    %3065 = vdwg.mxu0
    %v3066 = vmax.f32 %v3058, 0.0
    %v3067 = vmax.f32 %v3063, 0.0
    %v3068 = vld [vmem:[%s3 + $0x2a8] sm:$0xff]
    %v3069 = vld [vmem:[%s3 + $0x2b0] sm:$0xff]
    %v3070 = vld [vmem:[%s3 + $0x2b8] sm:$0xff]
    %v3071 = vld [vmem:[%s3 + $0x2c0] sm:$0xff]
    %v3072 = vld [vmem:[%s3 + $0x2c8] sm:$0xff]
    %v3073 = vld [vmem:[%s3 + $0x2d0] sm:$0xff]
    %v3074 = vld [vmem:[%s3 + $0x2d8] sm:$0xff]
    %v3075 = vld [vmem:[%s3 + $0x2e0] sm:$0xff]
    %v3076 = vld [vmem:[%s3 + $0x2f8] sm:$0x1]
    %v3077 = vlaneseq
    %v3078 = vshrl.u32 %v3077, 7
    %v3079 = vsub.s32 0, %v3078
    %v3080 = vrot.slane %v3076, %v3079
    %vm3081 = vcmask 523264
    %v3083 = vsel %vm3081, %v3066, 0
    %v3086 = vsel %vm3081, %v3067, 0
    %3088 = vmatprep.subr.mxu0 0.0
    %3089 = vmatpush1.msra.mxu0 %v3068
    %3090 = vmatprep.subr.mxu0 0.0
    %3091 = vmatpush1.msra.mxu0 %v3069
    %3092 = vmatprep.subr.mxu0 0.0
    %3093 = vmatpush1.msra.mxu0 %v3070
    %3094 = vmatprep.subr.mxu0 0.0
    %3095 = vmatpush1.msra.mxu0 %v3071
    %3096 = vmatprep.subr.mxu0 0.0
    %3097 = vmatpush1.msra.mxu0 %v3072
    %3098 = vmatprep.subr.mxu0 0.0
    %3099 = vmatpush1.msra.mxu0 %v3073
    %3100 = vmatprep.subr.mxu0 0.0
    %3101 = vmatpush1.msra.mxu0 %v3074
    %3102 = vmatprep.subr.mxu0 0.0
    %3103 = vmatpush1.msra.mxu0 %v3075
    %3104 = vmatprep.subr.mxu0 0.0
    %3105 = vmatpush1.msra.mxu0 0.0
    %3106 = vmatprep.subr.mxu0 0.0
    %3107 = vmatpush1.msra.mxu0 0.0
    %3108 = vmatprep.subr.mxu0 0.0
    %3109 = vmatpush1.msra.mxu0 0.0
    %3110 = vmatprep.subr.mxu0 0.0
    %3111 = vmatpush1.msra.mxu0 0.0
    %3112 = vmatprep.subr.mxu0 0.0
    %3113 = vmatpush1.msra.mxu0 0.0
    %3114 = vmatprep.subr.mxu0 0.0
    %3115 = vmatpush1.msra.mxu0 0.0
    %3116 = vmatprep.subr.mxu0 0.0
    %3117 = vmatpush1.msra.mxu0 0.0
    %3118 = vmatprep.subr.mxu0 0.0
    %3119 = vmatpush1.msra.mxu0 0.0
    %3120 = vmatprep.subr.mxu0 0.0
    %3121 = vmatpush1.msra.mxu0 0.0
    %3122 = vmatprep.subr.mxu0 0.0
    %3123 = vmatpush1.msra.mxu0 0.0
    %3124 = vmatprep.subr.mxu0 0.0
    %3125 = vmatpush1.msra.mxu0 0.0
    %3126 = vmatprep.subr.mxu0 0.0
    %3127 = vmatpush1.msra.mxu0 0.0
    %3128 = vmatprep.subr.mxu0 0.0
    %3129 = vmatpush1.msra.mxu0 0.0
    %3130 = vmatprep.subr.mxu0 0.0
    %3131 = vmatpush1.msra.mxu0 0.0
    %3132 = vmatprep.subr.mxu0 0.0
    %3133 = vmatpush1.msra.mxu0 0.0
    %3134 = vmatprep.subr.mxu0 0.0
    %3135 = vmatpush1.msra.mxu0 0.0
    %3136 = vmatprep.subr.mxu0 0.0
    %3137 = vmatpush1.msra.mxu0 0.0
    %3138 = vmatprep.subr.mxu0 0.0
    %3139 = vmatpush1.msra.mxu0 0.0
    %3140 = vmatprep.subr.mxu0 0.0
    %3141 = vmatpush1.msra.mxu0 0.0
    %3142 = vmatprep.subr.mxu0 0.0
    %3143 = vmatpush1.msra.mxu0 0.0
    %3144 = vmatprep.subr.mxu0 0.0
    %3145 = vmatpush1.msra.mxu0 0.0
    %3146 = vmatprep.subr.mxu0 0.0
    %3147 = vmatpush1.msra.mxu0 0.0
    %3148 = vmatprep.subr.mxu0 0.0
    %3149 = vmatpush1.msra.mxu0 0.0
    %3150 = vmatprep.subr.mxu0 0.0
    %3151 = vmatpush1.msra.mxu0 0.0
    %3152 = vmatprep.mubr.f32.mxu0 0.0
    %3153 = vmatmul.mubr.f32.gmra.mrb[0].mxu0 %v3083
    %v3154 = vpop.f32.mrb[0].mxu0
    %v3155 = vadd.f32 %v3080, %v3154
    %v3156 = vpop.f32.mrb[0].mxu0
    %3157 = vmatprep.mubr.f32.mxu0 0.0
    %3158 = vmatmul.mubr.f32.gmra.mrb[0].mxu0 %v3086
    %v3159 = vpop.f32.mrb[0].mxu0
    %v3160 = vadd.f32 %v3080, %v3159
    %v3161 = vpop.f32.mrb[0].mxu0
    %3162 = vdwg.mxu0
    %v3163 = vadd.f32 %v3155, %v2946
    %v3164 = vadd.f32 %v3160, %v2947
    %3165 = vst.msk [vmem:[#allocation2] sm:$0xff] %vm1684, %v3163
    %3166 = vst.msk [vmem:[#allocation2 + $0x8] sm:$0xff] %vm1684, %v3164
    %3167 = vst.msk [vmem:[#allocation4] sm:$0xff] %vm1684, %v1705
    %3168 = vst.msk [vmem:[#allocation4 + $0x8] sm:$0xff] %vm1684, %v1706
    // Predicated region
    $region18: #{tpu_custom_call.1} parent=1 // pred_check
      _
    $region19: #{tpu_custom_call.1} parent=1 // pred_check_branch
      %3170 = sbr.rel (0) target = $region21
    $region20: #{tpu_custom_call.1} parent=1 // pred_region
      %s3172 = ssub.s32 256, 256
      %3173 = vsyncadd [#allocation3], %s3172
      %s3174 = sshll.u32 [#allocation2], 4
      %s3175 = int_to_ptr.vmem [resolvable:$true] %s3174
      %3180 = dma.vmem_to_hbm [thread:$0]  %s3175, 256, %s4, [#allocation3], 128, 128, 8
    $region21: #{tpu_custom_call.1} parent=1 // pred_fallthru
      _
    // Predicated region
    $region22: #{tpu_custom_call.1} parent=1 // pred_check
      _
    $region23: #{tpu_custom_call.1} parent=1 // pred_check_branch
      %3182 = sbr.rel (0) target = $region25
    $region24: #{tpu_custom_call.1} parent=1 // pred_region
      %s3184 = ssub.s32 256, 256
      %3185 = vsyncadd [#allocation5], %s3184
      %s3186 = sshll.u32 [#allocation4], 4
      %s3187 = int_to_ptr.vmem [resolvable:$true] %s3186
      %3192 = dma.vmem_to_hbm [thread:$0]  %s3187, 256, %s5, [#allocation5], 128, 128, 8
    $region25: #{tpu_custom_call.1} parent=1 // pred_fallthru
      _
    // Predicated region
    $region26: #{tpu_custom_call.1} parent=1 // pred_check
      _
    $region27: #{tpu_custom_call.1} parent=1 // pred_check_branch
      %3194 = sbr.rel (0) target = $region29
    $region28: #{tpu_custom_call.1} parent=1 // pred_region
      %3195 = dma.done [#allocation3], 256
    $region29: #{tpu_custom_call.1} parent=1 // pred_fallthru
      _
    // Predicated region
    $region30: #{tpu_custom_call.1} parent=1 // pred_check
      _
    $region31: #{tpu_custom_call.1} parent=1 // pred_check_branch
      %3197 = sbr.rel (0) target = $region33
    $region32: #{tpu_custom_call.1} parent=1 // pred_region
      %3198 = dma.done [#allocation5], 256
    $region33: #{tpu_custom_call.1} parent=1 // pred_fallthru
      _
    %3199 = vsyncpa [#allocation3], 1
    %3200 = vsyncpa [#allocation5], 1

</llo_original>
